<compile_context>
chip_gen: v6e
topology: v6e:2x2x1
jax: 0.10.0
libtpu: 0.0.40
codegen_flags: <defaults>
</compile_context>

<pallas_src>
import jax
import jax.numpy as jnp
from jax import lax
from jax.experimental import pallas as pl
from jax.experimental.pallas import tpu as pltpu


def _round_up(x: int, m: int) -> int:
    return ((x + m - 1) // m) * m


def _round_down(x: int, m: int) -> int:
    return (x // m) * m


def _device_kind() -> str:
    try:
        return jax.devices()[0].device_kind.lower()
    except Exception:
        return ""


def _generation_budgets():
    """Generation-aware VMEM budgets: (one-hot intermediate budget, scoped VMEM
    limit, TensorCores per chip)."""
    kind = _device_kind()
    if "v7" in kind:
        # v7x: 64 MiB physical VMEM per TC, 2 TCs per chip -> stay well clear.
        return {"onehot_budget": 12 << 20, "vmem_limit": 40 << 20, "n_cores": 2}
    # v5e / v6e: 128 MiB physical VMEM, 1 TC per chip.
    return {"onehot_budget": 32 << 20, "vmem_limit": 80 << 20, "n_cores": 1}


def _onehot_gather_kernel(pos_ref, idx_ref, out_ref):
    """One lane-dense L-chunk per grid step, all heads at once.

    pos_ref: (num_heads, T_pad) f32   -- full (padded) encoding table, resident
    idx_ref: (1, L_chunk)       int32 -- flat relative indices (shared by heads)
    out_ref: (num_heads, L_chunk) f32 -- gathered encodings for this chunk
    """
    T_pad = pos_ref.shape[1]

    idx = idx_ref[...]                                         # (1, L_chunk)
    # (T_pad, 1) iota column; == against (1, L_chunk) broadcasts to the one-hot
    # without materializing a T_pad x L_chunk int32 iota.  Exactly one row
    # matches per column (indices < T), so the matmul reproduces the gather
    # bit-exactly (0/1 weights, f32 accumulate).
    col_iota = lax.broadcasted_iota(jnp.int32, (T_pad, 1), 0)  # (T_pad, 1)
    onehot = (col_iota == idx).astype(jnp.float32)             # (T_pad, L_chunk)

    out_ref[...] = jnp.dot(
        pos_ref[...], onehot, preferred_element_type=jnp.float32
    ).astype(out_ref.dtype)


def relative_position_encoding(pos_enc: jnp.ndarray,
                               rel_indices: jnp.ndarray,
                               height: int,
                               width: int,
                               *,
                               use_pallas: bool | None = None) -> jnp.ndarray:
    """Pallas equivalent of RelativePositionEncoding.get_encoding().

    pos_enc:     (num_heads, (2H-1)*(2W-1)) float32
    rel_indices: (num_heads, (H*W)^2) or ((H*W)^2,) int
                 CONTRACT: identical per head (the PyTorch module expand()s one
                 row across heads); only row 0 is read.
    returns:     (num_heads, H*W, H*W) float32
    """
    num_heads, T = pos_enc.shape
    L = (height * width) ** 2

    idx_row = rel_indices[0] if rel_indices.ndim == 2 else rel_indices
    assert idx_row.shape[-1] == L

    # Small-problem fast path: for tiny outputs the Pallas launch + pipeline
    # prologue exceeds the whole op's roofline -> plain XLA gather.
    out_bytes = num_heads * L * 4
    if use_pallas is None:
        use_pallas = out_bytes >= (256 << 10)
    if not use_pallas:
        gathered = jnp.take(pos_enc.astype(jnp.float32),
                            idx_row.astype(jnp.int32), axis=-1)
        return gathered.reshape(num_heads, height * width, height * width)

    budgets = _generation_budgets()

    # Lane-friendly padding. Padded table entries are never selected (indices
    # < T); padded index columns select entry 0 and are sliced off below.
    T_pad = _round_up(max(T, 128), 128)
    L_pad_full = _round_up(L, 128)

    # VMEM-budgeted chunk: the f32 one-hot (T_pad * L_chunk * 4 B) is the
    # dominant per-step intermediate.
    max_chunk = max(128, _round_down(budgets["onehot_budget"] // (T_pad * 4), 128))
    L_chunk = min(L_pad_full, max_chunk)

    # v7x: keep >= 2 grid steps so "parallel" can shard across both TensorCores.
    if budgets["n_cores"] >= 2 and L_chunk >= L_pad_full and L_pad_full >= 256:
        L_chunk = _round_up((L_pad_full + 1) // 2, 128)

    L_pad = _round_up(L, L_chunk)
    n_chunks = L_pad // L_chunk

    pos_pad = jnp.zeros((num_heads, T_pad), jnp.float32).at[:, :T].set(
        pos_enc.astype(jnp.float32))
    idx_pad = jnp.zeros((1, L_pad), jnp.int32).at[0, :L].set(
        idx_row.astype(jnp.int32))

    cost = pl.CostEstimate(
        flops=2 * num_heads * T_pad * L_pad,
        transcendentals=0,
        bytes_accessed=4 * (num_heads * L_pad + num_heads * T_pad + L_pad),
    )

    out_flat = pl.pallas_call(
        _onehot_gather_kernel,
        out_shape=jax.ShapeDtypeStruct((num_heads, L_pad), jnp.float32),
        grid_spec=pltpu.PrefetchScalarGridSpec(
            num_scalar_prefetch=0,
            grid=(n_chunks,),
            in_specs=[
                # Full table block, same for every step (stays resident in VMEM).
                pl.BlockSpec((num_heads, T_pad), lambda c: (0, 0)),
                # Lane-dense index chunk.
                pl.BlockSpec((1, L_chunk), lambda c: (0, c)),
            ],
            out_specs=pl.BlockSpec((num_heads, L_chunk), lambda c: (0, c)),
        ),
        compiler_params=pltpu.CompilerParams(
            dimension_semantics=("parallel",),
            vmem_limit_bytes=budgets["vmem_limit"],
        ),
        cost_estimate=cost,
    )(pos_pad, idx_pad)

    return out_flat[:, :L].reshape(num_heads, height * width, height * width)


def get_relative_indices(num_heads: int, height: int, width: int) -> jnp.ndarray:
    """Port of RelativePositionEncoding.get_indices() (plain JAX glue)."""
    h, w = height, width
    y = jnp.arange(h, dtype=jnp.int32)
    x = jnp.arange(w, dtype=jnp.int32)
    y1, x1, y2, x2 = jnp.meshgrid(y, x, y, x, indexing="ij")
    indices = (y1 - y2 + h - 1) * (2 * w - 1) + x1 - x2 + w - 1
    indices = indices.reshape(-1)
    return jnp.broadcast_to(indices, (num_heads, indices.shape[0]))


if __name__ == "__main__":
    num_heads, height, width = 4, 8, 8

    key = jax.random.PRNGKey(0)
    # nn.Parameter(torch.empty(...).normal_(std=0.02))
    pos_enc = 0.02 * jax.random.normal(
        key, (num_heads, (2 * height - 1) * (2 * width - 1)), dtype=jnp.float32)

    rel_indices = get_relative_indices(num_heads, height, width)

    # Exercise the Pallas kernel explicitly (the auto heuristic would route a
    # problem this tiny to the plain-XLA fast path).
    out = relative_position_encoding(pos_enc, rel_indices, height, width,
                                     use_pallas=True)
    out = jax.block_until_ready(out)

    # Also exercise the default dispatch (XLA fast path at this size).
    out_fast = jax.block_until_ready(
        relative_position_encoding(pos_enc, rel_indices, height, width))

    # pure-JAX reference: per-head gather + unflatten (matches torch.gather path)
    ref = jnp.take_along_axis(pos_enc, rel_indices, axis=-1).reshape(
        num_heads, height * width, height * width)

    assert out.shape == (num_heads, height * width, height * width)
    assert jnp.allclose(out, ref, atol=1e-6), "pallas kernel mismatch vs reference"
    assert jnp.allclose(out_fast, ref, atol=1e-6), "fast path mismatch vs reference"
    print("KERNEL_OK")
</pallas_src>

<mosaic_0001>
module attributes {stable_mosaic.version = 11 : i64} {
  func.func @_onehot_gather_kernel(%arg0: i32, %arg1: memref<4x256xf32, #tpu.memory_space<vmem>>, %arg2: memref<1x4096xi32, #tpu.memory_space<vmem>>, %arg3: memref<4x4096xf32, #tpu.memory_space<vmem>>) attributes {dimension_semantics = [#tpu.dimension_semantics<parallel>], iteration_bounds = array<i64: 1>, scalar_prefetch = 0 : i64, scratch_operands = 0 : i64, tpu.core_type = #tpu.core_type<tc>, window_params = [{pipeline_mode = #tpu.pipeline_mode<synchronous>, transform_indices = @transform_0, window_bounds = array<i64: 4, 256>}, {transform_indices = @transform_1, window_bounds = array<i64: 1, 4096>}, {transform_indices = @transform_2, window_bounds = array<i64: 4, 4096>}]} {
    %c0 = arith.constant 0 : index
    %c0_0 = arith.constant 0 : index
    %0 = vector.load %arg2[%c0, %c0_0] : memref<1x4096xi32, #tpu.memory_space<vmem>>, vector<1x4096xi32>
    %1 = tpu.iota {dimensions = array<i32: 0>} : vector<256x1xi32>
    %2 = vector.broadcast %1 : vector<256x1xi32> to vector<256x4096xi32>
    %3 = vector.broadcast %0 : vector<1x4096xi32> to vector<256x4096xi32>
    %4 = arith.cmpi eq, %2, %3 : vector<256x4096xi32>
    %5 = arith.extui %4 : vector<256x4096xi1> to vector<256x4096xi32>
    %6 = arith.sitofp %5 : vector<256x4096xi32> to vector<256x4096xf32>
    %c0_1 = arith.constant 0 : index
    %c0_2 = arith.constant 0 : index
    %7 = vector.load %arg1[%c0_1, %c0_2] : memref<4x256xf32, #tpu.memory_space<vmem>>, vector<4x256xf32>
    %cst = arith.constant dense<0.000000e+00> : vector<4x4096xf32>
    %8 = tpu.matmul %7, %6, %cst {dimension_numbers = #tpu.dot_dimension_numbers<[1], [0], [0], [1], [0, 0, 1, 1], [], []>} : vector<4x256xf32>, vector<256x4096xf32>, vector<4x4096xf32> -> vector<4x4096xf32>
    %c0_3 = arith.constant 0 : index
    %c0_4 = arith.constant 0 : index
    %9 = vector.load %arg3[%c0_3, %c0_4] : memref<4x4096xf32, #tpu.memory_space<vmem>>, vector<4x4096xf32>
    tpu.vector_store %arg3[%c0_3, %c0_4], %8 {strides = array<i32>} : memref<4x4096xf32, #tpu.memory_space<vmem>>, vector<4x4096xf32>,
    return
  }
  func.func @transform_0(%arg0: i32) -> (i32, i32) {
    %c0_i32 = arith.constant 0 : i32
    %c0_i32_0 = arith.constant 0 : i32
    %c0_i32_1 = arith.constant 0 : i32
    return %c0_i32, %c0_i32_0 : i32, i32
  }
  func.func @transform_1(%arg0: i32) -> (i32, i32) {
    %c0_i32 = arith.constant 0 : i32
    %c0_i32_0 = arith.constant 0 : i32
    return %c0_i32, %arg0 : i32, i32
  }
  func.func @transform_2(%arg0: i32) -> (i32, i32) {
    %c0_i32 = arith.constant 0 : i32
    %c0_i32_0 = arith.constant 0 : i32
    return %c0_i32, %arg0 : i32, i32
  }
}

</mosaic_0001>

<llo_original>
// kernel: tpu_custom_call.1
$region0: #{tpu_custom_call.1}
  #allocation0 [shape = 'u32[]', space=smem, size = 0x4, offset = 0x4, fixed_abs, tag = 'smem constant byte address 0x4 - core index']
  #allocation1 [shape = 'u32[144,128]{1,0:T(1,128)}', space=vmem, size = 0x12000, scoped, tag = 'internal scratch']
  %s0 = inlined_call_operand.hbm [shape: f32[4,256], index: 0, kind: input, shape index: {}]
  %s1 = inlined_call_operand.hbm [shape: s32[1,4096], index: 1, kind: input, shape index: {}]
  %s2 = inlined_call_operand.hbm [shape: f32[4,4096], index: 2, kind: output, shape index: {}]
  %s3 = sld [smem:[#allocation0]]
  $region26: #{tpu_custom_call.1} parent=0
    _
  %s5 = ssub.s32 1, %s3
  %s6 = scalar_select 0, %s5, %s3
  $region1: #{tpu_custom_call.1} parent=0
    #allocation2 [shape = 'u8[4096]{0}', space=vmem, size = 0x1000, scoped, tag = 'input window, operand 0, single buffered']
    #allocation3 [shape = 's32[1]{0}', space=sflag, size = 0x4, scoped, tag = 'scoped memory for tpu_custom_call.1']
    #allocation4 [shape = 's32[1]{0}', space=sflag, size = 0x4, scoped, tag = 'scoped memory for tpu_custom_call.1']
    #allocation5 [shape = 'u8[16384]{0}', space=vmem, size = 0x4000, scoped, tag = 'input window, operand 1, single buffered']
    #allocation6 [shape = 's32[1]{0}', space=sflag, size = 0x4, scoped, tag = 'scoped memory for tpu_custom_call.1']
    #allocation7 [shape = 'u8[65536]{0}', space=vmem, size = 0x10000, scoped, tag = 'output window, operand 0, single buffered']
    %7 = vsyncpa [#allocation3], 0
    %8 = vsyncpa [#allocation6], 0
    %9 = vsyncpa [#allocation4], 0
    // Predicated region
    $region2: #{tpu_custom_call.1} parent=1 // pred_check
      _
    $region3: #{tpu_custom_call.1} parent=1 // pred_check_branch
      %11 = sbr.rel (0) target = $region5
    $region4: #{tpu_custom_call.1} parent=1 // pred_region
      %s13 = ssub.s32 128, 128
      %14 = vsyncadd [#allocation3], %s13
      %s16 = sshll.u32 [#allocation2], 4
      %s17 = int_to_ptr.vmem [resolvable:$true] %s16
      %19 = dma.hbm_to_vmem [thread:$0]  %s0, 128, %s17, [#allocation3]
    $region5: #{tpu_custom_call.1} parent=1 // pred_fallthru
      _
    // Predicated region
    $region6: #{tpu_custom_call.1} parent=1 // pred_check
      _
    $region7: #{tpu_custom_call.1} parent=1 // pred_check_branch
      %21 = sbr.rel (0) target = $region9
    $region8: #{tpu_custom_call.1} parent=1 // pred_region
      %s23 = ssub.s32 512, 512
      %24 = vsyncadd [#allocation6], %s23
      %s26 = sshll.u32 [#allocation5], 4
      %s27 = int_to_ptr.vmem [resolvable:$true] %s26
      %29 = dma.hbm_to_vmem [thread:$0]  %s1, 512, %s27, [#allocation6]
    $region9: #{tpu_custom_call.1} parent=1 // pred_fallthru
      _
    // Predicated region
    $region10: #{tpu_custom_call.1} parent=1 // pred_check
      _
    $region11: #{tpu_custom_call.1} parent=1 // pred_check_branch
      %31 = sbr.rel (0) target = $region13
    $region12: #{tpu_custom_call.1} parent=1 // pred_region
      %32 = dma.done [#allocation3], 128
    $region13: #{tpu_custom_call.1} parent=1 // pred_fallthru
      _
    // Predicated region
    $region14: #{tpu_custom_call.1} parent=1 // pred_check
      _
    $region15: #{tpu_custom_call.1} parent=1 // pred_check_branch
      %34 = sbr.rel (0) target = $region17
    $region16: #{tpu_custom_call.1} parent=1 // pred_region
      %35 = dma.done [#allocation6], 512
    $region17: #{tpu_custom_call.1} parent=1 // pred_fallthru
      _
    %v36 = vld [vmem:[#allocation5] sm:$0xff]
    %v37 = vld [vmem:[#allocation5 + $0x8] sm:$0xff]
    %v38 = vld [vmem:[#allocation5 + $0x10] sm:$0xff]
    %v39 = vld [vmem:[#allocation5 + $0x18] sm:$0xff]
    %v40 = vlaneseq
    %v41 = vshrl.u32 %v40, 7
    %v42 = vadd.s32 %v41, 8
    %v43 = vadd.s32 %v41, 16
    %v44 = vadd.s32 %v41, 24
    %v45 = vadd.s32 %v41, 32
    %v46 = vadd.s32 %v41, 40
    %v47 = vadd.s32 %v41, 48
    %v48 = vadd.s32 %v41, 56
    %v49 = vadd.s32 %v41, 64
    %v50 = vadd.s32 %v41, 72
    %v51 = vadd.s32 %v41, 80
    %v52 = vadd.s32 %v41, 88
    %v53 = vadd.s32 %v41, 96
    %v54 = vadd.s32 %v41, 104
    %v55 = vadd.s32 %v41, 112
    %v56 = vadd.s32 %v41, 120
    %v57 = vadd.s32 %v41, 128
    %v58 = vadd.s32 %v41, 136
    %v59 = vadd.s32 %v41, 144
    %v60 = vadd.s32 %v41, 152
    %v61 = vadd.s32 %v41, 160
    %v62 = vadd.s32 %v41, 168
    %v63 = vadd.s32 %v41, 176
    %v64 = vadd.s32 %v41, 184
    %v65 = vadd.s32 %v41, 192
    %v66 = vadd.s32 %v41, 200
    %v67 = vadd.s32 %v41, 208
    %v68 = vadd.s32 %v41, 216
    %v69 = vadd.s32 %v41, 224
    %v70 = vadd.s32 %v41, 232
    %v71 = vadd.s32 %v41, 240
    %v72 = vadd.s32 %v41, 248
    %v73 = vlaneseq
    %v74 = vshrl.u32 %v73, 7
    %v75 = vsub.s32 0, %v74
    %v76 = vrot.slane %v36, %v75
    %v77 = vlaneseq
    %v78 = vshrl.u32 %v77, 7
    %v79 = vsub.s32 1, %v78
    %v80 = vrot.slane %v36, %v79
    %v81 = vlaneseq
    %v82 = vshrl.u32 %v81, 7
    %v83 = vsub.s32 2, %v82
    %v84 = vrot.slane %v36, %v83
    %v85 = vlaneseq
    %v86 = vshrl.u32 %v85, 7
    %v87 = vsub.s32 3, %v86
    %v88 = vrot.slane %v36, %v87
    %v89 = vlaneseq
    %v90 = vshrl.u32 %v89, 7
    %v91 = vsub.s32 4, %v90
    %v92 = vrot.slane %v36, %v91
    %v93 = vlaneseq
    %v94 = vshrl.u32 %v93, 7
    %v95 = vsub.s32 5, %v94
    %v96 = vrot.slane %v36, %v95
    %v97 = vlaneseq
    %v98 = vshrl.u32 %v97, 7
    %v99 = vsub.s32 6, %v98
    %v100 = vrot.slane %v36, %v99
    %v101 = vlaneseq
    %v102 = vshrl.u32 %v101, 7
    %v103 = vsub.s32 7, %v102
    %v104 = vrot.slane %v36, %v103
    %v105 = vlaneseq
    %v106 = vshrl.u32 %v105, 7
    %v107 = vsub.s32 0, %v106
    %v108 = vrot.slane %v37, %v107
    %v109 = vlaneseq
    %v110 = vshrl.u32 %v109, 7
    %v111 = vsub.s32 1, %v110
    %v112 = vrot.slane %v37, %v111
    %v113 = vlaneseq
    %v114 = vshrl.u32 %v113, 7
    %v115 = vsub.s32 2, %v114
    %v116 = vrot.slane %v37, %v115
    %v117 = vlaneseq
    %v118 = vshrl.u32 %v117, 7
    %v119 = vsub.s32 3, %v118
    %v120 = vrot.slane %v37, %v119
    %v121 = vlaneseq
    %v122 = vshrl.u32 %v121, 7
    %v123 = vsub.s32 4, %v122
    %v124 = vrot.slane %v37, %v123
    %v125 = vlaneseq
    %v126 = vshrl.u32 %v125, 7
    %v127 = vsub.s32 5, %v126
    %v128 = vrot.slane %v37, %v127
    %v129 = vlaneseq
    %v130 = vshrl.u32 %v129, 7
    %v131 = vsub.s32 6, %v130
    %v132 = vrot.slane %v37, %v131
    %v133 = vlaneseq
    %v134 = vshrl.u32 %v133, 7
    %v135 = vsub.s32 7, %v134
    %v136 = vrot.slane %v37, %v135
    %v137 = vlaneseq
    %v138 = vshrl.u32 %v137, 7
    %v139 = vsub.s32 0, %v138
    %v140 = vrot.slane %v38, %v139
    %v141 = vlaneseq
    %v142 = vshrl.u32 %v141, 7
    %v143 = vsub.s32 1, %v142
    %v144 = vrot.slane %v38, %v143
    %v145 = vlaneseq
    %v146 = vshrl.u32 %v145, 7
    %v147 = vsub.s32 2, %v146
    %v148 = vrot.slane %v38, %v147
    %v149 = vlaneseq
    %v150 = vshrl.u32 %v149, 7
    %v151 = vsub.s32 3, %v150
    %v152 = vrot.slane %v38, %v151
    %v153 = vlaneseq
    %v154 = vshrl.u32 %v153, 7
    %v155 = vsub.s32 4, %v154
    %v156 = vrot.slane %v38, %v155
    %v157 = vlaneseq
    %v158 = vshrl.u32 %v157, 7
    %v159 = vsub.s32 5, %v158
    %v160 = vrot.slane %v38, %v159
    %v161 = vlaneseq
    %v162 = vshrl.u32 %v161, 7
    %v163 = vsub.s32 6, %v162
    %v164 = vrot.slane %v38, %v163
    %v165 = vlaneseq
    %v166 = vshrl.u32 %v165, 7
    %v167 = vsub.s32 7, %v166
    %v168 = vrot.slane %v38, %v167
    %v169 = vlaneseq
    %v170 = vshrl.u32 %v169, 7
    %v171 = vsub.s32 0, %v170
    %v172 = vrot.slane %v39, %v171
    %v173 = vlaneseq
    %v174 = vshrl.u32 %v173, 7
    %v175 = vsub.s32 1, %v174
    %v176 = vrot.slane %v39, %v175
    %v177 = vlaneseq
    %v178 = vshrl.u32 %v177, 7
    %v179 = vsub.s32 2, %v178
    %v180 = vrot.slane %v39, %v179
    %v181 = vlaneseq
    %v182 = vshrl.u32 %v181, 7
    %v183 = vsub.s32 3, %v182
    %v184 = vrot.slane %v39, %v183
    %v185 = vlaneseq
    %v186 = vshrl.u32 %v185, 7
    %v187 = vsub.s32 4, %v186
    %v188 = vrot.slane %v39, %v187
    %v189 = vlaneseq
    %v190 = vshrl.u32 %v189, 7
    %v191 = vsub.s32 5, %v190
    %v192 = vrot.slane %v39, %v191
    %v193 = vlaneseq
    %v194 = vshrl.u32 %v193, 7
    %v195 = vsub.s32 6, %v194
    %v196 = vrot.slane %v39, %v195
    %v197 = vlaneseq
    %v198 = vshrl.u32 %v197, 7
    %v199 = vsub.s32 7, %v198
    %v200 = vrot.slane %v39, %v199
    %vm201 = vcmp.eq.s32.totalorder %v41, %v76
    %vm202 = vcmp.eq.s32.totalorder %v41, %v80
    %vm203 = vcmp.eq.s32.totalorder %v41, %v84
    %vm204 = vcmp.eq.s32.totalorder %v41, %v88
    %vm205 = vcmp.eq.s32.totalorder %v41, %v92
    %vm206 = vcmp.eq.s32.totalorder %v41, %v96
    %vm207 = vcmp.eq.s32.totalorder %v41, %v100
    %vm208 = vcmp.eq.s32.totalorder %v41, %v104
    %vm209 = vcmp.eq.s32.totalorder %v41, %v108
    %vm210 = vcmp.eq.s32.totalorder %v41, %v112
    %vm211 = vcmp.eq.s32.totalorder %v41, %v116
    %vm212 = vcmp.eq.s32.totalorder %v41, %v120
    %vm213 = vcmp.eq.s32.totalorder %v41, %v124
    %vm214 = vcmp.eq.s32.totalorder %v41, %v128
    %vm215 = vcmp.eq.s32.totalorder %v41, %v132
    %vm216 = vcmp.eq.s32.totalorder %v41, %v136
    %vm217 = vcmp.eq.s32.totalorder %v41, %v140
    %vm218 = vcmp.eq.s32.totalorder %v41, %v144
    %vm219 = vcmp.eq.s32.totalorder %v41, %v148
    %vm220 = vcmp.eq.s32.totalorder %v41, %v152
    %vm221 = vcmp.eq.s32.totalorder %v41, %v156
    %vm222 = vcmp.eq.s32.totalorder %v41, %v160
    %vm223 = vcmp.eq.s32.totalorder %v41, %v164
    %vm224 = vcmp.eq.s32.totalorder %v41, %v168
    %vm225 = vcmp.eq.s32.totalorder %v41, %v172
    %vm226 = vcmp.eq.s32.totalorder %v41, %v176
    %vm227 = vcmp.eq.s32.totalorder %v41, %v180
    %vm228 = vcmp.eq.s32.totalorder %v41, %v184
    %vm229 = vcmp.eq.s32.totalorder %v41, %v188
    %vm230 = vcmp.eq.s32.totalorder %v41, %v192
    %vm231 = vcmp.eq.s32.totalorder %v41, %v196
    %vm232 = vcmp.eq.s32.totalorder %v41, %v200
    %vm233 = vcmp.eq.s32.totalorder %v42, %v76
    %vm234 = vcmp.eq.s32.totalorder %v42, %v80
    %vm235 = vcmp.eq.s32.totalorder %v42, %v84
    %vm236 = vcmp.eq.s32.totalorder %v42, %v88
    %vm237 = vcmp.eq.s32.totalorder %v42, %v92
    %vm238 = vcmp.eq.s32.totalorder %v42, %v96
    %vm239 = vcmp.eq.s32.totalorder %v42, %v100
    %vm240 = vcmp.eq.s32.totalorder %v42, %v104
    %vm241 = vcmp.eq.s32.totalorder %v42, %v108
    %vm242 = vcmp.eq.s32.totalorder %v42, %v112
    %vm243 = vcmp.eq.s32.totalorder %v42, %v116
    %vm244 = vcmp.eq.s32.totalorder %v42, %v120
    %vm245 = vcmp.eq.s32.totalorder %v42, %v124
    %vm246 = vcmp.eq.s32.totalorder %v42, %v128
    %vm247 = vcmp.eq.s32.totalorder %v42, %v132
    %vm248 = vcmp.eq.s32.totalorder %v42, %v136
    %vm249 = vcmp.eq.s32.totalorder %v42, %v140
    %vm250 = vcmp.eq.s32.totalorder %v42, %v144
    %vm251 = vcmp.eq.s32.totalorder %v42, %v148
    %vm252 = vcmp.eq.s32.totalorder %v42, %v152
    %vm253 = vcmp.eq.s32.totalorder %v42, %v156
    %vm254 = vcmp.eq.s32.totalorder %v42, %v160
    %vm255 = vcmp.eq.s32.totalorder %v42, %v164
    %vm256 = vcmp.eq.s32.totalorder %v42, %v168
    %vm257 = vcmp.eq.s32.totalorder %v42, %v172
    %vm258 = vcmp.eq.s32.totalorder %v42, %v176
    %vm259 = vcmp.eq.s32.totalorder %v42, %v180
    %vm260 = vcmp.eq.s32.totalorder %v42, %v184
    %vm261 = vcmp.eq.s32.totalorder %v42, %v188
    %vm262 = vcmp.eq.s32.totalorder %v42, %v192
    %vm263 = vcmp.eq.s32.totalorder %v42, %v196
    %vm264 = vcmp.eq.s32.totalorder %v42, %v200
    %vm265 = vcmp.eq.s32.totalorder %v43, %v76
    %vm266 = vcmp.eq.s32.totalorder %v43, %v80
    %vm267 = vcmp.eq.s32.totalorder %v43, %v84
    %vm268 = vcmp.eq.s32.totalorder %v43, %v88
    %vm269 = vcmp.eq.s32.totalorder %v43, %v92
    %vm270 = vcmp.eq.s32.totalorder %v43, %v96
    %vm271 = vcmp.eq.s32.totalorder %v43, %v100
    %vm272 = vcmp.eq.s32.totalorder %v43, %v104
    %vm273 = vcmp.eq.s32.totalorder %v43, %v108
    %vm274 = vcmp.eq.s32.totalorder %v43, %v112
    %vm275 = vcmp.eq.s32.totalorder %v43, %v116
    %vm276 = vcmp.eq.s32.totalorder %v43, %v120
    %vm277 = vcmp.eq.s32.totalorder %v43, %v124
    %vm278 = vcmp.eq.s32.totalorder %v43, %v128
    %vm279 = vcmp.eq.s32.totalorder %v43, %v132
    %vm280 = vcmp.eq.s32.totalorder %v43, %v136
    %vm281 = vcmp.eq.s32.totalorder %v43, %v140
    %vm282 = vcmp.eq.s32.totalorder %v43, %v144
    %vm283 = vcmp.eq.s32.totalorder %v43, %v148
    %vm284 = vcmp.eq.s32.totalorder %v43, %v152
    %vm285 = vcmp.eq.s32.totalorder %v43, %v156
    %vm286 = vcmp.eq.s32.totalorder %v43, %v160
    %vm287 = vcmp.eq.s32.totalorder %v43, %v164
    %vm288 = vcmp.eq.s32.totalorder %v43, %v168
    %vm289 = vcmp.eq.s32.totalorder %v43, %v172
    %vm290 = vcmp.eq.s32.totalorder %v43, %v176
    %vm291 = vcmp.eq.s32.totalorder %v43, %v180
    %vm292 = vcmp.eq.s32.totalorder %v43, %v184
    %vm293 = vcmp.eq.s32.totalorder %v43, %v188
    %vm294 = vcmp.eq.s32.totalorder %v43, %v192
    %vm295 = vcmp.eq.s32.totalorder %v43, %v196
    %vm296 = vcmp.eq.s32.totalorder %v43, %v200
    %vm297 = vcmp.eq.s32.totalorder %v44, %v76
    %vm298 = vcmp.eq.s32.totalorder %v44, %v80
    %vm299 = vcmp.eq.s32.totalorder %v44, %v84
    %vm300 = vcmp.eq.s32.totalorder %v44, %v88
    %vm301 = vcmp.eq.s32.totalorder %v44, %v92
    %vm302 = vcmp.eq.s32.totalorder %v44, %v96
    %vm303 = vcmp.eq.s32.totalorder %v44, %v100
    %vm304 = vcmp.eq.s32.totalorder %v44, %v104
    %vm305 = vcmp.eq.s32.totalorder %v44, %v108
    %vm306 = vcmp.eq.s32.totalorder %v44, %v112
    %vm307 = vcmp.eq.s32.totalorder %v44, %v116
    %vm308 = vcmp.eq.s32.totalorder %v44, %v120
    %vm309 = vcmp.eq.s32.totalorder %v44, %v124
    %vm310 = vcmp.eq.s32.totalorder %v44, %v128
    %vm311 = vcmp.eq.s32.totalorder %v44, %v132
    %vm312 = vcmp.eq.s32.totalorder %v44, %v136
    %vm313 = vcmp.eq.s32.totalorder %v44, %v140
    %vm314 = vcmp.eq.s32.totalorder %v44, %v144
    %vm315 = vcmp.eq.s32.totalorder %v44, %v148
    %vm316 = vcmp.eq.s32.totalorder %v44, %v152
    %vm317 = vcmp.eq.s32.totalorder %v44, %v156
    %vm318 = vcmp.eq.s32.totalorder %v44, %v160
    %vm319 = vcmp.eq.s32.totalorder %v44, %v164
    %vm320 = vcmp.eq.s32.totalorder %v44, %v168
    %vm321 = vcmp.eq.s32.totalorder %v44, %v172
    %vm322 = vcmp.eq.s32.totalorder %v44, %v176
    %vm323 = vcmp.eq.s32.totalorder %v44, %v180
    %vm324 = vcmp.eq.s32.totalorder %v44, %v184
    %vm325 = vcmp.eq.s32.totalorder %v44, %v188
    %vm326 = vcmp.eq.s32.totalorder %v44, %v192
    %vm327 = vcmp.eq.s32.totalorder %v44, %v196
    %vm328 = vcmp.eq.s32.totalorder %v44, %v200
    %vm329 = vcmp.eq.s32.totalorder %v45, %v76
    %vm330 = vcmp.eq.s32.totalorder %v45, %v80
    %vm331 = vcmp.eq.s32.totalorder %v45, %v84
    %vm332 = vcmp.eq.s32.totalorder %v45, %v88
    %vm333 = vcmp.eq.s32.totalorder %v45, %v92
    %vm334 = vcmp.eq.s32.totalorder %v45, %v96
    %vm335 = vcmp.eq.s32.totalorder %v45, %v100
    %vm336 = vcmp.eq.s32.totalorder %v45, %v104
    %vm337 = vcmp.eq.s32.totalorder %v45, %v108
    %vm338 = vcmp.eq.s32.totalorder %v45, %v112
    %vm339 = vcmp.eq.s32.totalorder %v45, %v116
    %vm340 = vcmp.eq.s32.totalorder %v45, %v120
    %vm341 = vcmp.eq.s32.totalorder %v45, %v124
    %vm342 = vcmp.eq.s32.totalorder %v45, %v128
    %vm343 = vcmp.eq.s32.totalorder %v45, %v132
    %vm344 = vcmp.eq.s32.totalorder %v45, %v136
    %vm345 = vcmp.eq.s32.totalorder %v45, %v140
    %vm346 = vcmp.eq.s32.totalorder %v45, %v144
    %vm347 = vcmp.eq.s32.totalorder %v45, %v148
    %vm348 = vcmp.eq.s32.totalorder %v45, %v152
    %vm349 = vcmp.eq.s32.totalorder %v45, %v156
    %vm350 = vcmp.eq.s32.totalorder %v45, %v160
    %vm351 = vcmp.eq.s32.totalorder %v45, %v164
    %vm352 = vcmp.eq.s32.totalorder %v45, %v168
    %vm353 = vcmp.eq.s32.totalorder %v45, %v172
    %vm354 = vcmp.eq.s32.totalorder %v45, %v176
    %vm355 = vcmp.eq.s32.totalorder %v45, %v180
    %vm356 = vcmp.eq.s32.totalorder %v45, %v184
    %vm357 = vcmp.eq.s32.totalorder %v45, %v188
    %vm358 = vcmp.eq.s32.totalorder %v45, %v192
    %vm359 = vcmp.eq.s32.totalorder %v45, %v196
    %vm360 = vcmp.eq.s32.totalorder %v45, %v200
    %vm361 = vcmp.eq.s32.totalorder %v46, %v76
    %vm362 = vcmp.eq.s32.totalorder %v46, %v80
    %vm363 = vcmp.eq.s32.totalorder %v46, %v84
    %vm364 = vcmp.eq.s32.totalorder %v46, %v88
    %vm365 = vcmp.eq.s32.totalorder %v46, %v92
    %vm366 = vcmp.eq.s32.totalorder %v46, %v96
    %vm367 = vcmp.eq.s32.totalorder %v46, %v100
    %vm368 = vcmp.eq.s32.totalorder %v46, %v104
    %vm369 = vcmp.eq.s32.totalorder %v46, %v108
    %vm370 = vcmp.eq.s32.totalorder %v46, %v112
    %vm371 = vcmp.eq.s32.totalorder %v46, %v116
    %vm372 = vcmp.eq.s32.totalorder %v46, %v120
    %vm373 = vcmp.eq.s32.totalorder %v46, %v124
    %vm374 = vcmp.eq.s32.totalorder %v46, %v128
    %vm375 = vcmp.eq.s32.totalorder %v46, %v132
    %vm376 = vcmp.eq.s32.totalorder %v46, %v136
    %vm377 = vcmp.eq.s32.totalorder %v46, %v140
    %vm378 = vcmp.eq.s32.totalorder %v46, %v144
    %vm379 = vcmp.eq.s32.totalorder %v46, %v148
    %vm380 = vcmp.eq.s32.totalorder %v46, %v152
    %vm381 = vcmp.eq.s32.totalorder %v46, %v156
    %vm382 = vcmp.eq.s32.totalorder %v46, %v160
    %vm383 = vcmp.eq.s32.totalorder %v46, %v164
    %vm384 = vcmp.eq.s32.totalorder %v46, %v168
    %vm385 = vcmp.eq.s32.totalorder %v46, %v172
    %vm386 = vcmp.eq.s32.totalorder %v46, %v176
    %vm387 = vcmp.eq.s32.totalorder %v46, %v180
    %vm388 = vcmp.eq.s32.totalorder %v46, %v184
    %vm389 = vcmp.eq.s32.totalorder %v46, %v188
    %vm390 = vcmp.eq.s32.totalorder %v46, %v192
    %vm391 = vcmp.eq.s32.totalorder %v46, %v196
    %vm392 = vcmp.eq.s32.totalorder %v46, %v200
    %vm393 = vcmp.eq.s32.totalorder %v47, %v76
    %vm394 = vcmp.eq.s32.totalorder %v47, %v80
    %vm395 = vcmp.eq.s32.totalorder %v47, %v84
    %vm396 = vcmp.eq.s32.totalorder %v47, %v88
    %vm397 = vcmp.eq.s32.totalorder %v47, %v92
    %vm398 = vcmp.eq.s32.totalorder %v47, %v96
    %vm399 = vcmp.eq.s32.totalorder %v47, %v100
    %vm400 = vcmp.eq.s32.totalorder %v47, %v104
    %vm401 = vcmp.eq.s32.totalorder %v47, %v108
    %vm402 = vcmp.eq.s32.totalorder %v47, %v112
    %vm403 = vcmp.eq.s32.totalorder %v47, %v116
    %vm404 = vcmp.eq.s32.totalorder %v47, %v120
    %vm405 = vcmp.eq.s32.totalorder %v47, %v124
    %vm406 = vcmp.eq.s32.totalorder %v47, %v128
    %vm407 = vcmp.eq.s32.totalorder %v47, %v132
    %vm408 = vcmp.eq.s32.totalorder %v47, %v136
    %vm409 = vcmp.eq.s32.totalorder %v47, %v140
    %vm410 = vcmp.eq.s32.totalorder %v47, %v144
    %vm411 = vcmp.eq.s32.totalorder %v47, %v148
    %vm412 = vcmp.eq.s32.totalorder %v47, %v152
    %vm413 = vcmp.eq.s32.totalorder %v47, %v156
    %vm414 = vcmp.eq.s32.totalorder %v47, %v160
    %vm415 = vcmp.eq.s32.totalorder %v47, %v164
    %vm416 = vcmp.eq.s32.totalorder %v47, %v168
    %vm417 = vcmp.eq.s32.totalorder %v47, %v172
    %vm418 = vcmp.eq.s32.totalorder %v47, %v176
    %vm419 = vcmp.eq.s32.totalorder %v47, %v180
    %vm420 = vcmp.eq.s32.totalorder %v47, %v184
    %vm421 = vcmp.eq.s32.totalorder %v47, %v188
    %vm422 = vcmp.eq.s32.totalorder %v47, %v192
    %vm423 = vcmp.eq.s32.totalorder %v47, %v196
    %vm424 = vcmp.eq.s32.totalorder %v47, %v200
    %vm425 = vcmp.eq.s32.totalorder %v48, %v76
    %vm426 = vcmp.eq.s32.totalorder %v48, %v80
    %vm427 = vcmp.eq.s32.totalorder %v48, %v84
    %vm428 = vcmp.eq.s32.totalorder %v48, %v88
    %vm429 = vcmp.eq.s32.totalorder %v48, %v92
    %vm430 = vcmp.eq.s32.totalorder %v48, %v96
    %vm431 = vcmp.eq.s32.totalorder %v48, %v100
    %vm432 = vcmp.eq.s32.totalorder %v48, %v104
    %vm433 = vcmp.eq.s32.totalorder %v48, %v108
    %vm434 = vcmp.eq.s32.totalorder %v48, %v112
    %vm435 = vcmp.eq.s32.totalorder %v48, %v116
    %vm436 = vcmp.eq.s32.totalorder %v48, %v120
    %vm437 = vcmp.eq.s32.totalorder %v48, %v124
    %vm438 = vcmp.eq.s32.totalorder %v48, %v128
    %vm439 = vcmp.eq.s32.totalorder %v48, %v132
    %vm440 = vcmp.eq.s32.totalorder %v48, %v136
    %vm441 = vcmp.eq.s32.totalorder %v48, %v140
    %vm442 = vcmp.eq.s32.totalorder %v48, %v144
    %vm443 = vcmp.eq.s32.totalorder %v48, %v148
    %vm444 = vcmp.eq.s32.totalorder %v48, %v152
    %vm445 = vcmp.eq.s32.totalorder %v48, %v156
    %vm446 = vcmp.eq.s32.totalorder %v48, %v160
    %vm447 = vcmp.eq.s32.totalorder %v48, %v164
    %vm448 = vcmp.eq.s32.totalorder %v48, %v168
    %vm449 = vcmp.eq.s32.totalorder %v48, %v172
    %vm450 = vcmp.eq.s32.totalorder %v48, %v176
    %vm451 = vcmp.eq.s32.totalorder %v48, %v180
    %vm452 = vcmp.eq.s32.totalorder %v48, %v184
    %vm453 = vcmp.eq.s32.totalorder %v48, %v188
    %vm454 = vcmp.eq.s32.totalorder %v48, %v192
    %vm455 = vcmp.eq.s32.totalorder %v48, %v196
    %vm456 = vcmp.eq.s32.totalorder %v48, %v200
    %vm457 = vcmp.eq.s32.totalorder %v49, %v76
    %vm458 = vcmp.eq.s32.totalorder %v49, %v80
    %vm459 = vcmp.eq.s32.totalorder %v49, %v84
    %vm460 = vcmp.eq.s32.totalorder %v49, %v88
    %vm461 = vcmp.eq.s32.totalorder %v49, %v92
    %vm462 = vcmp.eq.s32.totalorder %v49, %v96
    %vm463 = vcmp.eq.s32.totalorder %v49, %v100
    %vm464 = vcmp.eq.s32.totalorder %v49, %v104
    %vm465 = vcmp.eq.s32.totalorder %v49, %v108
    %vm466 = vcmp.eq.s32.totalorder %v49, %v112
    %vm467 = vcmp.eq.s32.totalorder %v49, %v116
    %vm468 = vcmp.eq.s32.totalorder %v49, %v120
    %vm469 = vcmp.eq.s32.totalorder %v49, %v124
    %vm470 = vcmp.eq.s32.totalorder %v49, %v128
    %vm471 = vcmp.eq.s32.totalorder %v49, %v132
    %vm472 = vcmp.eq.s32.totalorder %v49, %v136
    %vm473 = vcmp.eq.s32.totalorder %v49, %v140
    %vm474 = vcmp.eq.s32.totalorder %v49, %v144
    %vm475 = vcmp.eq.s32.totalorder %v49, %v148
    %vm476 = vcmp.eq.s32.totalorder %v49, %v152
    %vm477 = vcmp.eq.s32.totalorder %v49, %v156
    %vm478 = vcmp.eq.s32.totalorder %v49, %v160
    %vm479 = vcmp.eq.s32.totalorder %v49, %v164
    %vm480 = vcmp.eq.s32.totalorder %v49, %v168
    %vm481 = vcmp.eq.s32.totalorder %v49, %v172
    %vm482 = vcmp.eq.s32.totalorder %v49, %v176
    %vm483 = vcmp.eq.s32.totalorder %v49, %v180
    %vm484 = vcmp.eq.s32.totalorder %v49, %v184
    %vm485 = vcmp.eq.s32.totalorder %v49, %v188
    %vm486 = vcmp.eq.s32.totalorder %v49, %v192
    %vm487 = vcmp.eq.s32.totalorder %v49, %v196
    %vm488 = vcmp.eq.s32.totalorder %v49, %v200
    %vm489 = vcmp.eq.s32.totalorder %v50, %v76
    %vm490 = vcmp.eq.s32.totalorder %v50, %v80
    %vm491 = vcmp.eq.s32.totalorder %v50, %v84
    %vm492 = vcmp.eq.s32.totalorder %v50, %v88
    %vm493 = vcmp.eq.s32.totalorder %v50, %v92
    %vm494 = vcmp.eq.s32.totalorder %v50, %v96
    %vm495 = vcmp.eq.s32.totalorder %v50, %v100
    %vm496 = vcmp.eq.s32.totalorder %v50, %v104
    %vm497 = vcmp.eq.s32.totalorder %v50, %v108
    %vm498 = vcmp.eq.s32.totalorder %v50, %v112
    %vm499 = vcmp.eq.s32.totalorder %v50, %v116
    %vm500 = vcmp.eq.s32.totalorder %v50, %v120
    %vm501 = vcmp.eq.s32.totalorder %v50, %v124
    %vm502 = vcmp.eq.s32.totalorder %v50, %v128
    %vm503 = vcmp.eq.s32.totalorder %v50, %v132
    %vm504 = vcmp.eq.s32.totalorder %v50, %v136
    %vm505 = vcmp.eq.s32.totalorder %v50, %v140
    %vm506 = vcmp.eq.s32.totalorder %v50, %v144
    %vm507 = vcmp.eq.s32.totalorder %v50, %v148
    %vm508 = vcmp.eq.s32.totalorder %v50, %v152
    %vm509 = vcmp.eq.s32.totalorder %v50, %v156
    %vm510 = vcmp.eq.s32.totalorder %v50, %v160
    %vm511 = vcmp.eq.s32.totalorder %v50, %v164
    %vm512 = vcmp.eq.s32.totalorder %v50, %v168
    %vm513 = vcmp.eq.s32.totalorder %v50, %v172
    %vm514 = vcmp.eq.s32.totalorder %v50, %v176
    %vm515 = vcmp.eq.s32.totalorder %v50, %v180
    %vm516 = vcmp.eq.s32.totalorder %v50, %v184
    %vm517 = vcmp.eq.s32.totalorder %v50, %v188
    %vm518 = vcmp.eq.s32.totalorder %v50, %v192
    %vm519 = vcmp.eq.s32.totalorder %v50, %v196
    %vm520 = vcmp.eq.s32.totalorder %v50, %v200
    %vm521 = vcmp.eq.s32.totalorder %v51, %v76
    %vm522 = vcmp.eq.s32.totalorder %v51, %v80
    %vm523 = vcmp.eq.s32.totalorder %v51, %v84
    %vm524 = vcmp.eq.s32.totalorder %v51, %v88
    %vm525 = vcmp.eq.s32.totalorder %v51, %v92
    %vm526 = vcmp.eq.s32.totalorder %v51, %v96
    %vm527 = vcmp.eq.s32.totalorder %v51, %v100
    %vm528 = vcmp.eq.s32.totalorder %v51, %v104
    %vm529 = vcmp.eq.s32.totalorder %v51, %v108
    %vm530 = vcmp.eq.s32.totalorder %v51, %v112
    %vm531 = vcmp.eq.s32.totalorder %v51, %v116
    %vm532 = vcmp.eq.s32.totalorder %v51, %v120
    %vm533 = vcmp.eq.s32.totalorder %v51, %v124
    %vm534 = vcmp.eq.s32.totalorder %v51, %v128
    %vm535 = vcmp.eq.s32.totalorder %v51, %v132
    %vm536 = vcmp.eq.s32.totalorder %v51, %v136
    %vm537 = vcmp.eq.s32.totalorder %v51, %v140
    %vm538 = vcmp.eq.s32.totalorder %v51, %v144
    %vm539 = vcmp.eq.s32.totalorder %v51, %v148
    %vm540 = vcmp.eq.s32.totalorder %v51, %v152
    %vm541 = vcmp.eq.s32.totalorder %v51, %v156
    %vm542 = vcmp.eq.s32.totalorder %v51, %v160
    %vm543 = vcmp.eq.s32.totalorder %v51, %v164
    %vm544 = vcmp.eq.s32.totalorder %v51, %v168
    %vm545 = vcmp.eq.s32.totalorder %v51, %v172
    %vm546 = vcmp.eq.s32.totalorder %v51, %v176
    %vm547 = vcmp.eq.s32.totalorder %v51, %v180
    %vm548 = vcmp.eq.s32.totalorder %v51, %v184
    %vm549 = vcmp.eq.s32.totalorder %v51, %v188
    %vm550 = vcmp.eq.s32.totalorder %v51, %v192
    %vm551 = vcmp.eq.s32.totalorder %v51, %v196
    %vm552 = vcmp.eq.s32.totalorder %v51, %v200
    %vm553 = vcmp.eq.s32.totalorder %v52, %v76
    %vm554 = vcmp.eq.s32.totalorder %v52, %v80
    %vm555 = vcmp.eq.s32.totalorder %v52, %v84
    %vm556 = vcmp.eq.s32.totalorder %v52, %v88
    %vm557 = vcmp.eq.s32.totalorder %v52, %v92
    %vm558 = vcmp.eq.s32.totalorder %v52, %v96
    %vm559 = vcmp.eq.s32.totalorder %v52, %v100
    %vm560 = vcmp.eq.s32.totalorder %v52, %v104
    %vm561 = vcmp.eq.s32.totalorder %v52, %v108
    %vm562 = vcmp.eq.s32.totalorder %v52, %v112
    %vm563 = vcmp.eq.s32.totalorder %v52, %v116
    %vm564 = vcmp.eq.s32.totalorder %v52, %v120
    %vm565 = vcmp.eq.s32.totalorder %v52, %v124
    %vm566 = vcmp.eq.s32.totalorder %v52, %v128
    %vm567 = vcmp.eq.s32.totalorder %v52, %v132
    %vm568 = vcmp.eq.s32.totalorder %v52, %v136
    %vm569 = vcmp.eq.s32.totalorder %v52, %v140
    %vm570 = vcmp.eq.s32.totalorder %v52, %v144
    %vm571 = vcmp.eq.s32.totalorder %v52, %v148
    %vm572 = vcmp.eq.s32.totalorder %v52, %v152
    %vm573 = vcmp.eq.s32.totalorder %v52, %v156
    %vm574 = vcmp.eq.s32.totalorder %v52, %v160
    %vm575 = vcmp.eq.s32.totalorder %v52, %v164
    %vm576 = vcmp.eq.s32.totalorder %v52, %v168
    %vm577 = vcmp.eq.s32.totalorder %v52, %v172
    %vm578 = vcmp.eq.s32.totalorder %v52, %v176
    %vm579 = vcmp.eq.s32.totalorder %v52, %v180
    %vm580 = vcmp.eq.s32.totalorder %v52, %v184
    %vm581 = vcmp.eq.s32.totalorder %v52, %v188
    %vm582 = vcmp.eq.s32.totalorder %v52, %v192
    %vm583 = vcmp.eq.s32.totalorder %v52, %v196
    %vm584 = vcmp.eq.s32.totalorder %v52, %v200
    %vm585 = vcmp.eq.s32.totalorder %v53, %v76
    %vm586 = vcmp.eq.s32.totalorder %v53, %v80
    %vm587 = vcmp.eq.s32.totalorder %v53, %v84
    %vm588 = vcmp.eq.s32.totalorder %v53, %v88
    %vm589 = vcmp.eq.s32.totalorder %v53, %v92
    %vm590 = vcmp.eq.s32.totalorder %v53, %v96
    %vm591 = vcmp.eq.s32.totalorder %v53, %v100
    %vm592 = vcmp.eq.s32.totalorder %v53, %v104
    %vm593 = vcmp.eq.s32.totalorder %v53, %v108
    %vm594 = vcmp.eq.s32.totalorder %v53, %v112
    %vm595 = vcmp.eq.s32.totalorder %v53, %v116
    %vm596 = vcmp.eq.s32.totalorder %v53, %v120
    %vm597 = vcmp.eq.s32.totalorder %v53, %v124
    %vm598 = vcmp.eq.s32.totalorder %v53, %v128
    %vm599 = vcmp.eq.s32.totalorder %v53, %v132
    %vm600 = vcmp.eq.s32.totalorder %v53, %v136
    %vm601 = vcmp.eq.s32.totalorder %v53, %v140
    %vm602 = vcmp.eq.s32.totalorder %v53, %v144
    %vm603 = vcmp.eq.s32.totalorder %v53, %v148
    %vm604 = vcmp.eq.s32.totalorder %v53, %v152
    %vm605 = vcmp.eq.s32.totalorder %v53, %v156
    %vm606 = vcmp.eq.s32.totalorder %v53, %v160
    %vm607 = vcmp.eq.s32.totalorder %v53, %v164
    %vm608 = vcmp.eq.s32.totalorder %v53, %v168
    %vm609 = vcmp.eq.s32.totalorder %v53, %v172
    %vm610 = vcmp.eq.s32.totalorder %v53, %v176
    %vm611 = vcmp.eq.s32.totalorder %v53, %v180
    %vm612 = vcmp.eq.s32.totalorder %v53, %v184
    %vm613 = vcmp.eq.s32.totalorder %v53, %v188
    %vm614 = vcmp.eq.s32.totalorder %v53, %v192
    %vm615 = vcmp.eq.s32.totalorder %v53, %v196
    %vm616 = vcmp.eq.s32.totalorder %v53, %v200
    %vm617 = vcmp.eq.s32.totalorder %v54, %v76
    %vm618 = vcmp.eq.s32.totalorder %v54, %v80
    %vm619 = vcmp.eq.s32.totalorder %v54, %v84
    %vm620 = vcmp.eq.s32.totalorder %v54, %v88
    %vm621 = vcmp.eq.s32.totalorder %v54, %v92
    %vm622 = vcmp.eq.s32.totalorder %v54, %v96
    %vm623 = vcmp.eq.s32.totalorder %v54, %v100
    %vm624 = vcmp.eq.s32.totalorder %v54, %v104
    %vm625 = vcmp.eq.s32.totalorder %v54, %v108
    %vm626 = vcmp.eq.s32.totalorder %v54, %v112
    %vm627 = vcmp.eq.s32.totalorder %v54, %v116
    %vm628 = vcmp.eq.s32.totalorder %v54, %v120
    %vm629 = vcmp.eq.s32.totalorder %v54, %v124
    %vm630 = vcmp.eq.s32.totalorder %v54, %v128
    %vm631 = vcmp.eq.s32.totalorder %v54, %v132
    %vm632 = vcmp.eq.s32.totalorder %v54, %v136
    %vm633 = vcmp.eq.s32.totalorder %v54, %v140
    %vm634 = vcmp.eq.s32.totalorder %v54, %v144
    %vm635 = vcmp.eq.s32.totalorder %v54, %v148
    %vm636 = vcmp.eq.s32.totalorder %v54, %v152
    %vm637 = vcmp.eq.s32.totalorder %v54, %v156
    %vm638 = vcmp.eq.s32.totalorder %v54, %v160
    %vm639 = vcmp.eq.s32.totalorder %v54, %v164
    %vm640 = vcmp.eq.s32.totalorder %v54, %v168
    %vm641 = vcmp.eq.s32.totalorder %v54, %v172
    %vm642 = vcmp.eq.s32.totalorder %v54, %v176
    %vm643 = vcmp.eq.s32.totalorder %v54, %v180
    %vm644 = vcmp.eq.s32.totalorder %v54, %v184
    %vm645 = vcmp.eq.s32.totalorder %v54, %v188
    %vm646 = vcmp.eq.s32.totalorder %v54, %v192
    %vm647 = vcmp.eq.s32.totalorder %v54, %v196
    %vm648 = vcmp.eq.s32.totalorder %v54, %v200
    %vm649 = vcmp.eq.s32.totalorder %v55, %v76
    %vm650 = vcmp.eq.s32.totalorder %v55, %v80
    %vm651 = vcmp.eq.s32.totalorder %v55, %v84
    %vm652 = vcmp.eq.s32.totalorder %v55, %v88
    %vm653 = vcmp.eq.s32.totalorder %v55, %v92
    %vm654 = vcmp.eq.s32.totalorder %v55, %v96
    %vm655 = vcmp.eq.s32.totalorder %v55, %v100
    %vm656 = vcmp.eq.s32.totalorder %v55, %v104
    %vm657 = vcmp.eq.s32.totalorder %v55, %v108
    %vm658 = vcmp.eq.s32.totalorder %v55, %v112
    %vm659 = vcmp.eq.s32.totalorder %v55, %v116
    %vm660 = vcmp.eq.s32.totalorder %v55, %v120
    %vm661 = vcmp.eq.s32.totalorder %v55, %v124
    %vm662 = vcmp.eq.s32.totalorder %v55, %v128
    %vm663 = vcmp.eq.s32.totalorder %v55, %v132
    %vm664 = vcmp.eq.s32.totalorder %v55, %v136
    %vm665 = vcmp.eq.s32.totalorder %v55, %v140
    %vm666 = vcmp.eq.s32.totalorder %v55, %v144
    %vm667 = vcmp.eq.s32.totalorder %v55, %v148
    %vm668 = vcmp.eq.s32.totalorder %v55, %v152
    %vm669 = vcmp.eq.s32.totalorder %v55, %v156
    %vm670 = vcmp.eq.s32.totalorder %v55, %v160
    %vm671 = vcmp.eq.s32.totalorder %v55, %v164
    %vm672 = vcmp.eq.s32.totalorder %v55, %v168
    %vm673 = vcmp.eq.s32.totalorder %v55, %v172
    %vm674 = vcmp.eq.s32.totalorder %v55, %v176
    %vm675 = vcmp.eq.s32.totalorder %v55, %v180
    %vm676 = vcmp.eq.s32.totalorder %v55, %v184
    %vm677 = vcmp.eq.s32.totalorder %v55, %v188
    %vm678 = vcmp.eq.s32.totalorder %v55, %v192
    %vm679 = vcmp.eq.s32.totalorder %v55, %v196
    %vm680 = vcmp.eq.s32.totalorder %v55, %v200
    %vm681 = vcmp.eq.s32.totalorder %v56, %v76
    %vm682 = vcmp.eq.s32.totalorder %v56, %v80
    %vm683 = vcmp.eq.s32.totalorder %v56, %v84
    %vm684 = vcmp.eq.s32.totalorder %v56, %v88
    %vm685 = vcmp.eq.s32.totalorder %v56, %v92
    %vm686 = vcmp.eq.s32.totalorder %v56, %v96
    %vm687 = vcmp.eq.s32.totalorder %v56, %v100
    %vm688 = vcmp.eq.s32.totalorder %v56, %v104
    %vm689 = vcmp.eq.s32.totalorder %v56, %v108
    %vm690 = vcmp.eq.s32.totalorder %v56, %v112
    %vm691 = vcmp.eq.s32.totalorder %v56, %v116
    %vm692 = vcmp.eq.s32.totalorder %v56, %v120
    %vm693 = vcmp.eq.s32.totalorder %v56, %v124
    %vm694 = vcmp.eq.s32.totalorder %v56, %v128
    %vm695 = vcmp.eq.s32.totalorder %v56, %v132
    %vm696 = vcmp.eq.s32.totalorder %v56, %v136
    %vm697 = vcmp.eq.s32.totalorder %v56, %v140
    %vm698 = vcmp.eq.s32.totalorder %v56, %v144
    %vm699 = vcmp.eq.s32.totalorder %v56, %v148
    %vm700 = vcmp.eq.s32.totalorder %v56, %v152
    %vm701 = vcmp.eq.s32.totalorder %v56, %v156
    %vm702 = vcmp.eq.s32.totalorder %v56, %v160
    %vm703 = vcmp.eq.s32.totalorder %v56, %v164
    %vm704 = vcmp.eq.s32.totalorder %v56, %v168
    %vm705 = vcmp.eq.s32.totalorder %v56, %v172
    %vm706 = vcmp.eq.s32.totalorder %v56, %v176
    %vm707 = vcmp.eq.s32.totalorder %v56, %v180
    %vm708 = vcmp.eq.s32.totalorder %v56, %v184
    %vm709 = vcmp.eq.s32.totalorder %v56, %v188
    %vm710 = vcmp.eq.s32.totalorder %v56, %v192
    %vm711 = vcmp.eq.s32.totalorder %v56, %v196
    %vm712 = vcmp.eq.s32.totalorder %v56, %v200
    %vm713 = vcmp.eq.s32.totalorder %v57, %v76
    %vm714 = vcmp.eq.s32.totalorder %v57, %v80
    %vm715 = vcmp.eq.s32.totalorder %v57, %v84
    %vm716 = vcmp.eq.s32.totalorder %v57, %v88
    %vm717 = vcmp.eq.s32.totalorder %v57, %v92
    %vm718 = vcmp.eq.s32.totalorder %v57, %v96
    %vm719 = vcmp.eq.s32.totalorder %v57, %v100
    %vm720 = vcmp.eq.s32.totalorder %v57, %v104
    %vm721 = vcmp.eq.s32.totalorder %v57, %v108
    %vm722 = vcmp.eq.s32.totalorder %v57, %v112
    %vm723 = vcmp.eq.s32.totalorder %v57, %v116
    %vm724 = vcmp.eq.s32.totalorder %v57, %v120
    %vm725 = vcmp.eq.s32.totalorder %v57, %v124
    %vm726 = vcmp.eq.s32.totalorder %v57, %v128
    %vm727 = vcmp.eq.s32.totalorder %v57, %v132
    %vm728 = vcmp.eq.s32.totalorder %v57, %v136
    %vm729 = vcmp.eq.s32.totalorder %v57, %v140
    %vm730 = vcmp.eq.s32.totalorder %v57, %v144
    %vm731 = vcmp.eq.s32.totalorder %v57, %v148
    %vm732 = vcmp.eq.s32.totalorder %v57, %v152
    %vm733 = vcmp.eq.s32.totalorder %v57, %v156
    %vm734 = vcmp.eq.s32.totalorder %v57, %v160
    %vm735 = vcmp.eq.s32.totalorder %v57, %v164
    %vm736 = vcmp.eq.s32.totalorder %v57, %v168
    %vm737 = vcmp.eq.s32.totalorder %v57, %v172
    %vm738 = vcmp.eq.s32.totalorder %v57, %v176
    %vm739 = vcmp.eq.s32.totalorder %v57, %v180
    %vm740 = vcmp.eq.s32.totalorder %v57, %v184
    %vm741 = vcmp.eq.s32.totalorder %v57, %v188
    %vm742 = vcmp.eq.s32.totalorder %v57, %v192
    %vm743 = vcmp.eq.s32.totalorder %v57, %v196
    %vm744 = vcmp.eq.s32.totalorder %v57, %v200
    %vm745 = vcmp.eq.s32.totalorder %v58, %v76
    %vm746 = vcmp.eq.s32.totalorder %v58, %v80
    %vm747 = vcmp.eq.s32.totalorder %v58, %v84
    %vm748 = vcmp.eq.s32.totalorder %v58, %v88
    %vm749 = vcmp.eq.s32.totalorder %v58, %v92
    %vm750 = vcmp.eq.s32.totalorder %v58, %v96
    %vm751 = vcmp.eq.s32.totalorder %v58, %v100
    %vm752 = vcmp.eq.s32.totalorder %v58, %v104
    %vm753 = vcmp.eq.s32.totalorder %v58, %v108
    %vm754 = vcmp.eq.s32.totalorder %v58, %v112
    %vm755 = vcmp.eq.s32.totalorder %v58, %v116
    %vm756 = vcmp.eq.s32.totalorder %v58, %v120
    %vm757 = vcmp.eq.s32.totalorder %v58, %v124
    %vm758 = vcmp.eq.s32.totalorder %v58, %v128
    %vm759 = vcmp.eq.s32.totalorder %v58, %v132
    %vm760 = vcmp.eq.s32.totalorder %v58, %v136
    %vm761 = vcmp.eq.s32.totalorder %v58, %v140
    %vm762 = vcmp.eq.s32.totalorder %v58, %v144
    %vm763 = vcmp.eq.s32.totalorder %v58, %v148
    %vm764 = vcmp.eq.s32.totalorder %v58, %v152
    %vm765 = vcmp.eq.s32.totalorder %v58, %v156
    %vm766 = vcmp.eq.s32.totalorder %v58, %v160
    %vm767 = vcmp.eq.s32.totalorder %v58, %v164
    %vm768 = vcmp.eq.s32.totalorder %v58, %v168
    %vm769 = vcmp.eq.s32.totalorder %v58, %v172
    %vm770 = vcmp.eq.s32.totalorder %v58, %v176
    %vm771 = vcmp.eq.s32.totalorder %v58, %v180
    %vm772 = vcmp.eq.s32.totalorder %v58, %v184
    %vm773 = vcmp.eq.s32.totalorder %v58, %v188
    %vm774 = vcmp.eq.s32.totalorder %v58, %v192
    %vm775 = vcmp.eq.s32.totalorder %v58, %v196
    %vm776 = vcmp.eq.s32.totalorder %v58, %v200
    %vm777 = vcmp.eq.s32.totalorder %v59, %v76
    %vm778 = vcmp.eq.s32.totalorder %v59, %v80
    %vm779 = vcmp.eq.s32.totalorder %v59, %v84
    %vm780 = vcmp.eq.s32.totalorder %v59, %v88
    %vm781 = vcmp.eq.s32.totalorder %v59, %v92
    %vm782 = vcmp.eq.s32.totalorder %v59, %v96
    %vm783 = vcmp.eq.s32.totalorder %v59, %v100
    %vm784 = vcmp.eq.s32.totalorder %v59, %v104
    %vm785 = vcmp.eq.s32.totalorder %v59, %v108
    %vm786 = vcmp.eq.s32.totalorder %v59, %v112
    %vm787 = vcmp.eq.s32.totalorder %v59, %v116
    %vm788 = vcmp.eq.s32.totalorder %v59, %v120
    %vm789 = vcmp.eq.s32.totalorder %v59, %v124
    %vm790 = vcmp.eq.s32.totalorder %v59, %v128
    %vm791 = vcmp.eq.s32.totalorder %v59, %v132
    %vm792 = vcmp.eq.s32.totalorder %v59, %v136
    %vm793 = vcmp.eq.s32.totalorder %v59, %v140
    %vm794 = vcmp.eq.s32.totalorder %v59, %v144
    %vm795 = vcmp.eq.s32.totalorder %v59, %v148
    %vm796 = vcmp.eq.s32.totalorder %v59, %v152
    %vm797 = vcmp.eq.s32.totalorder %v59, %v156
    %vm798 = vcmp.eq.s32.totalorder %v59, %v160
    %vm799 = vcmp.eq.s32.totalorder %v59, %v164
    %vm800 = vcmp.eq.s32.totalorder %v59, %v168
    %vm801 = vcmp.eq.s32.totalorder %v59, %v172
    %vm802 = vcmp.eq.s32.totalorder %v59, %v176
    %vm803 = vcmp.eq.s32.totalorder %v59, %v180
    %vm804 = vcmp.eq.s32.totalorder %v59, %v184
    %vm805 = vcmp.eq.s32.totalorder %v59, %v188
    %vm806 = vcmp.eq.s32.totalorder %v59, %v192
    %vm807 = vcmp.eq.s32.totalorder %v59, %v196
    %vm808 = vcmp.eq.s32.totalorder %v59, %v200
    %vm809 = vcmp.eq.s32.totalorder %v60, %v76
    %vm810 = vcmp.eq.s32.totalorder %v60, %v80
    %vm811 = vcmp.eq.s32.totalorder %v60, %v84
    %vm812 = vcmp.eq.s32.totalorder %v60, %v88
    %vm813 = vcmp.eq.s32.totalorder %v60, %v92
    %vm814 = vcmp.eq.s32.totalorder %v60, %v96
    %vm815 = vcmp.eq.s32.totalorder %v60, %v100
    %vm816 = vcmp.eq.s32.totalorder %v60, %v104
    %vm817 = vcmp.eq.s32.totalorder %v60, %v108
    %vm818 = vcmp.eq.s32.totalorder %v60, %v112
    %vm819 = vcmp.eq.s32.totalorder %v60, %v116
    %vm820 = vcmp.eq.s32.totalorder %v60, %v120
    %vm821 = vcmp.eq.s32.totalorder %v60, %v124
    %vm822 = vcmp.eq.s32.totalorder %v60, %v128
    %vm823 = vcmp.eq.s32.totalorder %v60, %v132
    %vm824 = vcmp.eq.s32.totalorder %v60, %v136
    %vm825 = vcmp.eq.s32.totalorder %v60, %v140
    %vm826 = vcmp.eq.s32.totalorder %v60, %v144
    %vm827 = vcmp.eq.s32.totalorder %v60, %v148
    %vm828 = vcmp.eq.s32.totalorder %v60, %v152
    %vm829 = vcmp.eq.s32.totalorder %v60, %v156
    %vm830 = vcmp.eq.s32.totalorder %v60, %v160
    %vm831 = vcmp.eq.s32.totalorder %v60, %v164
    %vm832 = vcmp.eq.s32.totalorder %v60, %v168
    %vm833 = vcmp.eq.s32.totalorder %v60, %v172
    %vm834 = vcmp.eq.s32.totalorder %v60, %v176
    %vm835 = vcmp.eq.s32.totalorder %v60, %v180
    %vm836 = vcmp.eq.s32.totalorder %v60, %v184
    %vm837 = vcmp.eq.s32.totalorder %v60, %v188
    %vm838 = vcmp.eq.s32.totalorder %v60, %v192
    %vm839 = vcmp.eq.s32.totalorder %v60, %v196
    %vm840 = vcmp.eq.s32.totalorder %v60, %v200
    %vm841 = vcmp.eq.s32.totalorder %v61, %v76
    %vm842 = vcmp.eq.s32.totalorder %v61, %v80
    %vm843 = vcmp.eq.s32.totalorder %v61, %v84
    %vm844 = vcmp.eq.s32.totalorder %v61, %v88
    %vm845 = vcmp.eq.s32.totalorder %v61, %v92
    %vm846 = vcmp.eq.s32.totalorder %v61, %v96
    %vm847 = vcmp.eq.s32.totalorder %v61, %v100
    %vm848 = vcmp.eq.s32.totalorder %v61, %v104
    %vm849 = vcmp.eq.s32.totalorder %v61, %v108
    %vm850 = vcmp.eq.s32.totalorder %v61, %v112
    %vm851 = vcmp.eq.s32.totalorder %v61, %v116
    %vm852 = vcmp.eq.s32.totalorder %v61, %v120
    %vm853 = vcmp.eq.s32.totalorder %v61, %v124
    %vm854 = vcmp.eq.s32.totalorder %v61, %v128
    %vm855 = vcmp.eq.s32.totalorder %v61, %v132
    %vm856 = vcmp.eq.s32.totalorder %v61, %v136
    %vm857 = vcmp.eq.s32.totalorder %v61, %v140
    %vm858 = vcmp.eq.s32.totalorder %v61, %v144
    %vm859 = vcmp.eq.s32.totalorder %v61, %v148
    %vm860 = vcmp.eq.s32.totalorder %v61, %v152
    %vm861 = vcmp.eq.s32.totalorder %v61, %v156
    %vm862 = vcmp.eq.s32.totalorder %v61, %v160
    %vm863 = vcmp.eq.s32.totalorder %v61, %v164
    %vm864 = vcmp.eq.s32.totalorder %v61, %v168
    %vm865 = vcmp.eq.s32.totalorder %v61, %v172
    %vm866 = vcmp.eq.s32.totalorder %v61, %v176
    %vm867 = vcmp.eq.s32.totalorder %v61, %v180
    %vm868 = vcmp.eq.s32.totalorder %v61, %v184
    %vm869 = vcmp.eq.s32.totalorder %v61, %v188
    %vm870 = vcmp.eq.s32.totalorder %v61, %v192
    %vm871 = vcmp.eq.s32.totalorder %v61, %v196
    %vm872 = vcmp.eq.s32.totalorder %v61, %v200
    %vm873 = vcmp.eq.s32.totalorder %v62, %v76
    %vm874 = vcmp.eq.s32.totalorder %v62, %v80
    %vm875 = vcmp.eq.s32.totalorder %v62, %v84
    %vm876 = vcmp.eq.s32.totalorder %v62, %v88
    %vm877 = vcmp.eq.s32.totalorder %v62, %v92
    %vm878 = vcmp.eq.s32.totalorder %v62, %v96
    %vm879 = vcmp.eq.s32.totalorder %v62, %v100
    %vm880 = vcmp.eq.s32.totalorder %v62, %v104
    %vm881 = vcmp.eq.s32.totalorder %v62, %v108
    %vm882 = vcmp.eq.s32.totalorder %v62, %v112
    %vm883 = vcmp.eq.s32.totalorder %v62, %v116
    %vm884 = vcmp.eq.s32.totalorder %v62, %v120
    %vm885 = vcmp.eq.s32.totalorder %v62, %v124
    %vm886 = vcmp.eq.s32.totalorder %v62, %v128
    %vm887 = vcmp.eq.s32.totalorder %v62, %v132
    %vm888 = vcmp.eq.s32.totalorder %v62, %v136
    %vm889 = vcmp.eq.s32.totalorder %v62, %v140
    %vm890 = vcmp.eq.s32.totalorder %v62, %v144
    %vm891 = vcmp.eq.s32.totalorder %v62, %v148
    %vm892 = vcmp.eq.s32.totalorder %v62, %v152
    %vm893 = vcmp.eq.s32.totalorder %v62, %v156
    %vm894 = vcmp.eq.s32.totalorder %v62, %v160
    %vm895 = vcmp.eq.s32.totalorder %v62, %v164
    %vm896 = vcmp.eq.s32.totalorder %v62, %v168
    %vm897 = vcmp.eq.s32.totalorder %v62, %v172
    %vm898 = vcmp.eq.s32.totalorder %v62, %v176
    %vm899 = vcmp.eq.s32.totalorder %v62, %v180
    %vm900 = vcmp.eq.s32.totalorder %v62, %v184
    %vm901 = vcmp.eq.s32.totalorder %v62, %v188
    %vm902 = vcmp.eq.s32.totalorder %v62, %v192
    %vm903 = vcmp.eq.s32.totalorder %v62, %v196
    %vm904 = vcmp.eq.s32.totalorder %v62, %v200
    %vm905 = vcmp.eq.s32.totalorder %v63, %v76
    %vm906 = vcmp.eq.s32.totalorder %v63, %v80
    %vm907 = vcmp.eq.s32.totalorder %v63, %v84
    %vm908 = vcmp.eq.s32.totalorder %v63, %v88
    %vm909 = vcmp.eq.s32.totalorder %v63, %v92
    %vm910 = vcmp.eq.s32.totalorder %v63, %v96
    %vm911 = vcmp.eq.s32.totalorder %v63, %v100
    %vm912 = vcmp.eq.s32.totalorder %v63, %v104
    %vm913 = vcmp.eq.s32.totalorder %v63, %v108
    %vm914 = vcmp.eq.s32.totalorder %v63, %v112
    %vm915 = vcmp.eq.s32.totalorder %v63, %v116
    %vm916 = vcmp.eq.s32.totalorder %v63, %v120
    %vm917 = vcmp.eq.s32.totalorder %v63, %v124
    %vm918 = vcmp.eq.s32.totalorder %v63, %v128
    %vm919 = vcmp.eq.s32.totalorder %v63, %v132
    %vm920 = vcmp.eq.s32.totalorder %v63, %v136
    %vm921 = vcmp.eq.s32.totalorder %v63, %v140
    %vm922 = vcmp.eq.s32.totalorder %v63, %v144
    %vm923 = vcmp.eq.s32.totalorder %v63, %v148
    %vm924 = vcmp.eq.s32.totalorder %v63, %v152
    %vm925 = vcmp.eq.s32.totalorder %v63, %v156
    %vm926 = vcmp.eq.s32.totalorder %v63, %v160
    %vm927 = vcmp.eq.s32.totalorder %v63, %v164
    %vm928 = vcmp.eq.s32.totalorder %v63, %v168
    %vm929 = vcmp.eq.s32.totalorder %v63, %v172
    %vm930 = vcmp.eq.s32.totalorder %v63, %v176
    %vm931 = vcmp.eq.s32.totalorder %v63, %v180
    %vm932 = vcmp.eq.s32.totalorder %v63, %v184
    %vm933 = vcmp.eq.s32.totalorder %v63, %v188
    %vm934 = vcmp.eq.s32.totalorder %v63, %v192
    %vm935 = vcmp.eq.s32.totalorder %v63, %v196
    %vm936 = vcmp.eq.s32.totalorder %v63, %v200
    %vm937 = vcmp.eq.s32.totalorder %v64, %v76
    %vm938 = vcmp.eq.s32.totalorder %v64, %v80
    %vm939 = vcmp.eq.s32.totalorder %v64, %v84
    %vm940 = vcmp.eq.s32.totalorder %v64, %v88
    %vm941 = vcmp.eq.s32.totalorder %v64, %v92
    %vm942 = vcmp.eq.s32.totalorder %v64, %v96
    %vm943 = vcmp.eq.s32.totalorder %v64, %v100
    %vm944 = vcmp.eq.s32.totalorder %v64, %v104
    %vm945 = vcmp.eq.s32.totalorder %v64, %v108
    %vm946 = vcmp.eq.s32.totalorder %v64, %v112
    %vm947 = vcmp.eq.s32.totalorder %v64, %v116
    %vm948 = vcmp.eq.s32.totalorder %v64, %v120
    %vm949 = vcmp.eq.s32.totalorder %v64, %v124
    %vm950 = vcmp.eq.s32.totalorder %v64, %v128
    %vm951 = vcmp.eq.s32.totalorder %v64, %v132
    %vm952 = vcmp.eq.s32.totalorder %v64, %v136
    %vm953 = vcmp.eq.s32.totalorder %v64, %v140
    %vm954 = vcmp.eq.s32.totalorder %v64, %v144
    %vm955 = vcmp.eq.s32.totalorder %v64, %v148
    %vm956 = vcmp.eq.s32.totalorder %v64, %v152
    %vm957 = vcmp.eq.s32.totalorder %v64, %v156
    %vm958 = vcmp.eq.s32.totalorder %v64, %v160
    %vm959 = vcmp.eq.s32.totalorder %v64, %v164
    %vm960 = vcmp.eq.s32.totalorder %v64, %v168
    %vm961 = vcmp.eq.s32.totalorder %v64, %v172
    %vm962 = vcmp.eq.s32.totalorder %v64, %v176
    %vm963 = vcmp.eq.s32.totalorder %v64, %v180
    %vm964 = vcmp.eq.s32.totalorder %v64, %v184
    %vm965 = vcmp.eq.s32.totalorder %v64, %v188
    %vm966 = vcmp.eq.s32.totalorder %v64, %v192
    %vm967 = vcmp.eq.s32.totalorder %v64, %v196
    %vm968 = vcmp.eq.s32.totalorder %v64, %v200
    %vm969 = vcmp.eq.s32.totalorder %v65, %v76
    %vm970 = vcmp.eq.s32.totalorder %v65, %v80
    %vm971 = vcmp.eq.s32.totalorder %v65, %v84
    %vm972 = vcmp.eq.s32.totalorder %v65, %v88
    %vm973 = vcmp.eq.s32.totalorder %v65, %v92
    %vm974 = vcmp.eq.s32.totalorder %v65, %v96
    %vm975 = vcmp.eq.s32.totalorder %v65, %v100
    %vm976 = vcmp.eq.s32.totalorder %v65, %v104
    %vm977 = vcmp.eq.s32.totalorder %v65, %v108
    %vm978 = vcmp.eq.s32.totalorder %v65, %v112
    %vm979 = vcmp.eq.s32.totalorder %v65, %v116
    %vm980 = vcmp.eq.s32.totalorder %v65, %v120
    %vm981 = vcmp.eq.s32.totalorder %v65, %v124
    %vm982 = vcmp.eq.s32.totalorder %v65, %v128
    %vm983 = vcmp.eq.s32.totalorder %v65, %v132
    %vm984 = vcmp.eq.s32.totalorder %v65, %v136
    %vm985 = vcmp.eq.s32.totalorder %v65, %v140
    %vm986 = vcmp.eq.s32.totalorder %v65, %v144
    %vm987 = vcmp.eq.s32.totalorder %v65, %v148
    %vm988 = vcmp.eq.s32.totalorder %v65, %v152
    %vm989 = vcmp.eq.s32.totalorder %v65, %v156
    %vm990 = vcmp.eq.s32.totalorder %v65, %v160
    %vm991 = vcmp.eq.s32.totalorder %v65, %v164
    %vm992 = vcmp.eq.s32.totalorder %v65, %v168
    %vm993 = vcmp.eq.s32.totalorder %v65, %v172
    %vm994 = vcmp.eq.s32.totalorder %v65, %v176
    %vm995 = vcmp.eq.s32.totalorder %v65, %v180
    %vm996 = vcmp.eq.s32.totalorder %v65, %v184
    %vm997 = vcmp.eq.s32.totalorder %v65, %v188
    %vm998 = vcmp.eq.s32.totalorder %v65, %v192
    %vm999 = vcmp.eq.s32.totalorder %v65, %v196
    %vm1000 = vcmp.eq.s32.totalorder %v65, %v200
    %vm1001 = vcmp.eq.s32.totalorder %v66, %v76
    %vm1002 = vcmp.eq.s32.totalorder %v66, %v80
    %vm1003 = vcmp.eq.s32.totalorder %v66, %v84
    %vm1004 = vcmp.eq.s32.totalorder %v66, %v88
    %vm1005 = vcmp.eq.s32.totalorder %v66, %v92
    %vm1006 = vcmp.eq.s32.totalorder %v66, %v96
    %vm1007 = vcmp.eq.s32.totalorder %v66, %v100
    %vm1008 = vcmp.eq.s32.totalorder %v66, %v104
    %vm1009 = vcmp.eq.s32.totalorder %v66, %v108
    %vm1010 = vcmp.eq.s32.totalorder %v66, %v112
    %vm1011 = vcmp.eq.s32.totalorder %v66, %v116
    %vm1012 = vcmp.eq.s32.totalorder %v66, %v120
    %vm1013 = vcmp.eq.s32.totalorder %v66, %v124
    %vm1014 = vcmp.eq.s32.totalorder %v66, %v128
    %vm1015 = vcmp.eq.s32.totalorder %v66, %v132
    %vm1016 = vcmp.eq.s32.totalorder %v66, %v136
    %vm1017 = vcmp.eq.s32.totalorder %v66, %v140
    %vm1018 = vcmp.eq.s32.totalorder %v66, %v144
    %vm1019 = vcmp.eq.s32.totalorder %v66, %v148
    %vm1020 = vcmp.eq.s32.totalorder %v66, %v152
    %vm1021 = vcmp.eq.s32.totalorder %v66, %v156
    %vm1022 = vcmp.eq.s32.totalorder %v66, %v160
    %vm1023 = vcmp.eq.s32.totalorder %v66, %v164
    %vm1024 = vcmp.eq.s32.totalorder %v66, %v168
    %vm1025 = vcmp.eq.s32.totalorder %v66, %v172
    %vm1026 = vcmp.eq.s32.totalorder %v66, %v176
    %vm1027 = vcmp.eq.s32.totalorder %v66, %v180
    %vm1028 = vcmp.eq.s32.totalorder %v66, %v184
    %vm1029 = vcmp.eq.s32.totalorder %v66, %v188
    %vm1030 = vcmp.eq.s32.totalorder %v66, %v192
    %vm1031 = vcmp.eq.s32.totalorder %v66, %v196
    %vm1032 = vcmp.eq.s32.totalorder %v66, %v200
    %vm1033 = vcmp.eq.s32.totalorder %v67, %v76
    %vm1034 = vcmp.eq.s32.totalorder %v67, %v80
    %vm1035 = vcmp.eq.s32.totalorder %v67, %v84
    %vm1036 = vcmp.eq.s32.totalorder %v67, %v88
    %vm1037 = vcmp.eq.s32.totalorder %v67, %v92
    %vm1038 = vcmp.eq.s32.totalorder %v67, %v96
    %vm1039 = vcmp.eq.s32.totalorder %v67, %v100
    %vm1040 = vcmp.eq.s32.totalorder %v67, %v104
    %vm1041 = vcmp.eq.s32.totalorder %v67, %v108
    %vm1042 = vcmp.eq.s32.totalorder %v67, %v112
    %vm1043 = vcmp.eq.s32.totalorder %v67, %v116
    %vm1044 = vcmp.eq.s32.totalorder %v67, %v120
    %vm1045 = vcmp.eq.s32.totalorder %v67, %v124
    %vm1046 = vcmp.eq.s32.totalorder %v67, %v128
    %vm1047 = vcmp.eq.s32.totalorder %v67, %v132
    %vm1048 = vcmp.eq.s32.totalorder %v67, %v136
    %vm1049 = vcmp.eq.s32.totalorder %v67, %v140
    %vm1050 = vcmp.eq.s32.totalorder %v67, %v144
    %vm1051 = vcmp.eq.s32.totalorder %v67, %v148
    %vm1052 = vcmp.eq.s32.totalorder %v67, %v152
    %vm1053 = vcmp.eq.s32.totalorder %v67, %v156
    %vm1054 = vcmp.eq.s32.totalorder %v67, %v160
    %vm1055 = vcmp.eq.s32.totalorder %v67, %v164
    %vm1056 = vcmp.eq.s32.totalorder %v67, %v168
    %vm1057 = vcmp.eq.s32.totalorder %v67, %v172
    %vm1058 = vcmp.eq.s32.totalorder %v67, %v176
    %vm1059 = vcmp.eq.s32.totalorder %v67, %v180
    %vm1060 = vcmp.eq.s32.totalorder %v67, %v184
    %vm1061 = vcmp.eq.s32.totalorder %v67, %v188
    %vm1062 = vcmp.eq.s32.totalorder %v67, %v192
    %vm1063 = vcmp.eq.s32.totalorder %v67, %v196
    %vm1064 = vcmp.eq.s32.totalorder %v67, %v200
    %vm1065 = vcmp.eq.s32.totalorder %v68, %v76
    %vm1066 = vcmp.eq.s32.totalorder %v68, %v80
    %vm1067 = vcmp.eq.s32.totalorder %v68, %v84
    %vm1068 = vcmp.eq.s32.totalorder %v68, %v88
    %vm1069 = vcmp.eq.s32.totalorder %v68, %v92
    %vm1070 = vcmp.eq.s32.totalorder %v68, %v96
    %vm1071 = vcmp.eq.s32.totalorder %v68, %v100
    %vm1072 = vcmp.eq.s32.totalorder %v68, %v104
    %vm1073 = vcmp.eq.s32.totalorder %v68, %v108
    %vm1074 = vcmp.eq.s32.totalorder %v68, %v112
    %vm1075 = vcmp.eq.s32.totalorder %v68, %v116
    %vm1076 = vcmp.eq.s32.totalorder %v68, %v120
    %vm1077 = vcmp.eq.s32.totalorder %v68, %v124
    %vm1078 = vcmp.eq.s32.totalorder %v68, %v128
    %vm1079 = vcmp.eq.s32.totalorder %v68, %v132
    %vm1080 = vcmp.eq.s32.totalorder %v68, %v136
    %vm1081 = vcmp.eq.s32.totalorder %v68, %v140
    %vm1082 = vcmp.eq.s32.totalorder %v68, %v144
    %vm1083 = vcmp.eq.s32.totalorder %v68, %v148
    %vm1084 = vcmp.eq.s32.totalorder %v68, %v152
    %vm1085 = vcmp.eq.s32.totalorder %v68, %v156
    %vm1086 = vcmp.eq.s32.totalorder %v68, %v160
    %vm1087 = vcmp.eq.s32.totalorder %v68, %v164
    %vm1088 = vcmp.eq.s32.totalorder %v68, %v168
    %vm1089 = vcmp.eq.s32.totalorder %v68, %v172
    %vm1090 = vcmp.eq.s32.totalorder %v68, %v176
    %vm1091 = vcmp.eq.s32.totalorder %v68, %v180
    %vm1092 = vcmp.eq.s32.totalorder %v68, %v184
    %vm1093 = vcmp.eq.s32.totalorder %v68, %v188
    %vm1094 = vcmp.eq.s32.totalorder %v68, %v192
    %vm1095 = vcmp.eq.s32.totalorder %v68, %v196
    %vm1096 = vcmp.eq.s32.totalorder %v68, %v200
    %vm1097 = vcmp.eq.s32.totalorder %v69, %v76
    %vm1098 = vcmp.eq.s32.totalorder %v69, %v80
    %vm1099 = vcmp.eq.s32.totalorder %v69, %v84
    %vm1100 = vcmp.eq.s32.totalorder %v69, %v88
    %vm1101 = vcmp.eq.s32.totalorder %v69, %v92
    %vm1102 = vcmp.eq.s32.totalorder %v69, %v96
    %vm1103 = vcmp.eq.s32.totalorder %v69, %v100
    %vm1104 = vcmp.eq.s32.totalorder %v69, %v104
    %vm1105 = vcmp.eq.s32.totalorder %v69, %v108
    %vm1106 = vcmp.eq.s32.totalorder %v69, %v112
    %vm1107 = vcmp.eq.s32.totalorder %v69, %v116
    %vm1108 = vcmp.eq.s32.totalorder %v69, %v120
    %vm1109 = vcmp.eq.s32.totalorder %v69, %v124
    %vm1110 = vcmp.eq.s32.totalorder %v69, %v128
    %vm1111 = vcmp.eq.s32.totalorder %v69, %v132
    %vm1112 = vcmp.eq.s32.totalorder %v69, %v136
    %vm1113 = vcmp.eq.s32.totalorder %v69, %v140
    %vm1114 = vcmp.eq.s32.totalorder %v69, %v144
    %vm1115 = vcmp.eq.s32.totalorder %v69, %v148
    %vm1116 = vcmp.eq.s32.totalorder %v69, %v152
    %vm1117 = vcmp.eq.s32.totalorder %v69, %v156
    %vm1118 = vcmp.eq.s32.totalorder %v69, %v160
    %vm1119 = vcmp.eq.s32.totalorder %v69, %v164
    %vm1120 = vcmp.eq.s32.totalorder %v69, %v168
    %vm1121 = vcmp.eq.s32.totalorder %v69, %v172
    %vm1122 = vcmp.eq.s32.totalorder %v69, %v176
    %vm1123 = vcmp.eq.s32.totalorder %v69, %v180
    %vm1124 = vcmp.eq.s32.totalorder %v69, %v184
    %vm1125 = vcmp.eq.s32.totalorder %v69, %v188
    %vm1126 = vcmp.eq.s32.totalorder %v69, %v192
    %vm1127 = vcmp.eq.s32.totalorder %v69, %v196
    %vm1128 = vcmp.eq.s32.totalorder %v69, %v200
    %vm1129 = vcmp.eq.s32.totalorder %v70, %v76
    %vm1130 = vcmp.eq.s32.totalorder %v70, %v80
    %vm1131 = vcmp.eq.s32.totalorder %v70, %v84
    %vm1132 = vcmp.eq.s32.totalorder %v70, %v88
    %vm1133 = vcmp.eq.s32.totalorder %v70, %v92
    %vm1134 = vcmp.eq.s32.totalorder %v70, %v96
    %vm1135 = vcmp.eq.s32.totalorder %v70, %v100
    %vm1136 = vcmp.eq.s32.totalorder %v70, %v104
    %vm1137 = vcmp.eq.s32.totalorder %v70, %v108
    %vm1138 = vcmp.eq.s32.totalorder %v70, %v112
    %vm1139 = vcmp.eq.s32.totalorder %v70, %v116
    %vm1140 = vcmp.eq.s32.totalorder %v70, %v120
    %vm1141 = vcmp.eq.s32.totalorder %v70, %v124
    %vm1142 = vcmp.eq.s32.totalorder %v70, %v128
    %vm1143 = vcmp.eq.s32.totalorder %v70, %v132
    %vm1144 = vcmp.eq.s32.totalorder %v70, %v136
    %vm1145 = vcmp.eq.s32.totalorder %v70, %v140
    %vm1146 = vcmp.eq.s32.totalorder %v70, %v144
    %vm1147 = vcmp.eq.s32.totalorder %v70, %v148
    %vm1148 = vcmp.eq.s32.totalorder %v70, %v152
    %vm1149 = vcmp.eq.s32.totalorder %v70, %v156
    %vm1150 = vcmp.eq.s32.totalorder %v70, %v160
    %vm1151 = vcmp.eq.s32.totalorder %v70, %v164
    %vm1152 = vcmp.eq.s32.totalorder %v70, %v168
    %vm1153 = vcmp.eq.s32.totalorder %v70, %v172
    %vm1154 = vcmp.eq.s32.totalorder %v70, %v176
    %vm1155 = vcmp.eq.s32.totalorder %v70, %v180
    %vm1156 = vcmp.eq.s32.totalorder %v70, %v184
    %vm1157 = vcmp.eq.s32.totalorder %v70, %v188
    %vm1158 = vcmp.eq.s32.totalorder %v70, %v192
    %vm1159 = vcmp.eq.s32.totalorder %v70, %v196
    %vm1160 = vcmp.eq.s32.totalorder %v70, %v200
    %vm1161 = vcmp.eq.s32.totalorder %v71, %v76
    %vm1162 = vcmp.eq.s32.totalorder %v71, %v80
    %vm1163 = vcmp.eq.s32.totalorder %v71, %v84
    %vm1164 = vcmp.eq.s32.totalorder %v71, %v88
    %vm1165 = vcmp.eq.s32.totalorder %v71, %v92
    %vm1166 = vcmp.eq.s32.totalorder %v71, %v96
    %vm1167 = vcmp.eq.s32.totalorder %v71, %v100
    %vm1168 = vcmp.eq.s32.totalorder %v71, %v104
    %vm1169 = vcmp.eq.s32.totalorder %v71, %v108
    %vm1170 = vcmp.eq.s32.totalorder %v71, %v112
    %vm1171 = vcmp.eq.s32.totalorder %v71, %v116
    %vm1172 = vcmp.eq.s32.totalorder %v71, %v120
    %vm1173 = vcmp.eq.s32.totalorder %v71, %v124
    %vm1174 = vcmp.eq.s32.totalorder %v71, %v128
    %vm1175 = vcmp.eq.s32.totalorder %v71, %v132
    %vm1176 = vcmp.eq.s32.totalorder %v71, %v136
    %vm1177 = vcmp.eq.s32.totalorder %v71, %v140
    %vm1178 = vcmp.eq.s32.totalorder %v71, %v144
    %vm1179 = vcmp.eq.s32.totalorder %v71, %v148
    %vm1180 = vcmp.eq.s32.totalorder %v71, %v152
    %vm1181 = vcmp.eq.s32.totalorder %v71, %v156
    %vm1182 = vcmp.eq.s32.totalorder %v71, %v160
    %vm1183 = vcmp.eq.s32.totalorder %v71, %v164
    %vm1184 = vcmp.eq.s32.totalorder %v71, %v168
    %vm1185 = vcmp.eq.s32.totalorder %v71, %v172
    %vm1186 = vcmp.eq.s32.totalorder %v71, %v176
    %vm1187 = vcmp.eq.s32.totalorder %v71, %v180
    %vm1188 = vcmp.eq.s32.totalorder %v71, %v184
    %vm1189 = vcmp.eq.s32.totalorder %v71, %v188
    %vm1190 = vcmp.eq.s32.totalorder %v71, %v192
    %vm1191 = vcmp.eq.s32.totalorder %v71, %v196
    %vm1192 = vcmp.eq.s32.totalorder %v71, %v200
    %vm1193 = vcmp.eq.s32.totalorder %v72, %v76
    %vm1194 = vcmp.eq.s32.totalorder %v72, %v80
    %vm1195 = vcmp.eq.s32.totalorder %v72, %v84
    %vm1196 = vcmp.eq.s32.totalorder %v72, %v88
    %vm1197 = vcmp.eq.s32.totalorder %v72, %v92
    %vm1198 = vcmp.eq.s32.totalorder %v72, %v96
    %vm1199 = vcmp.eq.s32.totalorder %v72, %v100
    %vm1200 = vcmp.eq.s32.totalorder %v72, %v104
    %vm1201 = vcmp.eq.s32.totalorder %v72, %v108
    %vm1202 = vcmp.eq.s32.totalorder %v72, %v112
    %vm1203 = vcmp.eq.s32.totalorder %v72, %v116
    %vm1204 = vcmp.eq.s32.totalorder %v72, %v120
    %vm1205 = vcmp.eq.s32.totalorder %v72, %v124
    %vm1206 = vcmp.eq.s32.totalorder %v72, %v128
    %vm1207 = vcmp.eq.s32.totalorder %v72, %v132
    %vm1208 = vcmp.eq.s32.totalorder %v72, %v136
    %vm1209 = vcmp.eq.s32.totalorder %v72, %v140
    %vm1210 = vcmp.eq.s32.totalorder %v72, %v144
    %vm1211 = vcmp.eq.s32.totalorder %v72, %v148
    %vm1212 = vcmp.eq.s32.totalorder %v72, %v152
    %vm1213 = vcmp.eq.s32.totalorder %v72, %v156
    %vm1214 = vcmp.eq.s32.totalorder %v72, %v160
    %vm1215 = vcmp.eq.s32.totalorder %v72, %v164
    %vm1216 = vcmp.eq.s32.totalorder %v72, %v168
    %vm1217 = vcmp.eq.s32.totalorder %v72, %v172
    %vm1218 = vcmp.eq.s32.totalorder %v72, %v176
    %vm1219 = vcmp.eq.s32.totalorder %v72, %v180
    %vm1220 = vcmp.eq.s32.totalorder %v72, %v184
    %vm1221 = vcmp.eq.s32.totalorder %v72, %v188
    %vm1222 = vcmp.eq.s32.totalorder %v72, %v192
    %vm1223 = vcmp.eq.s32.totalorder %v72, %v196
    %vm1224 = vcmp.eq.s32.totalorder %v72, %v200
    %v1225 = vsel %vm201, 1, 0
    %v1226 = vsel %vm202, 1, 0
    %v1227 = vsel %vm203, 1, 0
    %v1228 = vsel %vm204, 1, 0
    %v1229 = vsel %vm205, 1, 0
    %v1230 = vsel %vm206, 1, 0
    %v1231 = vsel %vm207, 1, 0
    %v1232 = vsel %vm208, 1, 0
    %v1233 = vsel %vm209, 1, 0
    %v1234 = vsel %vm210, 1, 0
    %v1235 = vsel %vm211, 1, 0
    %v1236 = vsel %vm212, 1, 0
    %v1237 = vsel %vm213, 1, 0
    %v1238 = vsel %vm214, 1, 0
    %v1239 = vsel %vm215, 1, 0
    %v1240 = vsel %vm216, 1, 0
    %v1241 = vsel %vm217, 1, 0
    %v1242 = vsel %vm218, 1, 0
    %v1243 = vsel %vm219, 1, 0
    %v1244 = vsel %vm220, 1, 0
    %v1245 = vsel %vm221, 1, 0
    %v1246 = vsel %vm222, 1, 0
    %v1247 = vsel %vm223, 1, 0
    %v1248 = vsel %vm224, 1, 0
    %v1249 = vsel %vm225, 1, 0
    %v1250 = vsel %vm226, 1, 0
    %v1251 = vsel %vm227, 1, 0
    %v1252 = vsel %vm228, 1, 0
    %v1253 = vsel %vm229, 1, 0
    %v1254 = vsel %vm230, 1, 0
    %v1255 = vsel %vm231, 1, 0
    %v1256 = vsel %vm232, 1, 0
    %v1257 = vsel %vm233, 1, 0
    %v1258 = vsel %vm234, 1, 0
    %v1259 = vsel %vm235, 1, 0
    %v1260 = vsel %vm236, 1, 0
    %v1261 = vsel %vm237, 1, 0
    %v1262 = vsel %vm238, 1, 0
    %v1263 = vsel %vm239, 1, 0
    %v1264 = vsel %vm240, 1, 0
    %v1265 = vsel %vm241, 1, 0
    %v1266 = vsel %vm242, 1, 0
    %v1267 = vsel %vm243, 1, 0
    %v1268 = vsel %vm244, 1, 0
    %v1269 = vsel %vm245, 1, 0
    %v1270 = vsel %vm246, 1, 0
    %v1271 = vsel %vm247, 1, 0
    %v1272 = vsel %vm248, 1, 0
    %v1273 = vsel %vm249, 1, 0
    %v1274 = vsel %vm250, 1, 0
    %v1275 = vsel %vm251, 1, 0
    %v1276 = vsel %vm252, 1, 0
    %v1277 = vsel %vm253, 1, 0
    %v1278 = vsel %vm254, 1, 0
    %v1279 = vsel %vm255, 1, 0
    %v1280 = vsel %vm256, 1, 0
    %v1281 = vsel %vm257, 1, 0
    %v1282 = vsel %vm258, 1, 0
    %v1283 = vsel %vm259, 1, 0
    %v1284 = vsel %vm260, 1, 0
    %v1285 = vsel %vm261, 1, 0
    %v1286 = vsel %vm262, 1, 0
    %v1287 = vsel %vm263, 1, 0
    %v1288 = vsel %vm264, 1, 0
    %v1289 = vsel %vm265, 1, 0
    %v1290 = vsel %vm266, 1, 0
    %v1291 = vsel %vm267, 1, 0
    %v1292 = vsel %vm268, 1, 0
    %v1293 = vsel %vm269, 1, 0
    %v1294 = vsel %vm270, 1, 0
    %v1295 = vsel %vm271, 1, 0
    %v1296 = vsel %vm272, 1, 0
    %v1297 = vsel %vm273, 1, 0
    %v1298 = vsel %vm274, 1, 0
    %v1299 = vsel %vm275, 1, 0
    %v1300 = vsel %vm276, 1, 0
    %v1301 = vsel %vm277, 1, 0
    %v1302 = vsel %vm278, 1, 0
    %v1303 = vsel %vm279, 1, 0
    %v1304 = vsel %vm280, 1, 0
    %v1305 = vsel %vm281, 1, 0
    %v1306 = vsel %vm282, 1, 0
    %v1307 = vsel %vm283, 1, 0
    %v1308 = vsel %vm284, 1, 0
    %v1309 = vsel %vm285, 1, 0
    %v1310 = vsel %vm286, 1, 0
    %v1311 = vsel %vm287, 1, 0
    %v1312 = vsel %vm288, 1, 0
    %v1313 = vsel %vm289, 1, 0
    %v1314 = vsel %vm290, 1, 0
    %v1315 = vsel %vm291, 1, 0
    %v1316 = vsel %vm292, 1, 0
    %v1317 = vsel %vm293, 1, 0
    %v1318 = vsel %vm294, 1, 0
    %v1319 = vsel %vm295, 1, 0
    %v1320 = vsel %vm296, 1, 0
    %v1321 = vsel %vm297, 1, 0
    %v1322 = vsel %vm298, 1, 0
    %v1323 = vsel %vm299, 1, 0
    %v1324 = vsel %vm300, 1, 0
    %v1325 = vsel %vm301, 1, 0
    %v1326 = vsel %vm302, 1, 0
    %v1327 = vsel %vm303, 1, 0
    %v1328 = vsel %vm304, 1, 0
    %v1329 = vsel %vm305, 1, 0
    %v1330 = vsel %vm306, 1, 0
    %v1331 = vsel %vm307, 1, 0
    %v1332 = vsel %vm308, 1, 0
    %v1333 = vsel %vm309, 1, 0
    %v1334 = vsel %vm310, 1, 0
    %v1335 = vsel %vm311, 1, 0
    %v1336 = vsel %vm312, 1, 0
    %v1337 = vsel %vm313, 1, 0
    %v1338 = vsel %vm314, 1, 0
    %v1339 = vsel %vm315, 1, 0
    %v1340 = vsel %vm316, 1, 0
    %v1341 = vsel %vm317, 1, 0
    %v1342 = vsel %vm318, 1, 0
    %v1343 = vsel %vm319, 1, 0
    %v1344 = vsel %vm320, 1, 0
    %v1345 = vsel %vm321, 1, 0
    %v1346 = vsel %vm322, 1, 0
    %v1347 = vsel %vm323, 1, 0
    %v1348 = vsel %vm324, 1, 0
    %v1349 = vsel %vm325, 1, 0
    %v1350 = vsel %vm326, 1, 0
    %v1351 = vsel %vm327, 1, 0
    %v1352 = vsel %vm328, 1, 0
    %v1353 = vsel %vm329, 1, 0
    %v1354 = vsel %vm330, 1, 0
    %v1355 = vsel %vm331, 1, 0
    %v1356 = vsel %vm332, 1, 0
    %v1357 = vsel %vm333, 1, 0
    %v1358 = vsel %vm334, 1, 0
    %v1359 = vsel %vm335, 1, 0
    %v1360 = vsel %vm336, 1, 0
    %v1361 = vsel %vm337, 1, 0
    %v1362 = vsel %vm338, 1, 0
    %v1363 = vsel %vm339, 1, 0
    %v1364 = vsel %vm340, 1, 0
    %v1365 = vsel %vm341, 1, 0
    %v1366 = vsel %vm342, 1, 0
    %v1367 = vsel %vm343, 1, 0
    %v1368 = vsel %vm344, 1, 0
    %v1369 = vsel %vm345, 1, 0
    %v1370 = vsel %vm346, 1, 0
    %v1371 = vsel %vm347, 1, 0
    %v1372 = vsel %vm348, 1, 0
    %v1373 = vsel %vm349, 1, 0
    %v1374 = vsel %vm350, 1, 0
    %v1375 = vsel %vm351, 1, 0
    %v1376 = vsel %vm352, 1, 0
    %v1377 = vsel %vm353, 1, 0
    %v1378 = vsel %vm354, 1, 0
    %v1379 = vsel %vm355, 1, 0
    %v1380 = vsel %vm356, 1, 0
    %v1381 = vsel %vm357, 1, 0
    %v1382 = vsel %vm358, 1, 0
    %v1383 = vsel %vm359, 1, 0
    %v1384 = vsel %vm360, 1, 0
    %v1385 = vsel %vm361, 1, 0
    %v1386 = vsel %vm362, 1, 0
    %v1387 = vsel %vm363, 1, 0
    %v1388 = vsel %vm364, 1, 0
    %v1389 = vsel %vm365, 1, 0
    %v1390 = vsel %vm366, 1, 0
    %v1391 = vsel %vm367, 1, 0
    %v1392 = vsel %vm368, 1, 0
    %v1393 = vsel %vm369, 1, 0
    %v1394 = vsel %vm370, 1, 0
    %v1395 = vsel %vm371, 1, 0
    %v1396 = vsel %vm372, 1, 0
    %v1397 = vsel %vm373, 1, 0
    %v1398 = vsel %vm374, 1, 0
    %v1399 = vsel %vm375, 1, 0
    %v1400 = vsel %vm376, 1, 0
    %v1401 = vsel %vm377, 1, 0
    %v1402 = vsel %vm378, 1, 0
    %v1403 = vsel %vm379, 1, 0
    %v1404 = vsel %vm380, 1, 0
    %v1405 = vsel %vm381, 1, 0
    %v1406 = vsel %vm382, 1, 0
    %v1407 = vsel %vm383, 1, 0
    %v1408 = vsel %vm384, 1, 0
    %v1409 = vsel %vm385, 1, 0
    %v1410 = vsel %vm386, 1, 0
    %v1411 = vsel %vm387, 1, 0
    %v1412 = vsel %vm388, 1, 0
    %v1413 = vsel %vm389, 1, 0
    %v1414 = vsel %vm390, 1, 0
    %v1415 = vsel %vm391, 1, 0
    %v1416 = vsel %vm392, 1, 0
    %v1417 = vsel %vm393, 1, 0
    %v1418 = vsel %vm394, 1, 0
    %v1419 = vsel %vm395, 1, 0
    %v1420 = vsel %vm396, 1, 0
    %v1421 = vsel %vm397, 1, 0
    %v1422 = vsel %vm398, 1, 0
    %v1423 = vsel %vm399, 1, 0
    %v1424 = vsel %vm400, 1, 0
    %v1425 = vsel %vm401, 1, 0
    %v1426 = vsel %vm402, 1, 0
    %v1427 = vsel %vm403, 1, 0
    %v1428 = vsel %vm404, 1, 0
    %v1429 = vsel %vm405, 1, 0
    %v1430 = vsel %vm406, 1, 0
    %v1431 = vsel %vm407, 1, 0
    %v1432 = vsel %vm408, 1, 0
    %v1433 = vsel %vm409, 1, 0
    %v1434 = vsel %vm410, 1, 0
    %v1435 = vsel %vm411, 1, 0
    %v1436 = vsel %vm412, 1, 0
    %v1437 = vsel %vm413, 1, 0
    %v1438 = vsel %vm414, 1, 0
    %v1439 = vsel %vm415, 1, 0
    %v1440 = vsel %vm416, 1, 0
    %v1441 = vsel %vm417, 1, 0
    %v1442 = vsel %vm418, 1, 0
    %v1443 = vsel %vm419, 1, 0
    %v1444 = vsel %vm420, 1, 0
    %v1445 = vsel %vm421, 1, 0
    %v1446 = vsel %vm422, 1, 0
    %v1447 = vsel %vm423, 1, 0
    %v1448 = vsel %vm424, 1, 0
    %v1449 = vsel %vm425, 1, 0
    %v1450 = vsel %vm426, 1, 0
    %v1451 = vsel %vm427, 1, 0
    %v1452 = vsel %vm428, 1, 0
    %v1453 = vsel %vm429, 1, 0
    %v1454 = vsel %vm430, 1, 0
    %v1455 = vsel %vm431, 1, 0
    %v1456 = vsel %vm432, 1, 0
    %v1457 = vsel %vm433, 1, 0
    %v1458 = vsel %vm434, 1, 0
    %v1459 = vsel %vm435, 1, 0
    %v1460 = vsel %vm436, 1, 0
    %v1461 = vsel %vm437, 1, 0
    %v1462 = vsel %vm438, 1, 0
    %v1463 = vsel %vm439, 1, 0
    %v1464 = vsel %vm440, 1, 0
    %v1465 = vsel %vm441, 1, 0
    %v1466 = vsel %vm442, 1, 0
    %v1467 = vsel %vm443, 1, 0
    %v1468 = vsel %vm444, 1, 0
    %v1469 = vsel %vm445, 1, 0
    %v1470 = vsel %vm446, 1, 0
    %v1471 = vsel %vm447, 1, 0
    %v1472 = vsel %vm448, 1, 0
    %v1473 = vsel %vm449, 1, 0
    %v1474 = vsel %vm450, 1, 0
    %v1475 = vsel %vm451, 1, 0
    %v1476 = vsel %vm452, 1, 0
    %v1477 = vsel %vm453, 1, 0
    %v1478 = vsel %vm454, 1, 0
    %v1479 = vsel %vm455, 1, 0
    %v1480 = vsel %vm456, 1, 0
    %v1481 = vsel %vm457, 1, 0
    %v1482 = vsel %vm458, 1, 0
    %v1483 = vsel %vm459, 1, 0
    %v1484 = vsel %vm460, 1, 0
    %v1485 = vsel %vm461, 1, 0
    %v1486 = vsel %vm462, 1, 0
    %v1487 = vsel %vm463, 1, 0
    %v1488 = vsel %vm464, 1, 0
    %v1489 = vsel %vm465, 1, 0
    %v1490 = vsel %vm466, 1, 0
    %v1491 = vsel %vm467, 1, 0
    %v1492 = vsel %vm468, 1, 0
    %v1493 = vsel %vm469, 1, 0
    %v1494 = vsel %vm470, 1, 0
    %v1495 = vsel %vm471, 1, 0
    %v1496 = vsel %vm472, 1, 0
    %v1497 = vsel %vm473, 1, 0
    %v1498 = vsel %vm474, 1, 0
    %v1499 = vsel %vm475, 1, 0
    %v1500 = vsel %vm476, 1, 0
    %v1501 = vsel %vm477, 1, 0
    %v1502 = vsel %vm478, 1, 0
    %v1503 = vsel %vm479, 1, 0
    %v1504 = vsel %vm480, 1, 0
    %v1505 = vsel %vm481, 1, 0
    %v1506 = vsel %vm482, 1, 0
    %v1507 = vsel %vm483, 1, 0
    %v1508 = vsel %vm484, 1, 0
    %v1509 = vsel %vm485, 1, 0
    %v1510 = vsel %vm486, 1, 0
    %v1511 = vsel %vm487, 1, 0
    %v1512 = vsel %vm488, 1, 0
    %v1513 = vsel %vm489, 1, 0
    %v1514 = vsel %vm490, 1, 0
    %v1515 = vsel %vm491, 1, 0
    %v1516 = vsel %vm492, 1, 0
    %v1517 = vsel %vm493, 1, 0
    %v1518 = vsel %vm494, 1, 0
    %v1519 = vsel %vm495, 1, 0
    %v1520 = vsel %vm496, 1, 0
    %v1521 = vsel %vm497, 1, 0
    %v1522 = vsel %vm498, 1, 0
    %v1523 = vsel %vm499, 1, 0
    %v1524 = vsel %vm500, 1, 0
    %v1525 = vsel %vm501, 1, 0
    %v1526 = vsel %vm502, 1, 0
    %v1527 = vsel %vm503, 1, 0
    %v1528 = vsel %vm504, 1, 0
    %v1529 = vsel %vm505, 1, 0
    %v1530 = vsel %vm506, 1, 0
    %v1531 = vsel %vm507, 1, 0
    %v1532 = vsel %vm508, 1, 0
    %v1533 = vsel %vm509, 1, 0
    %v1534 = vsel %vm510, 1, 0
    %v1535 = vsel %vm511, 1, 0
    %v1536 = vsel %vm512, 1, 0
    %v1537 = vsel %vm513, 1, 0
    %v1538 = vsel %vm514, 1, 0
    %v1539 = vsel %vm515, 1, 0
    %v1540 = vsel %vm516, 1, 0
    %v1541 = vsel %vm517, 1, 0
    %v1542 = vsel %vm518, 1, 0
    %v1543 = vsel %vm519, 1, 0
    %v1544 = vsel %vm520, 1, 0
    %v1545 = vsel %vm521, 1, 0
    %v1546 = vsel %vm522, 1, 0
    %v1547 = vsel %vm523, 1, 0
    %v1548 = vsel %vm524, 1, 0
    %v1549 = vsel %vm525, 1, 0
    %v1550 = vsel %vm526, 1, 0
    %v1551 = vsel %vm527, 1, 0
    %v1552 = vsel %vm528, 1, 0
    %v1553 = vsel %vm529, 1, 0
    %v1554 = vsel %vm530, 1, 0
    %v1555 = vsel %vm531, 1, 0
    %v1556 = vsel %vm532, 1, 0
    %v1557 = vsel %vm533, 1, 0
    %v1558 = vsel %vm534, 1, 0
    %v1559 = vsel %vm535, 1, 0
    %v1560 = vsel %vm536, 1, 0
    %v1561 = vsel %vm537, 1, 0
    %v1562 = vsel %vm538, 1, 0
    %v1563 = vsel %vm539, 1, 0
    %v1564 = vsel %vm540, 1, 0
    %v1565 = vsel %vm541, 1, 0
    %v1566 = vsel %vm542, 1, 0
    %v1567 = vsel %vm543, 1, 0
    %v1568 = vsel %vm544, 1, 0
    %v1569 = vsel %vm545, 1, 0
    %v1570 = vsel %vm546, 1, 0
    %v1571 = vsel %vm547, 1, 0
    %v1572 = vsel %vm548, 1, 0
    %v1573 = vsel %vm549, 1, 0
    %v1574 = vsel %vm550, 1, 0
    %v1575 = vsel %vm551, 1, 0
    %v1576 = vsel %vm552, 1, 0
    %v1577 = vsel %vm553, 1, 0
    %v1578 = vsel %vm554, 1, 0
    %v1579 = vsel %vm555, 1, 0
    %v1580 = vsel %vm556, 1, 0
    %v1581 = vsel %vm557, 1, 0
    %v1582 = vsel %vm558, 1, 0
    %v1583 = vsel %vm559, 1, 0
    %v1584 = vsel %vm560, 1, 0
    %v1585 = vsel %vm561, 1, 0
    %v1586 = vsel %vm562, 1, 0
    %v1587 = vsel %vm563, 1, 0
    %v1588 = vsel %vm564, 1, 0
    %v1589 = vsel %vm565, 1, 0
    %v1590 = vsel %vm566, 1, 0
    %v1591 = vsel %vm567, 1, 0
    %v1592 = vsel %vm568, 1, 0
    %v1593 = vsel %vm569, 1, 0
    %v1594 = vsel %vm570, 1, 0
    %v1595 = vsel %vm571, 1, 0
    %v1596 = vsel %vm572, 1, 0
    %v1597 = vsel %vm573, 1, 0
    %v1598 = vsel %vm574, 1, 0
    %v1599 = vsel %vm575, 1, 0
    %v1600 = vsel %vm576, 1, 0
    %v1601 = vsel %vm577, 1, 0
    %v1602 = vsel %vm578, 1, 0
    %v1603 = vsel %vm579, 1, 0
    %v1604 = vsel %vm580, 1, 0
    %v1605 = vsel %vm581, 1, 0
    %v1606 = vsel %vm582, 1, 0
    %v1607 = vsel %vm583, 1, 0
    %v1608 = vsel %vm584, 1, 0
    %v1609 = vsel %vm585, 1, 0
    %v1610 = vsel %vm586, 1, 0
    %v1611 = vsel %vm587, 1, 0
    %v1612 = vsel %vm588, 1, 0
    %v1613 = vsel %vm589, 1, 0
    %v1614 = vsel %vm590, 1, 0
    %v1615 = vsel %vm591, 1, 0
    %v1616 = vsel %vm592, 1, 0
    %v1617 = vsel %vm593, 1, 0
    %v1618 = vsel %vm594, 1, 0
    %v1619 = vsel %vm595, 1, 0
    %v1620 = vsel %vm596, 1, 0
    %v1621 = vsel %vm597, 1, 0
    %v1622 = vsel %vm598, 1, 0
    %v1623 = vsel %vm599, 1, 0
    %v1624 = vsel %vm600, 1, 0
    %v1625 = vsel %vm601, 1, 0
    %v1626 = vsel %vm602, 1, 0
    %v1627 = vsel %vm603, 1, 0
    %v1628 = vsel %vm604, 1, 0
    %v1629 = vsel %vm605, 1, 0
    %v1630 = vsel %vm606, 1, 0
    %v1631 = vsel %vm607, 1, 0
    %v1632 = vsel %vm608, 1, 0
    %v1633 = vsel %vm609, 1, 0
    %v1634 = vsel %vm610, 1, 0
    %v1635 = vsel %vm611, 1, 0
    %v1636 = vsel %vm612, 1, 0
    %v1637 = vsel %vm613, 1, 0
    %v1638 = vsel %vm614, 1, 0
    %v1639 = vsel %vm615, 1, 0
    %v1640 = vsel %vm616, 1, 0
    %v1641 = vsel %vm617, 1, 0
    %v1642 = vsel %vm618, 1, 0
    %v1643 = vsel %vm619, 1, 0
    %v1644 = vsel %vm620, 1, 0
    %v1645 = vsel %vm621, 1, 0
    %v1646 = vsel %vm622, 1, 0
    %v1647 = vsel %vm623, 1, 0
    %v1648 = vsel %vm624, 1, 0
    %v1649 = vsel %vm625, 1, 0
    %v1650 = vsel %vm626, 1, 0
    %v1651 = vsel %vm627, 1, 0
    %v1652 = vsel %vm628, 1, 0
    %v1653 = vsel %vm629, 1, 0
    %v1654 = vsel %vm630, 1, 0
    %v1655 = vsel %vm631, 1, 0
    %v1656 = vsel %vm632, 1, 0
    %v1657 = vsel %vm633, 1, 0
    %v1658 = vsel %vm634, 1, 0
    %v1659 = vsel %vm635, 1, 0
    %v1660 = vsel %vm636, 1, 0
    %v1661 = vsel %vm637, 1, 0
    %v1662 = vsel %vm638, 1, 0
    %v1663 = vsel %vm639, 1, 0
    %v1664 = vsel %vm640, 1, 0
    %v1665 = vsel %vm641, 1, 0
    %v1666 = vsel %vm642, 1, 0
    %v1667 = vsel %vm643, 1, 0
    %v1668 = vsel %vm644, 1, 0
    %v1669 = vsel %vm645, 1, 0
    %v1670 = vsel %vm646, 1, 0
    %v1671 = vsel %vm647, 1, 0
    %v1672 = vsel %vm648, 1, 0
    %v1673 = vsel %vm649, 1, 0
    %v1674 = vsel %vm650, 1, 0
    %v1675 = vsel %vm651, 1, 0
    %v1676 = vsel %vm652, 1, 0
    %v1677 = vsel %vm653, 1, 0
    %v1678 = vsel %vm654, 1, 0
    %v1679 = vsel %vm655, 1, 0
    %v1680 = vsel %vm656, 1, 0
    %v1681 = vsel %vm657, 1, 0
    %v1682 = vsel %vm658, 1, 0
    %v1683 = vsel %vm659, 1, 0
    %v1684 = vsel %vm660, 1, 0
    %v1685 = vsel %vm661, 1, 0
    %v1686 = vsel %vm662, 1, 0
    %v1687 = vsel %vm663, 1, 0
    %v1688 = vsel %vm664, 1, 0
    %v1689 = vsel %vm665, 1, 0
    %v1690 = vsel %vm666, 1, 0
    %v1691 = vsel %vm667, 1, 0
    %v1692 = vsel %vm668, 1, 0
    %v1693 = vsel %vm669, 1, 0
    %v1694 = vsel %vm670, 1, 0
    %v1695 = vsel %vm671, 1, 0
    %v1696 = vsel %vm672, 1, 0
    %v1697 = vsel %vm673, 1, 0
    %v1698 = vsel %vm674, 1, 0
    %v1699 = vsel %vm675, 1, 0
    %v1700 = vsel %vm676, 1, 0
    %v1701 = vsel %vm677, 1, 0
    %v1702 = vsel %vm678, 1, 0
    %v1703 = vsel %vm679, 1, 0
    %v1704 = vsel %vm680, 1, 0
    %v1705 = vsel %vm681, 1, 0
    %v1706 = vsel %vm682, 1, 0
    %v1707 = vsel %vm683, 1, 0
    %v1708 = vsel %vm684, 1, 0
    %v1709 = vsel %vm685, 1, 0
    %v1710 = vsel %vm686, 1, 0
    %v1711 = vsel %vm687, 1, 0
    %v1712 = vsel %vm688, 1, 0
    %v1713 = vsel %vm689, 1, 0
    %v1714 = vsel %vm690, 1, 0
    %v1715 = vsel %vm691, 1, 0
    %v1716 = vsel %vm692, 1, 0
    %v1717 = vsel %vm693, 1, 0
    %v1718 = vsel %vm694, 1, 0
    %v1719 = vsel %vm695, 1, 0
    %v1720 = vsel %vm696, 1, 0
    %v1721 = vsel %vm697, 1, 0
    %v1722 = vsel %vm698, 1, 0
    %v1723 = vsel %vm699, 1, 0
    %v1724 = vsel %vm700, 1, 0
    %v1725 = vsel %vm701, 1, 0
    %v1726 = vsel %vm702, 1, 0
    %v1727 = vsel %vm703, 1, 0
    %v1728 = vsel %vm704, 1, 0
    %v1729 = vsel %vm705, 1, 0
    %v1730 = vsel %vm706, 1, 0
    %v1731 = vsel %vm707, 1, 0
    %v1732 = vsel %vm708, 1, 0
    %v1733 = vsel %vm709, 1, 0
    %v1734 = vsel %vm710, 1, 0
    %v1735 = vsel %vm711, 1, 0
    %v1736 = vsel %vm712, 1, 0
    %v1737 = vsel %vm713, 1, 0
    %v1738 = vsel %vm714, 1, 0
    %v1739 = vsel %vm715, 1, 0
    %v1740 = vsel %vm716, 1, 0
    %v1741 = vsel %vm717, 1, 0
    %v1742 = vsel %vm718, 1, 0
    %v1743 = vsel %vm719, 1, 0
    %v1744 = vsel %vm720, 1, 0
    %v1745 = vsel %vm721, 1, 0
    %v1746 = vsel %vm722, 1, 0
    %v1747 = vsel %vm723, 1, 0
    %v1748 = vsel %vm724, 1, 0
    %v1749 = vsel %vm725, 1, 0
    %v1750 = vsel %vm726, 1, 0
    %v1751 = vsel %vm727, 1, 0
    %v1752 = vsel %vm728, 1, 0
    %v1753 = vsel %vm729, 1, 0
    %v1754 = vsel %vm730, 1, 0
    %v1755 = vsel %vm731, 1, 0
    %v1756 = vsel %vm732, 1, 0
    %v1757 = vsel %vm733, 1, 0
    %v1758 = vsel %vm734, 1, 0
    %v1759 = vsel %vm735, 1, 0
    %v1760 = vsel %vm736, 1, 0
    %v1761 = vsel %vm737, 1, 0
    %v1762 = vsel %vm738, 1, 0
    %v1763 = vsel %vm739, 1, 0
    %v1764 = vsel %vm740, 1, 0
    %v1765 = vsel %vm741, 1, 0
    %v1766 = vsel %vm742, 1, 0
    %v1767 = vsel %vm743, 1, 0
    %v1768 = vsel %vm744, 1, 0
    %v1769 = vsel %vm745, 1, 0
    %v1770 = vsel %vm746, 1, 0
    %v1771 = vsel %vm747, 1, 0
    %v1772 = vsel %vm748, 1, 0
    %v1773 = vsel %vm749, 1, 0
    %v1774 = vsel %vm750, 1, 0
    %v1775 = vsel %vm751, 1, 0
    %v1776 = vsel %vm752, 1, 0
    %v1777 = vsel %vm753, 1, 0
    %v1778 = vsel %vm754, 1, 0
    %v1779 = vsel %vm755, 1, 0
    %v1780 = vsel %vm756, 1, 0
    %v1781 = vsel %vm757, 1, 0
    %v1782 = vsel %vm758, 1, 0
    %v1783 = vsel %vm759, 1, 0
    %v1784 = vsel %vm760, 1, 0
    %v1785 = vsel %vm761, 1, 0
    %v1786 = vsel %vm762, 1, 0
    %v1787 = vsel %vm763, 1, 0
    %v1788 = vsel %vm764, 1, 0
    %v1789 = vsel %vm765, 1, 0
    %v1790 = vsel %vm766, 1, 0
    %v1791 = vsel %vm767, 1, 0
    %v1792 = vsel %vm768, 1, 0
    %v1793 = vsel %vm769, 1, 0
    %v1794 = vsel %vm770, 1, 0
    %v1795 = vsel %vm771, 1, 0
    %v1796 = vsel %vm772, 1, 0
    %v1797 = vsel %vm773, 1, 0
    %v1798 = vsel %vm774, 1, 0
    %v1799 = vsel %vm775, 1, 0
    %v1800 = vsel %vm776, 1, 0
    %v1801 = vsel %vm777, 1, 0
    %v1802 = vsel %vm778, 1, 0
    %v1803 = vsel %vm779, 1, 0
    %v1804 = vsel %vm780, 1, 0
    %v1805 = vsel %vm781, 1, 0
    %v1806 = vsel %vm782, 1, 0
    %v1807 = vsel %vm783, 1, 0
    %v1808 = vsel %vm784, 1, 0
    %v1809 = vsel %vm785, 1, 0
    %v1810 = vsel %vm786, 1, 0
    %v1811 = vsel %vm787, 1, 0
    %v1812 = vsel %vm788, 1, 0
    %v1813 = vsel %vm789, 1, 0
    %v1814 = vsel %vm790, 1, 0
    %v1815 = vsel %vm791, 1, 0
    %v1816 = vsel %vm792, 1, 0
    %v1817 = vsel %vm793, 1, 0
    %v1818 = vsel %vm794, 1, 0
    %v1819 = vsel %vm795, 1, 0
    %v1820 = vsel %vm796, 1, 0
    %v1821 = vsel %vm797, 1, 0
    %v1822 = vsel %vm798, 1, 0
    %v1823 = vsel %vm799, 1, 0
    %v1824 = vsel %vm800, 1, 0
    %v1825 = vsel %vm801, 1, 0
    %v1826 = vsel %vm802, 1, 0
    %v1827 = vsel %vm803, 1, 0
    %v1828 = vsel %vm804, 1, 0
    %v1829 = vsel %vm805, 1, 0
    %v1830 = vsel %vm806, 1, 0
    %v1831 = vsel %vm807, 1, 0
    %v1832 = vsel %vm808, 1, 0
    %v1833 = vsel %vm809, 1, 0
    %v1834 = vsel %vm810, 1, 0
    %v1835 = vsel %vm811, 1, 0
    %v1836 = vsel %vm812, 1, 0
    %v1837 = vsel %vm813, 1, 0
    %v1838 = vsel %vm814, 1, 0
    %v1839 = vsel %vm815, 1, 0
    %v1840 = vsel %vm816, 1, 0
    %v1841 = vsel %vm817, 1, 0
    %v1842 = vsel %vm818, 1, 0
    %v1843 = vsel %vm819, 1, 0
    %v1844 = vsel %vm820, 1, 0
    %v1845 = vsel %vm821, 1, 0
    %v1846 = vsel %vm822, 1, 0
    %v1847 = vsel %vm823, 1, 0
    %v1848 = vsel %vm824, 1, 0
    %v1849 = vsel %vm825, 1, 0
    %v1850 = vsel %vm826, 1, 0
    %v1851 = vsel %vm827, 1, 0
    %v1852 = vsel %vm828, 1, 0
    %v1853 = vsel %vm829, 1, 0
    %v1854 = vsel %vm830, 1, 0
    %v1855 = vsel %vm831, 1, 0
    %v1856 = vsel %vm832, 1, 0
    %v1857 = vsel %vm833, 1, 0
    %v1858 = vsel %vm834, 1, 0
    %v1859 = vsel %vm835, 1, 0
    %v1860 = vsel %vm836, 1, 0
    %v1861 = vsel %vm837, 1, 0
    %v1862 = vsel %vm838, 1, 0
    %v1863 = vsel %vm839, 1, 0
    %v1864 = vsel %vm840, 1, 0
    %v1865 = vsel %vm841, 1, 0
    %v1866 = vsel %vm842, 1, 0
    %v1867 = vsel %vm843, 1, 0
    %v1868 = vsel %vm844, 1, 0
    %v1869 = vsel %vm845, 1, 0
    %v1870 = vsel %vm846, 1, 0
    %v1871 = vsel %vm847, 1, 0
    %v1872 = vsel %vm848, 1, 0
    %v1873 = vsel %vm849, 1, 0
    %v1874 = vsel %vm850, 1, 0
    %v1875 = vsel %vm851, 1, 0
    %v1876 = vsel %vm852, 1, 0
    %v1877 = vsel %vm853, 1, 0
    %v1878 = vsel %vm854, 1, 0
    %v1879 = vsel %vm855, 1, 0
    %v1880 = vsel %vm856, 1, 0
    %v1881 = vsel %vm857, 1, 0
    %v1882 = vsel %vm858, 1, 0
    %v1883 = vsel %vm859, 1, 0
    %v1884 = vsel %vm860, 1, 0
    %v1885 = vsel %vm861, 1, 0
    %v1886 = vsel %vm862, 1, 0
    %v1887 = vsel %vm863, 1, 0
    %v1888 = vsel %vm864, 1, 0
    %v1889 = vsel %vm865, 1, 0
    %v1890 = vsel %vm866, 1, 0
    %v1891 = vsel %vm867, 1, 0
    %v1892 = vsel %vm868, 1, 0
    %v1893 = vsel %vm869, 1, 0
    %v1894 = vsel %vm870, 1, 0
    %v1895 = vsel %vm871, 1, 0
    %v1896 = vsel %vm872, 1, 0
    %v1897 = vsel %vm873, 1, 0
    %v1898 = vsel %vm874, 1, 0
    %v1899 = vsel %vm875, 1, 0
    %v1900 = vsel %vm876, 1, 0
    %v1901 = vsel %vm877, 1, 0
    %v1902 = vsel %vm878, 1, 0
    %v1903 = vsel %vm879, 1, 0
    %v1904 = vsel %vm880, 1, 0
    %v1905 = vsel %vm881, 1, 0
    %v1906 = vsel %vm882, 1, 0
    %v1907 = vsel %vm883, 1, 0
    %v1908 = vsel %vm884, 1, 0
    %v1909 = vsel %vm885, 1, 0
    %v1910 = vsel %vm886, 1, 0
    %v1911 = vsel %vm887, 1, 0
    %v1912 = vsel %vm888, 1, 0
    %v1913 = vsel %vm889, 1, 0
    %v1914 = vsel %vm890, 1, 0
    %v1915 = vsel %vm891, 1, 0
    %v1916 = vsel %vm892, 1, 0
    %v1917 = vsel %vm893, 1, 0
    %v1918 = vsel %vm894, 1, 0
    %v1919 = vsel %vm895, 1, 0
    %v1920 = vsel %vm896, 1, 0
    %v1921 = vsel %vm897, 1, 0
    %v1922 = vsel %vm898, 1, 0
    %v1923 = vsel %vm899, 1, 0
    %v1924 = vsel %vm900, 1, 0
    %v1925 = vsel %vm901, 1, 0
    %v1926 = vsel %vm902, 1, 0
    %v1927 = vsel %vm903, 1, 0
    %v1928 = vsel %vm904, 1, 0
    %v1929 = vsel %vm905, 1, 0
    %v1930 = vsel %vm906, 1, 0
    %v1931 = vsel %vm907, 1, 0
    %v1932 = vsel %vm908, 1, 0
    %v1933 = vsel %vm909, 1, 0
    %v1934 = vsel %vm910, 1, 0
    %v1935 = vsel %vm911, 1, 0
    %v1936 = vsel %vm912, 1, 0
    %v1937 = vsel %vm913, 1, 0
    %v1938 = vsel %vm914, 1, 0
    %v1939 = vsel %vm915, 1, 0
    %v1940 = vsel %vm916, 1, 0
    %v1941 = vsel %vm917, 1, 0
    %v1942 = vsel %vm918, 1, 0
    %v1943 = vsel %vm919, 1, 0
    %v1944 = vsel %vm920, 1, 0
    %v1945 = vsel %vm921, 1, 0
    %v1946 = vsel %vm922, 1, 0
    %v1947 = vsel %vm923, 1, 0
    %v1948 = vsel %vm924, 1, 0
    %v1949 = vsel %vm925, 1, 0
    %v1950 = vsel %vm926, 1, 0
    %v1951 = vsel %vm927, 1, 0
    %v1952 = vsel %vm928, 1, 0
    %v1953 = vsel %vm929, 1, 0
    %v1954 = vsel %vm930, 1, 0
    %v1955 = vsel %vm931, 1, 0
    %v1956 = vsel %vm932, 1, 0
    %v1957 = vsel %vm933, 1, 0
    %v1958 = vsel %vm934, 1, 0
    %v1959 = vsel %vm935, 1, 0
    %v1960 = vsel %vm936, 1, 0
    %v1961 = vsel %vm937, 1, 0
    %v1962 = vsel %vm938, 1, 0
    %v1963 = vsel %vm939, 1, 0
    %v1964 = vsel %vm940, 1, 0
    %v1965 = vsel %vm941, 1, 0
    %v1966 = vsel %vm942, 1, 0
    %v1967 = vsel %vm943, 1, 0
    %v1968 = vsel %vm944, 1, 0
    %v1969 = vsel %vm945, 1, 0
    %v1970 = vsel %vm946, 1, 0
    %v1971 = vsel %vm947, 1, 0
    %v1972 = vsel %vm948, 1, 0
    %v1973 = vsel %vm949, 1, 0
    %v1974 = vsel %vm950, 1, 0
    %v1975 = vsel %vm951, 1, 0
    %v1976 = vsel %vm952, 1, 0
    %v1977 = vsel %vm953, 1, 0
    %v1978 = vsel %vm954, 1, 0
    %v1979 = vsel %vm955, 1, 0
    %v1980 = vsel %vm956, 1, 0
    %v1981 = vsel %vm957, 1, 0
    %v1982 = vsel %vm958, 1, 0
    %v1983 = vsel %vm959, 1, 0
    %v1984 = vsel %vm960, 1, 0
    %v1985 = vsel %vm961, 1, 0
    %v1986 = vsel %vm962, 1, 0
    %v1987 = vsel %vm963, 1, 0
    %v1988 = vsel %vm964, 1, 0
    %v1989 = vsel %vm965, 1, 0
    %v1990 = vsel %vm966, 1, 0
    %v1991 = vsel %vm967, 1, 0
    %v1992 = vsel %vm968, 1, 0
    %v1993 = vsel %vm969, 1, 0
    %v1994 = vsel %vm970, 1, 0
    %v1995 = vsel %vm971, 1, 0
    %v1996 = vsel %vm972, 1, 0
    %v1997 = vsel %vm973, 1, 0
    %v1998 = vsel %vm974, 1, 0
    %v1999 = vsel %vm975, 1, 0
    %v2000 = vsel %vm976, 1, 0
    %v2001 = vsel %vm977, 1, 0
    %v2002 = vsel %vm978, 1, 0
    %v2003 = vsel %vm979, 1, 0
    %v2004 = vsel %vm980, 1, 0
    %v2005 = vsel %vm981, 1, 0
    %v2006 = vsel %vm982, 1, 0
    %v2007 = vsel %vm983, 1, 0
    %v2008 = vsel %vm984, 1, 0
    %v2009 = vsel %vm985, 1, 0
    %v2010 = vsel %vm986, 1, 0
    %v2011 = vsel %vm987, 1, 0
    %v2012 = vsel %vm988, 1, 0
    %v2013 = vsel %vm989, 1, 0
    %v2014 = vsel %vm990, 1, 0
    %v2015 = vsel %vm991, 1, 0
    %v2016 = vsel %vm992, 1, 0
    %v2017 = vsel %vm993, 1, 0
    %v2018 = vsel %vm994, 1, 0
    %v2019 = vsel %vm995, 1, 0
    %v2020 = vsel %vm996, 1, 0
    %v2021 = vsel %vm997, 1, 0
    %v2022 = vsel %vm998, 1, 0
    %v2023 = vsel %vm999, 1, 0
    %v2024 = vsel %vm1000, 1, 0
    %v2025 = vsel %vm1001, 1, 0
    %v2026 = vsel %vm1002, 1, 0
    %v2027 = vsel %vm1003, 1, 0
    %v2028 = vsel %vm1004, 1, 0
    %v2029 = vsel %vm1005, 1, 0
    %v2030 = vsel %vm1006, 1, 0
    %v2031 = vsel %vm1007, 1, 0
    %v2032 = vsel %vm1008, 1, 0
    %v2033 = vsel %vm1009, 1, 0
    %v2034 = vsel %vm1010, 1, 0
    %v2035 = vsel %vm1011, 1, 0
    %v2036 = vsel %vm1012, 1, 0
    %v2037 = vsel %vm1013, 1, 0
    %v2038 = vsel %vm1014, 1, 0
    %v2039 = vsel %vm1015, 1, 0
    %v2040 = vsel %vm1016, 1, 0
    %v2041 = vsel %vm1017, 1, 0
    %v2042 = vsel %vm1018, 1, 0
    %v2043 = vsel %vm1019, 1, 0
    %v2044 = vsel %vm1020, 1, 0
    %v2045 = vsel %vm1021, 1, 0
    %v2046 = vsel %vm1022, 1, 0
    %v2047 = vsel %vm1023, 1, 0
    %v2048 = vsel %vm1024, 1, 0
    %v2049 = vsel %vm1025, 1, 0
    %v2050 = vsel %vm1026, 1, 0
    %v2051 = vsel %vm1027, 1, 0
    %v2052 = vsel %vm1028, 1, 0
    %v2053 = vsel %vm1029, 1, 0
    %v2054 = vsel %vm1030, 1, 0
    %v2055 = vsel %vm1031, 1, 0
    %v2056 = vsel %vm1032, 1, 0
    %v2057 = vsel %vm1033, 1, 0
    %v2058 = vsel %vm1034, 1, 0
    %v2059 = vsel %vm1035, 1, 0
    %v2060 = vsel %vm1036, 1, 0
    %v2061 = vsel %vm1037, 1, 0
    %v2062 = vsel %vm1038, 1, 0
    %v2063 = vsel %vm1039, 1, 0
    %v2064 = vsel %vm1040, 1, 0
    %v2065 = vsel %vm1041, 1, 0
    %v2066 = vsel %vm1042, 1, 0
    %v2067 = vsel %vm1043, 1, 0
    %v2068 = vsel %vm1044, 1, 0
    %v2069 = vsel %vm1045, 1, 0
    %v2070 = vsel %vm1046, 1, 0
    %v2071 = vsel %vm1047, 1, 0
    %v2072 = vsel %vm1048, 1, 0
    %v2073 = vsel %vm1049, 1, 0
    %v2074 = vsel %vm1050, 1, 0
    %v2075 = vsel %vm1051, 1, 0
    %v2076 = vsel %vm1052, 1, 0
    %v2077 = vsel %vm1053, 1, 0
    %v2078 = vsel %vm1054, 1, 0
    %v2079 = vsel %vm1055, 1, 0
    %v2080 = vsel %vm1056, 1, 0
    %v2081 = vsel %vm1057, 1, 0
    %v2082 = vsel %vm1058, 1, 0
    %v2083 = vsel %vm1059, 1, 0
    %v2084 = vsel %vm1060, 1, 0
    %v2085 = vsel %vm1061, 1, 0
    %v2086 = vsel %vm1062, 1, 0
    %v2087 = vsel %vm1063, 1, 0
    %v2088 = vsel %vm1064, 1, 0
    %v2089 = vsel %vm1065, 1, 0
    %v2090 = vsel %vm1066, 1, 0
    %v2091 = vsel %vm1067, 1, 0
    %v2092 = vsel %vm1068, 1, 0
    %v2093 = vsel %vm1069, 1, 0
    %v2094 = vsel %vm1070, 1, 0
    %v2095 = vsel %vm1071, 1, 0
    %v2096 = vsel %vm1072, 1, 0
    %v2097 = vsel %vm1073, 1, 0
    %v2098 = vsel %vm1074, 1, 0
    %v2099 = vsel %vm1075, 1, 0
    %v2100 = vsel %vm1076, 1, 0
    %v2101 = vsel %vm1077, 1, 0
    %v2102 = vsel %vm1078, 1, 0
    %v2103 = vsel %vm1079, 1, 0
    %v2104 = vsel %vm1080, 1, 0
    %v2105 = vsel %vm1081, 1, 0
    %v2106 = vsel %vm1082, 1, 0
    %v2107 = vsel %vm1083, 1, 0
    %v2108 = vsel %vm1084, 1, 0
    %v2109 = vsel %vm1085, 1, 0
    %v2110 = vsel %vm1086, 1, 0
    %v2111 = vsel %vm1087, 1, 0
    %v2112 = vsel %vm1088, 1, 0
    %v2113 = vsel %vm1089, 1, 0
    %v2114 = vsel %vm1090, 1, 0
    %v2115 = vsel %vm1091, 1, 0
    %v2116 = vsel %vm1092, 1, 0
    %v2117 = vsel %vm1093, 1, 0
    %v2118 = vsel %vm1094, 1, 0
    %v2119 = vsel %vm1095, 1, 0
    %v2120 = vsel %vm1096, 1, 0
    %v2121 = vsel %vm1097, 1, 0
    %v2122 = vsel %vm1098, 1, 0
    %v2123 = vsel %vm1099, 1, 0
    %v2124 = vsel %vm1100, 1, 0
    %v2125 = vsel %vm1101, 1, 0
    %v2126 = vsel %vm1102, 1, 0
    %v2127 = vsel %vm1103, 1, 0
    %v2128 = vsel %vm1104, 1, 0
    %v2129 = vsel %vm1105, 1, 0
    %v2130 = vsel %vm1106, 1, 0
    %v2131 = vsel %vm1107, 1, 0
    %v2132 = vsel %vm1108, 1, 0
    %v2133 = vsel %vm1109, 1, 0
    %v2134 = vsel %vm1110, 1, 0
    %v2135 = vsel %vm1111, 1, 0
    %v2136 = vsel %vm1112, 1, 0
    %v2137 = vsel %vm1113, 1, 0
    %v2138 = vsel %vm1114, 1, 0
    %v2139 = vsel %vm1115, 1, 0
    %v2140 = vsel %vm1116, 1, 0
    %v2141 = vsel %vm1117, 1, 0
    %v2142 = vsel %vm1118, 1, 0
    %v2143 = vsel %vm1119, 1, 0
    %v2144 = vsel %vm1120, 1, 0
    %v2145 = vsel %vm1121, 1, 0
    %v2146 = vsel %vm1122, 1, 0
    %v2147 = vsel %vm1123, 1, 0
    %v2148 = vsel %vm1124, 1, 0
    %v2149 = vsel %vm1125, 1, 0
    %v2150 = vsel %vm1126, 1, 0
    %v2151 = vsel %vm1127, 1, 0
    %v2152 = vsel %vm1128, 1, 0
    %v2153 = vsel %vm1129, 1, 0
    %v2154 = vsel %vm1130, 1, 0
    %v2155 = vsel %vm1131, 1, 0
    %v2156 = vsel %vm1132, 1, 0
    %v2157 = vsel %vm1133, 1, 0
    %v2158 = vsel %vm1134, 1, 0
    %v2159 = vsel %vm1135, 1, 0
    %v2160 = vsel %vm1136, 1, 0
    %v2161 = vsel %vm1137, 1, 0
    %v2162 = vsel %vm1138, 1, 0
    %v2163 = vsel %vm1139, 1, 0
    %v2164 = vsel %vm1140, 1, 0
    %v2165 = vsel %vm1141, 1, 0
    %v2166 = vsel %vm1142, 1, 0
    %v2167 = vsel %vm1143, 1, 0
    %v2168 = vsel %vm1144, 1, 0
    %v2169 = vsel %vm1145, 1, 0
    %v2170 = vsel %vm1146, 1, 0
    %v2171 = vsel %vm1147, 1, 0
    %v2172 = vsel %vm1148, 1, 0
    %v2173 = vsel %vm1149, 1, 0
    %v2174 = vsel %vm1150, 1, 0
    %v2175 = vsel %vm1151, 1, 0
    %v2176 = vsel %vm1152, 1, 0
    %v2177 = vsel %vm1153, 1, 0
    %v2178 = vsel %vm1154, 1, 0
    %v2179 = vsel %vm1155, 1, 0
    %v2180 = vsel %vm1156, 1, 0
    %v2181 = vsel %vm1157, 1, 0
    %v2182 = vsel %vm1158, 1, 0
    %v2183 = vsel %vm1159, 1, 0
    %v2184 = vsel %vm1160, 1, 0
    %v2185 = vsel %vm1161, 1, 0
    %v2186 = vsel %vm1162, 1, 0
    %v2187 = vsel %vm1163, 1, 0
    %v2188 = vsel %vm1164, 1, 0
    %v2189 = vsel %vm1165, 1, 0
    %v2190 = vsel %vm1166, 1, 0
    %v2191 = vsel %vm1167, 1, 0
    %v2192 = vsel %vm1168, 1, 0
    %v2193 = vsel %vm1169, 1, 0
    %v2194 = vsel %vm1170, 1, 0
    %v2195 = vsel %vm1171, 1, 0
    %v2196 = vsel %vm1172, 1, 0
    %v2197 = vsel %vm1173, 1, 0
    %v2198 = vsel %vm1174, 1, 0
    %v2199 = vsel %vm1175, 1, 0
    %v2200 = vsel %vm1176, 1, 0
    %v2201 = vsel %vm1177, 1, 0
    %v2202 = vsel %vm1178, 1, 0
    %v2203 = vsel %vm1179, 1, 0
    %v2204 = vsel %vm1180, 1, 0
    %v2205 = vsel %vm1181, 1, 0
    %v2206 = vsel %vm1182, 1, 0
    %v2207 = vsel %vm1183, 1, 0
    %v2208 = vsel %vm1184, 1, 0
    %v2209 = vsel %vm1185, 1, 0
    %v2210 = vsel %vm1186, 1, 0
    %v2211 = vsel %vm1187, 1, 0
    %v2212 = vsel %vm1188, 1, 0
    %v2213 = vsel %vm1189, 1, 0
    %v2214 = vsel %vm1190, 1, 0
    %v2215 = vsel %vm1191, 1, 0
    %v2216 = vsel %vm1192, 1, 0
    %v2217 = vsel %vm1193, 1, 0
    %v2218 = vsel %vm1194, 1, 0
    %v2219 = vsel %vm1195, 1, 0
    %v2220 = vsel %vm1196, 1, 0
    %v2221 = vsel %vm1197, 1, 0
    %v2222 = vsel %vm1198, 1, 0
    %v2223 = vsel %vm1199, 1, 0
    %v2224 = vsel %vm1200, 1, 0
    %v2225 = vsel %vm1201, 1, 0
    %v2226 = vsel %vm1202, 1, 0
    %v2227 = vsel %vm1203, 1, 0
    %v2228 = vsel %vm1204, 1, 0
    %v2229 = vsel %vm1205, 1, 0
    %v2230 = vsel %vm1206, 1, 0
    %v2231 = vsel %vm1207, 1, 0
    %v2232 = vsel %vm1208, 1, 0
    %v2233 = vsel %vm1209, 1, 0
    %v2234 = vsel %vm1210, 1, 0
    %v2235 = vsel %vm1211, 1, 0
    %v2236 = vsel %vm1212, 1, 0
    %v2237 = vsel %vm1213, 1, 0
    %v2238 = vsel %vm1214, 1, 0
    %v2239 = vsel %vm1215, 1, 0
    %v2240 = vsel %vm1216, 1, 0
    %v2241 = vsel %vm1217, 1, 0
    %v2242 = vsel %vm1218, 1, 0
    %v2243 = vsel %vm1219, 1, 0
    %v2244 = vsel %vm1220, 1, 0
    %v2245 = vsel %vm1221, 1, 0
    %v2246 = vsel %vm1222, 1, 0
    %v2247 = vsel %vm1223, 1, 0
    %v2248 = vsel %vm1224, 1, 0
    %v2249 = vcvt.s32.f32 %v1225
    %v2250 = vcvt.s32.f32 %v1226
    %v2251 = vcvt.s32.f32 %v1227
    %v2252 = vcvt.s32.f32 %v1228
    %v2253 = vcvt.s32.f32 %v1229
    %v2254 = vcvt.s32.f32 %v1230
    %v2255 = vcvt.s32.f32 %v1231
    %v2256 = vcvt.s32.f32 %v1232
    %v2257 = vcvt.s32.f32 %v1233
    %v2258 = vcvt.s32.f32 %v1234
    %v2259 = vcvt.s32.f32 %v1235
    %v2260 = vcvt.s32.f32 %v1236
    %v2261 = vcvt.s32.f32 %v1237
    %v2262 = vcvt.s32.f32 %v1238
    %v2263 = vcvt.s32.f32 %v1239
    %v2264 = vcvt.s32.f32 %v1240
    %v2265 = vcvt.s32.f32 %v1241
    %v2266 = vcvt.s32.f32 %v1242
    %v2267 = vcvt.s32.f32 %v1243
    %v2268 = vcvt.s32.f32 %v1244
    %v2269 = vcvt.s32.f32 %v1245
    %v2270 = vcvt.s32.f32 %v1246
    %v2271 = vcvt.s32.f32 %v1247
    %v2272 = vcvt.s32.f32 %v1248
    %v2273 = vcvt.s32.f32 %v1249
    %v2274 = vcvt.s32.f32 %v1250
    %v2275 = vcvt.s32.f32 %v1251
    %v2276 = vcvt.s32.f32 %v1252
    %v2277 = vcvt.s32.f32 %v1253
    %v2278 = vcvt.s32.f32 %v1254
    %v2279 = vcvt.s32.f32 %v1255
    %v2280 = vcvt.s32.f32 %v1256
    %v2281 = vcvt.s32.f32 %v1257
    %v2282 = vcvt.s32.f32 %v1258
    %v2283 = vcvt.s32.f32 %v1259
    %v2284 = vcvt.s32.f32 %v1260
    %v2285 = vcvt.s32.f32 %v1261
    %v2286 = vcvt.s32.f32 %v1262
    %v2287 = vcvt.s32.f32 %v1263
    %v2288 = vcvt.s32.f32 %v1264
    %v2289 = vcvt.s32.f32 %v1265
    %v2290 = vcvt.s32.f32 %v1266
    %v2291 = vcvt.s32.f32 %v1267
    %v2292 = vcvt.s32.f32 %v1268
    %v2293 = vcvt.s32.f32 %v1269
    %v2294 = vcvt.s32.f32 %v1270
    %v2295 = vcvt.s32.f32 %v1271
    %v2296 = vcvt.s32.f32 %v1272
    %v2297 = vcvt.s32.f32 %v1273
    %v2298 = vcvt.s32.f32 %v1274
    %v2299 = vcvt.s32.f32 %v1275
    %v2300 = vcvt.s32.f32 %v1276
    %v2301 = vcvt.s32.f32 %v1277
    %v2302 = vcvt.s32.f32 %v1278
    %v2303 = vcvt.s32.f32 %v1279
    %v2304 = vcvt.s32.f32 %v1280
    %v2305 = vcvt.s32.f32 %v1281
    %v2306 = vcvt.s32.f32 %v1282
    %v2307 = vcvt.s32.f32 %v1283
    %v2308 = vcvt.s32.f32 %v1284
    %v2309 = vcvt.s32.f32 %v1285
    %v2310 = vcvt.s32.f32 %v1286
    %v2311 = vcvt.s32.f32 %v1287
    %v2312 = vcvt.s32.f32 %v1288
    %v2313 = vcvt.s32.f32 %v1289
    %v2314 = vcvt.s32.f32 %v1290
    %v2315 = vcvt.s32.f32 %v1291
    %v2316 = vcvt.s32.f32 %v1292
    %v2317 = vcvt.s32.f32 %v1293
    %v2318 = vcvt.s32.f32 %v1294
    %v2319 = vcvt.s32.f32 %v1295
    %v2320 = vcvt.s32.f32 %v1296
    %v2321 = vcvt.s32.f32 %v1297
    %v2322 = vcvt.s32.f32 %v1298
    %v2323 = vcvt.s32.f32 %v1299
    %v2324 = vcvt.s32.f32 %v1300
    %v2325 = vcvt.s32.f32 %v1301
    %v2326 = vcvt.s32.f32 %v1302
    %v2327 = vcvt.s32.f32 %v1303
    %v2328 = vcvt.s32.f32 %v1304
    %v2329 = vcvt.s32.f32 %v1305
    %v2330 = vcvt.s32.f32 %v1306
    %v2331 = vcvt.s32.f32 %v1307
    %v2332 = vcvt.s32.f32 %v1308
    %v2333 = vcvt.s32.f32 %v1309
    %v2334 = vcvt.s32.f32 %v1310
    %v2335 = vcvt.s32.f32 %v1311
    %v2336 = vcvt.s32.f32 %v1312
    %v2337 = vcvt.s32.f32 %v1313
    %v2338 = vcvt.s32.f32 %v1314
    %v2339 = vcvt.s32.f32 %v1315
    %v2340 = vcvt.s32.f32 %v1316
    %v2341 = vcvt.s32.f32 %v1317
    %v2342 = vcvt.s32.f32 %v1318
    %v2343 = vcvt.s32.f32 %v1319
    %v2344 = vcvt.s32.f32 %v1320
    %v2345 = vcvt.s32.f32 %v1321
    %v2346 = vcvt.s32.f32 %v1322
    %v2347 = vcvt.s32.f32 %v1323
    %v2348 = vcvt.s32.f32 %v1324
    %v2349 = vcvt.s32.f32 %v1325
    %v2350 = vcvt.s32.f32 %v1326
    %v2351 = vcvt.s32.f32 %v1327
    %v2352 = vcvt.s32.f32 %v1328
    %v2353 = vcvt.s32.f32 %v1329
    %v2354 = vcvt.s32.f32 %v1330
    %v2355 = vcvt.s32.f32 %v1331
    %v2356 = vcvt.s32.f32 %v1332
    %v2357 = vcvt.s32.f32 %v1333
    %v2358 = vcvt.s32.f32 %v1334
    %v2359 = vcvt.s32.f32 %v1335
    %v2360 = vcvt.s32.f32 %v1336
    %v2361 = vcvt.s32.f32 %v1337
    %v2362 = vcvt.s32.f32 %v1338
    %v2363 = vcvt.s32.f32 %v1339
    %v2364 = vcvt.s32.f32 %v1340
    %v2365 = vcvt.s32.f32 %v1341
    %v2366 = vcvt.s32.f32 %v1342
    %v2367 = vcvt.s32.f32 %v1343
    %v2368 = vcvt.s32.f32 %v1344
    %v2369 = vcvt.s32.f32 %v1345
    %v2370 = vcvt.s32.f32 %v1346
    %v2371 = vcvt.s32.f32 %v1347
    %v2372 = vcvt.s32.f32 %v1348
    %v2373 = vcvt.s32.f32 %v1349
    %v2374 = vcvt.s32.f32 %v1350
    %v2375 = vcvt.s32.f32 %v1351
    %v2376 = vcvt.s32.f32 %v1352
    %v2377 = vcvt.s32.f32 %v1353
    %v2378 = vcvt.s32.f32 %v1354
    %v2379 = vcvt.s32.f32 %v1355
    %v2380 = vcvt.s32.f32 %v1356
    %v2381 = vcvt.s32.f32 %v1357
    %v2382 = vcvt.s32.f32 %v1358
    %v2383 = vcvt.s32.f32 %v1359
    %v2384 = vcvt.s32.f32 %v1360
    %v2385 = vcvt.s32.f32 %v1361
    %v2386 = vcvt.s32.f32 %v1362
    %v2387 = vcvt.s32.f32 %v1363
    %v2388 = vcvt.s32.f32 %v1364
    %v2389 = vcvt.s32.f32 %v1365
    %v2390 = vcvt.s32.f32 %v1366
    %v2391 = vcvt.s32.f32 %v1367
    %v2392 = vcvt.s32.f32 %v1368
    %v2393 = vcvt.s32.f32 %v1369
    %v2394 = vcvt.s32.f32 %v1370
    %v2395 = vcvt.s32.f32 %v1371
    %v2396 = vcvt.s32.f32 %v1372
    %v2397 = vcvt.s32.f32 %v1373
    %v2398 = vcvt.s32.f32 %v1374
    %v2399 = vcvt.s32.f32 %v1375
    %v2400 = vcvt.s32.f32 %v1376
    %v2401 = vcvt.s32.f32 %v1377
    %v2402 = vcvt.s32.f32 %v1378
    %v2403 = vcvt.s32.f32 %v1379
    %v2404 = vcvt.s32.f32 %v1380
    %v2405 = vcvt.s32.f32 %v1381
    %v2406 = vcvt.s32.f32 %v1382
    %v2407 = vcvt.s32.f32 %v1383
    %v2408 = vcvt.s32.f32 %v1384
    %v2409 = vcvt.s32.f32 %v1385
    %v2410 = vcvt.s32.f32 %v1386
    %v2411 = vcvt.s32.f32 %v1387
    %v2412 = vcvt.s32.f32 %v1388
    %v2413 = vcvt.s32.f32 %v1389
    %v2414 = vcvt.s32.f32 %v1390
    %v2415 = vcvt.s32.f32 %v1391
    %v2416 = vcvt.s32.f32 %v1392
    %v2417 = vcvt.s32.f32 %v1393
    %v2418 = vcvt.s32.f32 %v1394
    %v2419 = vcvt.s32.f32 %v1395
    %v2420 = vcvt.s32.f32 %v1396
    %v2421 = vcvt.s32.f32 %v1397
    %v2422 = vcvt.s32.f32 %v1398
    %v2423 = vcvt.s32.f32 %v1399
    %v2424 = vcvt.s32.f32 %v1400
    %v2425 = vcvt.s32.f32 %v1401
    %v2426 = vcvt.s32.f32 %v1402
    %v2427 = vcvt.s32.f32 %v1403
    %v2428 = vcvt.s32.f32 %v1404
    %v2429 = vcvt.s32.f32 %v1405
    %v2430 = vcvt.s32.f32 %v1406
    %v2431 = vcvt.s32.f32 %v1407
    %v2432 = vcvt.s32.f32 %v1408
    %v2433 = vcvt.s32.f32 %v1409
    %v2434 = vcvt.s32.f32 %v1410
    %v2435 = vcvt.s32.f32 %v1411
    %v2436 = vcvt.s32.f32 %v1412
    %v2437 = vcvt.s32.f32 %v1413
    %v2438 = vcvt.s32.f32 %v1414
    %v2439 = vcvt.s32.f32 %v1415
    %v2440 = vcvt.s32.f32 %v1416
    %v2441 = vcvt.s32.f32 %v1417
    %v2442 = vcvt.s32.f32 %v1418
    %v2443 = vcvt.s32.f32 %v1419
    %v2444 = vcvt.s32.f32 %v1420
    %v2445 = vcvt.s32.f32 %v1421
    %v2446 = vcvt.s32.f32 %v1422
    %v2447 = vcvt.s32.f32 %v1423
    %v2448 = vcvt.s32.f32 %v1424
    %v2449 = vcvt.s32.f32 %v1425
    %v2450 = vcvt.s32.f32 %v1426
    %v2451 = vcvt.s32.f32 %v1427
    %v2452 = vcvt.s32.f32 %v1428
    %v2453 = vcvt.s32.f32 %v1429
    %v2454 = vcvt.s32.f32 %v1430
    %v2455 = vcvt.s32.f32 %v1431
    %v2456 = vcvt.s32.f32 %v1432
    %v2457 = vcvt.s32.f32 %v1433
    %v2458 = vcvt.s32.f32 %v1434
    %v2459 = vcvt.s32.f32 %v1435
    %v2460 = vcvt.s32.f32 %v1436
    %v2461 = vcvt.s32.f32 %v1437
    %v2462 = vcvt.s32.f32 %v1438
    %v2463 = vcvt.s32.f32 %v1439
    %v2464 = vcvt.s32.f32 %v1440
    %v2465 = vcvt.s32.f32 %v1441
    %v2466 = vcvt.s32.f32 %v1442
    %v2467 = vcvt.s32.f32 %v1443
    %v2468 = vcvt.s32.f32 %v1444
    %v2469 = vcvt.s32.f32 %v1445
    %v2470 = vcvt.s32.f32 %v1446
    %v2471 = vcvt.s32.f32 %v1447
    %v2472 = vcvt.s32.f32 %v1448
    %v2473 = vcvt.s32.f32 %v1449
    %v2474 = vcvt.s32.f32 %v1450
    %v2475 = vcvt.s32.f32 %v1451
    %v2476 = vcvt.s32.f32 %v1452
    %v2477 = vcvt.s32.f32 %v1453
    %v2478 = vcvt.s32.f32 %v1454
    %v2479 = vcvt.s32.f32 %v1455
    %v2480 = vcvt.s32.f32 %v1456
    %v2481 = vcvt.s32.f32 %v1457
    %v2482 = vcvt.s32.f32 %v1458
    %v2483 = vcvt.s32.f32 %v1459
    %v2484 = vcvt.s32.f32 %v1460
    %v2485 = vcvt.s32.f32 %v1461
    %v2486 = vcvt.s32.f32 %v1462
    %v2487 = vcvt.s32.f32 %v1463
    %v2488 = vcvt.s32.f32 %v1464
    %v2489 = vcvt.s32.f32 %v1465
    %v2490 = vcvt.s32.f32 %v1466
    %v2491 = vcvt.s32.f32 %v1467
    %v2492 = vcvt.s32.f32 %v1468
    %v2493 = vcvt.s32.f32 %v1469
    %v2494 = vcvt.s32.f32 %v1470
    %v2495 = vcvt.s32.f32 %v1471
    %v2496 = vcvt.s32.f32 %v1472
    %v2497 = vcvt.s32.f32 %v1473
    %v2498 = vcvt.s32.f32 %v1474
    %v2499 = vcvt.s32.f32 %v1475
    %v2500 = vcvt.s32.f32 %v1476
    %v2501 = vcvt.s32.f32 %v1477
    %v2502 = vcvt.s32.f32 %v1478
    %v2503 = vcvt.s32.f32 %v1479
    %v2504 = vcvt.s32.f32 %v1480
    %v2505 = vcvt.s32.f32 %v1481
    %v2506 = vcvt.s32.f32 %v1482
    %v2507 = vcvt.s32.f32 %v1483
    %v2508 = vcvt.s32.f32 %v1484
    %v2509 = vcvt.s32.f32 %v1485
    %v2510 = vcvt.s32.f32 %v1486
    %v2511 = vcvt.s32.f32 %v1487
    %v2512 = vcvt.s32.f32 %v1488
    %v2513 = vcvt.s32.f32 %v1489
    %v2514 = vcvt.s32.f32 %v1490
    %v2515 = vcvt.s32.f32 %v1491
    %v2516 = vcvt.s32.f32 %v1492
    %v2517 = vcvt.s32.f32 %v1493
    %v2518 = vcvt.s32.f32 %v1494
    %v2519 = vcvt.s32.f32 %v1495
    %v2520 = vcvt.s32.f32 %v1496
    %v2521 = vcvt.s32.f32 %v1497
    %v2522 = vcvt.s32.f32 %v1498
    %v2523 = vcvt.s32.f32 %v1499
    %v2524 = vcvt.s32.f32 %v1500
    %v2525 = vcvt.s32.f32 %v1501
    %v2526 = vcvt.s32.f32 %v1502
    %v2527 = vcvt.s32.f32 %v1503
    %v2528 = vcvt.s32.f32 %v1504
    %v2529 = vcvt.s32.f32 %v1505
    %v2530 = vcvt.s32.f32 %v1506
    %v2531 = vcvt.s32.f32 %v1507
    %v2532 = vcvt.s32.f32 %v1508
    %v2533 = vcvt.s32.f32 %v1509
    %v2534 = vcvt.s32.f32 %v1510
    %v2535 = vcvt.s32.f32 %v1511
    %v2536 = vcvt.s32.f32 %v1512
    %v2537 = vcvt.s32.f32 %v1513
    %v2538 = vcvt.s32.f32 %v1514
    %v2539 = vcvt.s32.f32 %v1515
    %v2540 = vcvt.s32.f32 %v1516
    %v2541 = vcvt.s32.f32 %v1517
    %v2542 = vcvt.s32.f32 %v1518
    %v2543 = vcvt.s32.f32 %v1519
    %v2544 = vcvt.s32.f32 %v1520
    %v2545 = vcvt.s32.f32 %v1521
    %v2546 = vcvt.s32.f32 %v1522
    %v2547 = vcvt.s32.f32 %v1523
    %v2548 = vcvt.s32.f32 %v1524
    %v2549 = vcvt.s32.f32 %v1525
    %v2550 = vcvt.s32.f32 %v1526
    %v2551 = vcvt.s32.f32 %v1527
    %v2552 = vcvt.s32.f32 %v1528
    %v2553 = vcvt.s32.f32 %v1529
    %v2554 = vcvt.s32.f32 %v1530
    %v2555 = vcvt.s32.f32 %v1531
    %v2556 = vcvt.s32.f32 %v1532
    %v2557 = vcvt.s32.f32 %v1533
    %v2558 = vcvt.s32.f32 %v1534
    %v2559 = vcvt.s32.f32 %v1535
    %v2560 = vcvt.s32.f32 %v1536
    %v2561 = vcvt.s32.f32 %v1537
    %v2562 = vcvt.s32.f32 %v1538
    %v2563 = vcvt.s32.f32 %v1539
    %v2564 = vcvt.s32.f32 %v1540
    %v2565 = vcvt.s32.f32 %v1541
    %v2566 = vcvt.s32.f32 %v1542
    %v2567 = vcvt.s32.f32 %v1543
    %v2568 = vcvt.s32.f32 %v1544
    %v2569 = vcvt.s32.f32 %v1545
    %v2570 = vcvt.s32.f32 %v1546
    %v2571 = vcvt.s32.f32 %v1547
    %v2572 = vcvt.s32.f32 %v1548
    %v2573 = vcvt.s32.f32 %v1549
    %v2574 = vcvt.s32.f32 %v1550
    %v2575 = vcvt.s32.f32 %v1551
    %v2576 = vcvt.s32.f32 %v1552
    %v2577 = vcvt.s32.f32 %v1553
    %v2578 = vcvt.s32.f32 %v1554
    %v2579 = vcvt.s32.f32 %v1555
    %v2580 = vcvt.s32.f32 %v1556
    %v2581 = vcvt.s32.f32 %v1557
    %v2582 = vcvt.s32.f32 %v1558
    %v2583 = vcvt.s32.f32 %v1559
    %v2584 = vcvt.s32.f32 %v1560
    %v2585 = vcvt.s32.f32 %v1561
    %v2586 = vcvt.s32.f32 %v1562
    %v2587 = vcvt.s32.f32 %v1563
    %v2588 = vcvt.s32.f32 %v1564
    %v2589 = vcvt.s32.f32 %v1565
    %v2590 = vcvt.s32.f32 %v1566
    %v2591 = vcvt.s32.f32 %v1567
    %v2592 = vcvt.s32.f32 %v1568
    %v2593 = vcvt.s32.f32 %v1569
    %v2594 = vcvt.s32.f32 %v1570
    %v2595 = vcvt.s32.f32 %v1571
    %v2596 = vcvt.s32.f32 %v1572
    %v2597 = vcvt.s32.f32 %v1573
    %v2598 = vcvt.s32.f32 %v1574
    %v2599 = vcvt.s32.f32 %v1575
    %v2600 = vcvt.s32.f32 %v1576
    %v2601 = vcvt.s32.f32 %v1577
    %v2602 = vcvt.s32.f32 %v1578
    %v2603 = vcvt.s32.f32 %v1579
    %v2604 = vcvt.s32.f32 %v1580
    %v2605 = vcvt.s32.f32 %v1581
    %v2606 = vcvt.s32.f32 %v1582
    %v2607 = vcvt.s32.f32 %v1583
    %v2608 = vcvt.s32.f32 %v1584
    %v2609 = vcvt.s32.f32 %v1585
    %v2610 = vcvt.s32.f32 %v1586
    %v2611 = vcvt.s32.f32 %v1587
    %v2612 = vcvt.s32.f32 %v1588
    %v2613 = vcvt.s32.f32 %v1589
    %v2614 = vcvt.s32.f32 %v1590
    %v2615 = vcvt.s32.f32 %v1591
    %v2616 = vcvt.s32.f32 %v1592
    %v2617 = vcvt.s32.f32 %v1593
    %v2618 = vcvt.s32.f32 %v1594
    %v2619 = vcvt.s32.f32 %v1595
    %v2620 = vcvt.s32.f32 %v1596
    %v2621 = vcvt.s32.f32 %v1597
    %v2622 = vcvt.s32.f32 %v1598
    %v2623 = vcvt.s32.f32 %v1599
    %v2624 = vcvt.s32.f32 %v1600
    %v2625 = vcvt.s32.f32 %v1601
    %v2626 = vcvt.s32.f32 %v1602
    %v2627 = vcvt.s32.f32 %v1603
    %v2628 = vcvt.s32.f32 %v1604
    %v2629 = vcvt.s32.f32 %v1605
    %v2630 = vcvt.s32.f32 %v1606
    %v2631 = vcvt.s32.f32 %v1607
    %v2632 = vcvt.s32.f32 %v1608
    %v2633 = vcvt.s32.f32 %v1609
    %v2634 = vcvt.s32.f32 %v1610
    %v2635 = vcvt.s32.f32 %v1611
    %v2636 = vcvt.s32.f32 %v1612
    %v2637 = vcvt.s32.f32 %v1613
    %v2638 = vcvt.s32.f32 %v1614
    %v2639 = vcvt.s32.f32 %v1615
    %v2640 = vcvt.s32.f32 %v1616
    %v2641 = vcvt.s32.f32 %v1617
    %v2642 = vcvt.s32.f32 %v1618
    %v2643 = vcvt.s32.f32 %v1619
    %v2644 = vcvt.s32.f32 %v1620
    %v2645 = vcvt.s32.f32 %v1621
    %v2646 = vcvt.s32.f32 %v1622
    %v2647 = vcvt.s32.f32 %v1623
    %v2648 = vcvt.s32.f32 %v1624
    %v2649 = vcvt.s32.f32 %v1625
    %v2650 = vcvt.s32.f32 %v1626
    %v2651 = vcvt.s32.f32 %v1627
    %v2652 = vcvt.s32.f32 %v1628
    %v2653 = vcvt.s32.f32 %v1629
    %v2654 = vcvt.s32.f32 %v1630
    %v2655 = vcvt.s32.f32 %v1631
    %v2656 = vcvt.s32.f32 %v1632
    %v2657 = vcvt.s32.f32 %v1633
    %v2658 = vcvt.s32.f32 %v1634
    %v2659 = vcvt.s32.f32 %v1635
    %v2660 = vcvt.s32.f32 %v1636
    %v2661 = vcvt.s32.f32 %v1637
    %v2662 = vcvt.s32.f32 %v1638
    %v2663 = vcvt.s32.f32 %v1639
    %v2664 = vcvt.s32.f32 %v1640
    %v2665 = vcvt.s32.f32 %v1641
    %v2666 = vcvt.s32.f32 %v1642
    %v2667 = vcvt.s32.f32 %v1643
    %v2668 = vcvt.s32.f32 %v1644
    %v2669 = vcvt.s32.f32 %v1645
    %v2670 = vcvt.s32.f32 %v1646
    %v2671 = vcvt.s32.f32 %v1647
    %v2672 = vcvt.s32.f32 %v1648
    %v2673 = vcvt.s32.f32 %v1649
    %v2674 = vcvt.s32.f32 %v1650
    %v2675 = vcvt.s32.f32 %v1651
    %v2676 = vcvt.s32.f32 %v1652
    %v2677 = vcvt.s32.f32 %v1653
    %v2678 = vcvt.s32.f32 %v1654
    %v2679 = vcvt.s32.f32 %v1655
    %v2680 = vcvt.s32.f32 %v1656
    %v2681 = vcvt.s32.f32 %v1657
    %v2682 = vcvt.s32.f32 %v1658
    %v2683 = vcvt.s32.f32 %v1659
    %v2684 = vcvt.s32.f32 %v1660
    %v2685 = vcvt.s32.f32 %v1661
    %v2686 = vcvt.s32.f32 %v1662
    %v2687 = vcvt.s32.f32 %v1663
    %v2688 = vcvt.s32.f32 %v1664
    %v2689 = vcvt.s32.f32 %v1665
    %v2690 = vcvt.s32.f32 %v1666
    %v2691 = vcvt.s32.f32 %v1667
    %v2692 = vcvt.s32.f32 %v1668
    %v2693 = vcvt.s32.f32 %v1669
    %v2694 = vcvt.s32.f32 %v1670
    %v2695 = vcvt.s32.f32 %v1671
    %v2696 = vcvt.s32.f32 %v1672
    %v2697 = vcvt.s32.f32 %v1673
    %v2698 = vcvt.s32.f32 %v1674
    %v2699 = vcvt.s32.f32 %v1675
    %v2700 = vcvt.s32.f32 %v1676
    %v2701 = vcvt.s32.f32 %v1677
    %v2702 = vcvt.s32.f32 %v1678
    %v2703 = vcvt.s32.f32 %v1679
    %v2704 = vcvt.s32.f32 %v1680
    %v2705 = vcvt.s32.f32 %v1681
    %v2706 = vcvt.s32.f32 %v1682
    %v2707 = vcvt.s32.f32 %v1683
    %v2708 = vcvt.s32.f32 %v1684
    %v2709 = vcvt.s32.f32 %v1685
    %v2710 = vcvt.s32.f32 %v1686
    %v2711 = vcvt.s32.f32 %v1687
    %v2712 = vcvt.s32.f32 %v1688
    %v2713 = vcvt.s32.f32 %v1689
    %v2714 = vcvt.s32.f32 %v1690
    %v2715 = vcvt.s32.f32 %v1691
    %v2716 = vcvt.s32.f32 %v1692
    %v2717 = vcvt.s32.f32 %v1693
    %v2718 = vcvt.s32.f32 %v1694
    %v2719 = vcvt.s32.f32 %v1695
    %v2720 = vcvt.s32.f32 %v1696
    %v2721 = vcvt.s32.f32 %v1697
    %v2722 = vcvt.s32.f32 %v1698
    %v2723 = vcvt.s32.f32 %v1699
    %v2724 = vcvt.s32.f32 %v1700
    %v2725 = vcvt.s32.f32 %v1701
    %v2726 = vcvt.s32.f32 %v1702
    %v2727 = vcvt.s32.f32 %v1703
    %v2728 = vcvt.s32.f32 %v1704
    %v2729 = vcvt.s32.f32 %v1705
    %v2730 = vcvt.s32.f32 %v1706
    %v2731 = vcvt.s32.f32 %v1707
    %v2732 = vcvt.s32.f32 %v1708
    %v2733 = vcvt.s32.f32 %v1709
    %v2734 = vcvt.s32.f32 %v1710
    %v2735 = vcvt.s32.f32 %v1711
    %v2736 = vcvt.s32.f32 %v1712
    %v2737 = vcvt.s32.f32 %v1713
    %v2738 = vcvt.s32.f32 %v1714
    %v2739 = vcvt.s32.f32 %v1715
    %v2740 = vcvt.s32.f32 %v1716
    %v2741 = vcvt.s32.f32 %v1717
    %v2742 = vcvt.s32.f32 %v1718
    %v2743 = vcvt.s32.f32 %v1719
    %v2744 = vcvt.s32.f32 %v1720
    %v2745 = vcvt.s32.f32 %v1721
    %v2746 = vcvt.s32.f32 %v1722
    %v2747 = vcvt.s32.f32 %v1723
    %v2748 = vcvt.s32.f32 %v1724
    %v2749 = vcvt.s32.f32 %v1725
    %v2750 = vcvt.s32.f32 %v1726
    %v2751 = vcvt.s32.f32 %v1727
    %v2752 = vcvt.s32.f32 %v1728
    %v2753 = vcvt.s32.f32 %v1729
    %v2754 = vcvt.s32.f32 %v1730
    %v2755 = vcvt.s32.f32 %v1731
    %v2756 = vcvt.s32.f32 %v1732
    %v2757 = vcvt.s32.f32 %v1733
    %v2758 = vcvt.s32.f32 %v1734
    %v2759 = vcvt.s32.f32 %v1735
    %v2760 = vcvt.s32.f32 %v1736
    %v2761 = vcvt.s32.f32 %v1737
    %v2762 = vcvt.s32.f32 %v1738
    %v2763 = vcvt.s32.f32 %v1739
    %v2764 = vcvt.s32.f32 %v1740
    %v2765 = vcvt.s32.f32 %v1741
    %v2766 = vcvt.s32.f32 %v1742
    %v2767 = vcvt.s32.f32 %v1743
    %v2768 = vcvt.s32.f32 %v1744
    %v2769 = vcvt.s32.f32 %v1745
    %v2770 = vcvt.s32.f32 %v1746
    %v2771 = vcvt.s32.f32 %v1747
    %v2772 = vcvt.s32.f32 %v1748
    %v2773 = vcvt.s32.f32 %v1749
    %v2774 = vcvt.s32.f32 %v1750
    %v2775 = vcvt.s32.f32 %v1751
    %v2776 = vcvt.s32.f32 %v1752
    %v2777 = vcvt.s32.f32 %v1753
    %v2778 = vcvt.s32.f32 %v1754
    %v2779 = vcvt.s32.f32 %v1755
    %v2780 = vcvt.s32.f32 %v1756
    %v2781 = vcvt.s32.f32 %v1757
    %v2782 = vcvt.s32.f32 %v1758
    %v2783 = vcvt.s32.f32 %v1759
    %v2784 = vcvt.s32.f32 %v1760
    %v2785 = vcvt.s32.f32 %v1761
    %v2786 = vcvt.s32.f32 %v1762
    %v2787 = vcvt.s32.f32 %v1763
    %v2788 = vcvt.s32.f32 %v1764
    %v2789 = vcvt.s32.f32 %v1765
    %v2790 = vcvt.s32.f32 %v1766
    %v2791 = vcvt.s32.f32 %v1767
    %v2792 = vcvt.s32.f32 %v1768
    %v2793 = vcvt.s32.f32 %v1769
    %v2794 = vcvt.s32.f32 %v1770
    %v2795 = vcvt.s32.f32 %v1771
    %v2796 = vcvt.s32.f32 %v1772
    %v2797 = vcvt.s32.f32 %v1773
    %v2798 = vcvt.s32.f32 %v1774
    %v2799 = vcvt.s32.f32 %v1775
    %v2800 = vcvt.s32.f32 %v1776
    %v2801 = vcvt.s32.f32 %v1777
    %v2802 = vcvt.s32.f32 %v1778
    %v2803 = vcvt.s32.f32 %v1779
    %v2804 = vcvt.s32.f32 %v1780
    %v2805 = vcvt.s32.f32 %v1781
    %v2806 = vcvt.s32.f32 %v1782
    %v2807 = vcvt.s32.f32 %v1783
    %v2808 = vcvt.s32.f32 %v1784
    %v2809 = vcvt.s32.f32 %v1785
    %v2810 = vcvt.s32.f32 %v1786
    %v2811 = vcvt.s32.f32 %v1787
    %v2812 = vcvt.s32.f32 %v1788
    %v2813 = vcvt.s32.f32 %v1789
    %v2814 = vcvt.s32.f32 %v1790
    %v2815 = vcvt.s32.f32 %v1791
    %v2816 = vcvt.s32.f32 %v1792
    %v2817 = vcvt.s32.f32 %v1793
    %v2818 = vcvt.s32.f32 %v1794
    %v2819 = vcvt.s32.f32 %v1795
    %v2820 = vcvt.s32.f32 %v1796
    %v2821 = vcvt.s32.f32 %v1797
    %v2822 = vcvt.s32.f32 %v1798
    %v2823 = vcvt.s32.f32 %v1799
    %v2824 = vcvt.s32.f32 %v1800
    %v2825 = vcvt.s32.f32 %v1801
    %v2826 = vcvt.s32.f32 %v1802
    %v2827 = vcvt.s32.f32 %v1803
    %v2828 = vcvt.s32.f32 %v1804
    %v2829 = vcvt.s32.f32 %v1805
    %v2830 = vcvt.s32.f32 %v1806
    %v2831 = vcvt.s32.f32 %v1807
    %v2832 = vcvt.s32.f32 %v1808
    %v2833 = vcvt.s32.f32 %v1809
    %v2834 = vcvt.s32.f32 %v1810
    %v2835 = vcvt.s32.f32 %v1811
    %v2836 = vcvt.s32.f32 %v1812
    %v2837 = vcvt.s32.f32 %v1813
    %v2838 = vcvt.s32.f32 %v1814
    %v2839 = vcvt.s32.f32 %v1815
    %v2840 = vcvt.s32.f32 %v1816
    %v2841 = vcvt.s32.f32 %v1817
    %v2842 = vcvt.s32.f32 %v1818
    %v2843 = vcvt.s32.f32 %v1819
    %v2844 = vcvt.s32.f32 %v1820
    %v2845 = vcvt.s32.f32 %v1821
    %v2846 = vcvt.s32.f32 %v1822
    %v2847 = vcvt.s32.f32 %v1823
    %v2848 = vcvt.s32.f32 %v1824
    %v2849 = vcvt.s32.f32 %v1825
    %v2850 = vcvt.s32.f32 %v1826
    %v2851 = vcvt.s32.f32 %v1827
    %v2852 = vcvt.s32.f32 %v1828
    %v2853 = vcvt.s32.f32 %v1829
    %v2854 = vcvt.s32.f32 %v1830
    %v2855 = vcvt.s32.f32 %v1831
    %v2856 = vcvt.s32.f32 %v1832
    %v2857 = vcvt.s32.f32 %v1833
    %v2858 = vcvt.s32.f32 %v1834
    %v2859 = vcvt.s32.f32 %v1835
    %v2860 = vcvt.s32.f32 %v1836
    %v2861 = vcvt.s32.f32 %v1837
    %v2862 = vcvt.s32.f32 %v1838
    %v2863 = vcvt.s32.f32 %v1839
    %v2864 = vcvt.s32.f32 %v1840
    %v2865 = vcvt.s32.f32 %v1841
    %v2866 = vcvt.s32.f32 %v1842
    %v2867 = vcvt.s32.f32 %v1843
    %v2868 = vcvt.s32.f32 %v1844
    %v2869 = vcvt.s32.f32 %v1845
    %v2870 = vcvt.s32.f32 %v1846
    %v2871 = vcvt.s32.f32 %v1847
    %v2872 = vcvt.s32.f32 %v1848
    %v2873 = vcvt.s32.f32 %v1849
    %v2874 = vcvt.s32.f32 %v1850
    %v2875 = vcvt.s32.f32 %v1851
    %v2876 = vcvt.s32.f32 %v1852
    %v2877 = vcvt.s32.f32 %v1853
    %v2878 = vcvt.s32.f32 %v1854
    %v2879 = vcvt.s32.f32 %v1855
    %v2880 = vcvt.s32.f32 %v1856
    %v2881 = vcvt.s32.f32 %v1857
    %v2882 = vcvt.s32.f32 %v1858
    %v2883 = vcvt.s32.f32 %v1859
    %v2884 = vcvt.s32.f32 %v1860
    %v2885 = vcvt.s32.f32 %v1861
    %v2886 = vcvt.s32.f32 %v1862
    %v2887 = vcvt.s32.f32 %v1863
    %v2888 = vcvt.s32.f32 %v1864
    %v2889 = vcvt.s32.f32 %v1865
    %v2890 = vcvt.s32.f32 %v1866
    %v2891 = vcvt.s32.f32 %v1867
    %v2892 = vcvt.s32.f32 %v1868
    %v2893 = vcvt.s32.f32 %v1869
    %v2894 = vcvt.s32.f32 %v1870
    %v2895 = vcvt.s32.f32 %v1871
    %v2896 = vcvt.s32.f32 %v1872
    %v2897 = vcvt.s32.f32 %v1873
    %v2898 = vcvt.s32.f32 %v1874
    %v2899 = vcvt.s32.f32 %v1875
    %v2900 = vcvt.s32.f32 %v1876
    %v2901 = vcvt.s32.f32 %v1877
    %v2902 = vcvt.s32.f32 %v1878
    %v2903 = vcvt.s32.f32 %v1879
    %v2904 = vcvt.s32.f32 %v1880
    %v2905 = vcvt.s32.f32 %v1881
    %v2906 = vcvt.s32.f32 %v1882
    %v2907 = vcvt.s32.f32 %v1883
    %v2908 = vcvt.s32.f32 %v1884
    %v2909 = vcvt.s32.f32 %v1885
    %v2910 = vcvt.s32.f32 %v1886
    %v2911 = vcvt.s32.f32 %v1887
    %v2912 = vcvt.s32.f32 %v1888
    %v2913 = vcvt.s32.f32 %v1889
    %v2914 = vcvt.s32.f32 %v1890
    %v2915 = vcvt.s32.f32 %v1891
    %v2916 = vcvt.s32.f32 %v1892
    %v2917 = vcvt.s32.f32 %v1893
    %v2918 = vcvt.s32.f32 %v1894
    %v2919 = vcvt.s32.f32 %v1895
    %v2920 = vcvt.s32.f32 %v1896
    %v2921 = vcvt.s32.f32 %v1897
    %v2922 = vcvt.s32.f32 %v1898
    %v2923 = vcvt.s32.f32 %v1899
    %v2924 = vcvt.s32.f32 %v1900
    %v2925 = vcvt.s32.f32 %v1901
    %v2926 = vcvt.s32.f32 %v1902
    %v2927 = vcvt.s32.f32 %v1903
    %v2928 = vcvt.s32.f32 %v1904
    %v2929 = vcvt.s32.f32 %v1905
    %v2930 = vcvt.s32.f32 %v1906
    %v2931 = vcvt.s32.f32 %v1907
    %v2932 = vcvt.s32.f32 %v1908
    %v2933 = vcvt.s32.f32 %v1909
    %v2934 = vcvt.s32.f32 %v1910
    %v2935 = vcvt.s32.f32 %v1911
    %v2936 = vcvt.s32.f32 %v1912
    %v2937 = vcvt.s32.f32 %v1913
    %v2938 = vcvt.s32.f32 %v1914
    %v2939 = vcvt.s32.f32 %v1915
    %v2940 = vcvt.s32.f32 %v1916
    %v2941 = vcvt.s32.f32 %v1917
    %v2942 = vcvt.s32.f32 %v1918
    %v2943 = vcvt.s32.f32 %v1919
    %v2944 = vcvt.s32.f32 %v1920
    %v2945 = vcvt.s32.f32 %v1921
    %v2946 = vcvt.s32.f32 %v1922
    %v2947 = vcvt.s32.f32 %v1923
    %v2948 = vcvt.s32.f32 %v1924
    %v2949 = vcvt.s32.f32 %v1925
    %v2950 = vcvt.s32.f32 %v1926
    %v2951 = vcvt.s32.f32 %v1927
    %v2952 = vcvt.s32.f32 %v1928
    %v2953 = vcvt.s32.f32 %v1929
    %v2954 = vcvt.s32.f32 %v1930
    %v2955 = vcvt.s32.f32 %v1931
    %v2956 = vcvt.s32.f32 %v1932
    %v2957 = vcvt.s32.f32 %v1933
    %v2958 = vcvt.s32.f32 %v1934
    %v2959 = vcvt.s32.f32 %v1935
    %v2960 = vcvt.s32.f32 %v1936
    %v2961 = vcvt.s32.f32 %v1937
    %v2962 = vcvt.s32.f32 %v1938
    %v2963 = vcvt.s32.f32 %v1939
    %v2964 = vcvt.s32.f32 %v1940
    %v2965 = vcvt.s32.f32 %v1941
    %v2966 = vcvt.s32.f32 %v1942
    %v2967 = vcvt.s32.f32 %v1943
    %v2968 = vcvt.s32.f32 %v1944
    %v2969 = vcvt.s32.f32 %v1945
    %v2970 = vcvt.s32.f32 %v1946
    %v2971 = vcvt.s32.f32 %v1947
    %v2972 = vcvt.s32.f32 %v1948
    %v2973 = vcvt.s32.f32 %v1949
    %v2974 = vcvt.s32.f32 %v1950
    %v2975 = vcvt.s32.f32 %v1951
    %v2976 = vcvt.s32.f32 %v1952
    %v2977 = vcvt.s32.f32 %v1953
    %v2978 = vcvt.s32.f32 %v1954
    %v2979 = vcvt.s32.f32 %v1955
    %v2980 = vcvt.s32.f32 %v1956
    %v2981 = vcvt.s32.f32 %v1957
    %v2982 = vcvt.s32.f32 %v1958
    %v2983 = vcvt.s32.f32 %v1959
    %v2984 = vcvt.s32.f32 %v1960
    %v2985 = vcvt.s32.f32 %v1961
    %v2986 = vcvt.s32.f32 %v1962
    %v2987 = vcvt.s32.f32 %v1963
    %v2988 = vcvt.s32.f32 %v1964
    %v2989 = vcvt.s32.f32 %v1965
    %v2990 = vcvt.s32.f32 %v1966
    %v2991 = vcvt.s32.f32 %v1967
    %v2992 = vcvt.s32.f32 %v1968
    %v2993 = vcvt.s32.f32 %v1969
    %v2994 = vcvt.s32.f32 %v1970
    %v2995 = vcvt.s32.f32 %v1971
    %v2996 = vcvt.s32.f32 %v1972
    %v2997 = vcvt.s32.f32 %v1973
    %v2998 = vcvt.s32.f32 %v1974
    %v2999 = vcvt.s32.f32 %v1975
    %v3000 = vcvt.s32.f32 %v1976
    %v3001 = vcvt.s32.f32 %v1977
    %v3002 = vcvt.s32.f32 %v1978
    %v3003 = vcvt.s32.f32 %v1979
    %v3004 = vcvt.s32.f32 %v1980
    %v3005 = vcvt.s32.f32 %v1981
    %v3006 = vcvt.s32.f32 %v1982
    %v3007 = vcvt.s32.f32 %v1983
    %v3008 = vcvt.s32.f32 %v1984
    %v3009 = vcvt.s32.f32 %v1985
    %v3010 = vcvt.s32.f32 %v1986
    %v3011 = vcvt.s32.f32 %v1987
    %v3012 = vcvt.s32.f32 %v1988
    %v3013 = vcvt.s32.f32 %v1989
    %v3014 = vcvt.s32.f32 %v1990
    %v3015 = vcvt.s32.f32 %v1991
    %v3016 = vcvt.s32.f32 %v1992
    %v3017 = vcvt.s32.f32 %v1993
    %v3018 = vcvt.s32.f32 %v1994
    %v3019 = vcvt.s32.f32 %v1995
    %v3020 = vcvt.s32.f32 %v1996
    %v3021 = vcvt.s32.f32 %v1997
    %v3022 = vcvt.s32.f32 %v1998
    %v3023 = vcvt.s32.f32 %v1999
    %v3024 = vcvt.s32.f32 %v2000
    %v3025 = vcvt.s32.f32 %v2001
    %v3026 = vcvt.s32.f32 %v2002
    %v3027 = vcvt.s32.f32 %v2003
    %v3028 = vcvt.s32.f32 %v2004
    %v3029 = vcvt.s32.f32 %v2005
    %v3030 = vcvt.s32.f32 %v2006
    %v3031 = vcvt.s32.f32 %v2007
    %v3032 = vcvt.s32.f32 %v2008
    %v3033 = vcvt.s32.f32 %v2009
    %v3034 = vcvt.s32.f32 %v2010
    %v3035 = vcvt.s32.f32 %v2011
    %v3036 = vcvt.s32.f32 %v2012
    %v3037 = vcvt.s32.f32 %v2013
    %v3038 = vcvt.s32.f32 %v2014
    %v3039 = vcvt.s32.f32 %v2015
    %v3040 = vcvt.s32.f32 %v2016
    %v3041 = vcvt.s32.f32 %v2017
    %v3042 = vcvt.s32.f32 %v2018
    %v3043 = vcvt.s32.f32 %v2019
    %v3044 = vcvt.s32.f32 %v2020
    %v3045 = vcvt.s32.f32 %v2021
    %v3046 = vcvt.s32.f32 %v2022
    %v3047 = vcvt.s32.f32 %v2023
    %v3048 = vcvt.s32.f32 %v2024
    %v3049 = vcvt.s32.f32 %v2025
    %v3050 = vcvt.s32.f32 %v2026
    %v3051 = vcvt.s32.f32 %v2027
    %v3052 = vcvt.s32.f32 %v2028
    %v3053 = vcvt.s32.f32 %v2029
    %v3054 = vcvt.s32.f32 %v2030
    %v3055 = vcvt.s32.f32 %v2031
    %v3056 = vcvt.s32.f32 %v2032
    %v3057 = vcvt.s32.f32 %v2033
    %v3058 = vcvt.s32.f32 %v2034
    %v3059 = vcvt.s32.f32 %v2035
    %v3060 = vcvt.s32.f32 %v2036
    %v3061 = vcvt.s32.f32 %v2037
    %v3062 = vcvt.s32.f32 %v2038
    %v3063 = vcvt.s32.f32 %v2039
    %v3064 = vcvt.s32.f32 %v2040
    %v3065 = vcvt.s32.f32 %v2041
    %v3066 = vcvt.s32.f32 %v2042
    %v3067 = vcvt.s32.f32 %v2043
    %v3068 = vcvt.s32.f32 %v2044
    %v3069 = vcvt.s32.f32 %v2045
    %v3070 = vcvt.s32.f32 %v2046
    %v3071 = vcvt.s32.f32 %v2047
    %v3072 = vcvt.s32.f32 %v2048
    %v3073 = vcvt.s32.f32 %v2049
    %v3074 = vcvt.s32.f32 %v2050
    %v3075 = vcvt.s32.f32 %v2051
    %v3076 = vcvt.s32.f32 %v2052
    %v3077 = vcvt.s32.f32 %v2053
    %v3078 = vcvt.s32.f32 %v2054
    %v3079 = vcvt.s32.f32 %v2055
    %v3080 = vcvt.s32.f32 %v2056
    %v3081 = vcvt.s32.f32 %v2057
    %v3082 = vcvt.s32.f32 %v2058
    %v3083 = vcvt.s32.f32 %v2059
    %v3084 = vcvt.s32.f32 %v2060
    %v3085 = vcvt.s32.f32 %v2061
    %v3086 = vcvt.s32.f32 %v2062
    %v3087 = vcvt.s32.f32 %v2063
    %v3088 = vcvt.s32.f32 %v2064
    %v3089 = vcvt.s32.f32 %v2065
    %v3090 = vcvt.s32.f32 %v2066
    %v3091 = vcvt.s32.f32 %v2067
    %v3092 = vcvt.s32.f32 %v2068
    %v3093 = vcvt.s32.f32 %v2069
    %v3094 = vcvt.s32.f32 %v2070
    %v3095 = vcvt.s32.f32 %v2071
    %v3096 = vcvt.s32.f32 %v2072
    %v3097 = vcvt.s32.f32 %v2073
    %v3098 = vcvt.s32.f32 %v2074
    %v3099 = vcvt.s32.f32 %v2075
    %v3100 = vcvt.s32.f32 %v2076
    %v3101 = vcvt.s32.f32 %v2077
    %v3102 = vcvt.s32.f32 %v2078
    %v3103 = vcvt.s32.f32 %v2079
    %v3104 = vcvt.s32.f32 %v2080
    %v3105 = vcvt.s32.f32 %v2081
    %v3106 = vcvt.s32.f32 %v2082
    %v3107 = vcvt.s32.f32 %v2083
    %v3108 = vcvt.s32.f32 %v2084
    %v3109 = vcvt.s32.f32 %v2085
    %v3110 = vcvt.s32.f32 %v2086
    %v3111 = vcvt.s32.f32 %v2087
    %v3112 = vcvt.s32.f32 %v2088
    %v3113 = vcvt.s32.f32 %v2089
    %v3114 = vcvt.s32.f32 %v2090
    %v3115 = vcvt.s32.f32 %v2091
    %v3116 = vcvt.s32.f32 %v2092
    %v3117 = vcvt.s32.f32 %v2093
    %v3118 = vcvt.s32.f32 %v2094
    %v3119 = vcvt.s32.f32 %v2095
    %v3120 = vcvt.s32.f32 %v2096
    %v3121 = vcvt.s32.f32 %v2097
    %v3122 = vcvt.s32.f32 %v2098
    %v3123 = vcvt.s32.f32 %v2099
    %v3124 = vcvt.s32.f32 %v2100
    %v3125 = vcvt.s32.f32 %v2101
    %v3126 = vcvt.s32.f32 %v2102
    %v3127 = vcvt.s32.f32 %v2103
    %v3128 = vcvt.s32.f32 %v2104
    %v3129 = vcvt.s32.f32 %v2105
    %v3130 = vcvt.s32.f32 %v2106
    %v3131 = vcvt.s32.f32 %v2107
    %v3132 = vcvt.s32.f32 %v2108
    %v3133 = vcvt.s32.f32 %v2109
    %v3134 = vcvt.s32.f32 %v2110
    %v3135 = vcvt.s32.f32 %v2111
    %v3136 = vcvt.s32.f32 %v2112
    %v3137 = vcvt.s32.f32 %v2113
    %v3138 = vcvt.s32.f32 %v2114
    %v3139 = vcvt.s32.f32 %v2115
    %v3140 = vcvt.s32.f32 %v2116
    %v3141 = vcvt.s32.f32 %v2117
    %v3142 = vcvt.s32.f32 %v2118
    %v3143 = vcvt.s32.f32 %v2119
    %v3144 = vcvt.s32.f32 %v2120
    %v3145 = vcvt.s32.f32 %v2121
    %v3146 = vcvt.s32.f32 %v2122
    %v3147 = vcvt.s32.f32 %v2123
    %v3148 = vcvt.s32.f32 %v2124
    %v3149 = vcvt.s32.f32 %v2125
    %v3150 = vcvt.s32.f32 %v2126
    %v3151 = vcvt.s32.f32 %v2127
    %v3152 = vcvt.s32.f32 %v2128
    %v3153 = vcvt.s32.f32 %v2129
    %v3154 = vcvt.s32.f32 %v2130
    %v3155 = vcvt.s32.f32 %v2131
    %v3156 = vcvt.s32.f32 %v2132
    %v3157 = vcvt.s32.f32 %v2133
    %v3158 = vcvt.s32.f32 %v2134
    %v3159 = vcvt.s32.f32 %v2135
    %v3160 = vcvt.s32.f32 %v2136
    %v3161 = vcvt.s32.f32 %v2137
    %v3162 = vcvt.s32.f32 %v2138
    %v3163 = vcvt.s32.f32 %v2139
    %v3164 = vcvt.s32.f32 %v2140
    %v3165 = vcvt.s32.f32 %v2141
    %v3166 = vcvt.s32.f32 %v2142
    %v3167 = vcvt.s32.f32 %v2143
    %v3168 = vcvt.s32.f32 %v2144
    %v3169 = vcvt.s32.f32 %v2145
    %v3170 = vcvt.s32.f32 %v2146
    %v3171 = vcvt.s32.f32 %v2147
    %v3172 = vcvt.s32.f32 %v2148
    %v3173 = vcvt.s32.f32 %v2149
    %v3174 = vcvt.s32.f32 %v2150
    %v3175 = vcvt.s32.f32 %v2151
    %v3176 = vcvt.s32.f32 %v2152
    %v3177 = vcvt.s32.f32 %v2153
    %v3178 = vcvt.s32.f32 %v2154
    %v3179 = vcvt.s32.f32 %v2155
    %v3180 = vcvt.s32.f32 %v2156
    %v3181 = vcvt.s32.f32 %v2157
    %v3182 = vcvt.s32.f32 %v2158
    %v3183 = vcvt.s32.f32 %v2159
    %v3184 = vcvt.s32.f32 %v2160
    %v3185 = vcvt.s32.f32 %v2161
    %v3186 = vcvt.s32.f32 %v2162
    %v3187 = vcvt.s32.f32 %v2163
    %v3188 = vcvt.s32.f32 %v2164
    %v3189 = vcvt.s32.f32 %v2165
    %v3190 = vcvt.s32.f32 %v2166
    %v3191 = vcvt.s32.f32 %v2167
    %v3192 = vcvt.s32.f32 %v2168
    %v3193 = vcvt.s32.f32 %v2169
    %v3194 = vcvt.s32.f32 %v2170
    %v3195 = vcvt.s32.f32 %v2171
    %v3196 = vcvt.s32.f32 %v2172
    %v3197 = vcvt.s32.f32 %v2173
    %v3198 = vcvt.s32.f32 %v2174
    %v3199 = vcvt.s32.f32 %v2175
    %v3200 = vcvt.s32.f32 %v2176
    %v3201 = vcvt.s32.f32 %v2177
    %v3202 = vcvt.s32.f32 %v2178
    %v3203 = vcvt.s32.f32 %v2179
    %v3204 = vcvt.s32.f32 %v2180
    %v3205 = vcvt.s32.f32 %v2181
    %v3206 = vcvt.s32.f32 %v2182
    %v3207 = vcvt.s32.f32 %v2183
    %v3208 = vcvt.s32.f32 %v2184
    %v3209 = vcvt.s32.f32 %v2185
    %v3210 = vcvt.s32.f32 %v2186
    %v3211 = vcvt.s32.f32 %v2187
    %v3212 = vcvt.s32.f32 %v2188
    %v3213 = vcvt.s32.f32 %v2189
    %v3214 = vcvt.s32.f32 %v2190
    %v3215 = vcvt.s32.f32 %v2191
    %v3216 = vcvt.s32.f32 %v2192
    %v3217 = vcvt.s32.f32 %v2193
    %v3218 = vcvt.s32.f32 %v2194
    %v3219 = vcvt.s32.f32 %v2195
    %v3220 = vcvt.s32.f32 %v2196
    %v3221 = vcvt.s32.f32 %v2197
    %v3222 = vcvt.s32.f32 %v2198
    %v3223 = vcvt.s32.f32 %v2199
    %v3224 = vcvt.s32.f32 %v2200
    %v3225 = vcvt.s32.f32 %v2201
    %v3226 = vcvt.s32.f32 %v2202
    %v3227 = vcvt.s32.f32 %v2203
    %v3228 = vcvt.s32.f32 %v2204
    %v3229 = vcvt.s32.f32 %v2205
    %v3230 = vcvt.s32.f32 %v2206
    %v3231 = vcvt.s32.f32 %v2207
    %v3232 = vcvt.s32.f32 %v2208
    %v3233 = vcvt.s32.f32 %v2209
    %v3234 = vcvt.s32.f32 %v2210
    %v3235 = vcvt.s32.f32 %v2211
    %v3236 = vcvt.s32.f32 %v2212
    %v3237 = vcvt.s32.f32 %v2213
    %v3238 = vcvt.s32.f32 %v2214
    %v3239 = vcvt.s32.f32 %v2215
    %v3240 = vcvt.s32.f32 %v2216
    %v3241 = vcvt.s32.f32 %v2217
    %v3242 = vcvt.s32.f32 %v2218
    %v3243 = vcvt.s32.f32 %v2219
    %v3244 = vcvt.s32.f32 %v2220
    %v3245 = vcvt.s32.f32 %v2221
    %v3246 = vcvt.s32.f32 %v2222
    %v3247 = vcvt.s32.f32 %v2223
    %v3248 = vcvt.s32.f32 %v2224
    %v3249 = vcvt.s32.f32 %v2225
    %v3250 = vcvt.s32.f32 %v2226
    %v3251 = vcvt.s32.f32 %v2227
    %v3252 = vcvt.s32.f32 %v2228
    %v3253 = vcvt.s32.f32 %v2229
    %v3254 = vcvt.s32.f32 %v2230
    %v3255 = vcvt.s32.f32 %v2231
    %v3256 = vcvt.s32.f32 %v2232
    %v3257 = vcvt.s32.f32 %v2233
    %v3258 = vcvt.s32.f32 %v2234
    %v3259 = vcvt.s32.f32 %v2235
    %v3260 = vcvt.s32.f32 %v2236
    %v3261 = vcvt.s32.f32 %v2237
    %v3262 = vcvt.s32.f32 %v2238
    %v3263 = vcvt.s32.f32 %v2239
    %v3264 = vcvt.s32.f32 %v2240
    %v3265 = vcvt.s32.f32 %v2241
    %v3266 = vcvt.s32.f32 %v2242
    %v3267 = vcvt.s32.f32 %v2243
    %v3268 = vcvt.s32.f32 %v2244
    %v3269 = vcvt.s32.f32 %v2245
    %v3270 = vcvt.s32.f32 %v2246
    %v3271 = vcvt.s32.f32 %v2247
    %v3272 = vcvt.s32.f32 %v2248
    %v3273 = vld [vmem:[#allocation2] sm:$0xff]
    %v3275 = vcombine.high %v3273, %v3273
    %3277 = vmatprep.subr.mxu0 %v2730
    %3278 = vmatpush1.msra.mxu0 %v2729
    %3279 = vmatprep.subr.mxu0 %v2698
    %3280 = vmatpush1.msra.mxu0 %v2697
    %3281 = vmatprep.subr.mxu0 %v2666
    %3282 = vmatpush1.msra.mxu0 %v2665
    %3283 = vmatprep.subr.mxu0 %v2634
    %3284 = vmatpush1.msra.mxu0 %v2633
    %3285 = vmatprep.subr.mxu0 %v2602
    %3286 = vmatpush1.msra.mxu0 %v2601
    %3287 = vmatprep.subr.mxu0 %v2570
    %3288 = vmatpush1.msra.mxu0 %v2569
    %3289 = vmatprep.subr.mxu0 %v2538
    %3290 = vmatpush1.msra.mxu0 %v2537
    %3291 = vmatprep.subr.mxu0 %v2506
    %3292 = vmatpush1.msra.mxu0 %v2505
    %3293 = vmatprep.subr.mxu0 %v2474
    %3294 = vmatpush1.msra.mxu0 %v2473
    %3295 = vmatprep.subr.mxu0 %v2442
    %3296 = vmatpush1.msra.mxu0 %v2441
    %3297 = vmatprep.subr.mxu0 %v2410
    %3298 = vmatpush1.msra.mxu0 %v2409
    %3299 = vmatprep.subr.mxu0 %v2378
    %3300 = vmatpush1.msra.mxu0 %v2377
    %3301 = vmatprep.subr.mxu0 %v2346
    %3302 = vmatpush1.msra.mxu0 %v2345
    %3303 = vmatprep.subr.mxu0 %v2314
    %3304 = vmatpush1.msra.mxu0 %v2313
    %3305 = vmatprep.subr.mxu0 %v2282
    %3306 = vmatpush1.msra.mxu0 %v2281
    %3307 = vmatprep.subr.mxu0 %v2250
    %3308 = vmatpush1.msra.mxu0 %v2249
    %3309 = vmatprep.subr.mxu0 %v3242
    %3310 = vmatpush2.msra.mxu0 %v3241
    %3311 = vmatprep.subr.mxu0 %v3210
    %3312 = vmatpush2.msra.mxu0 %v3209
    %3313 = vmatprep.subr.mxu0 %v3178
    %3314 = vmatpush2.msra.mxu0 %v3177
    %3315 = vmatprep.subr.mxu0 %v3146
    %3316 = vmatpush2.msra.mxu0 %v3145
    %3317 = vmatprep.subr.mxu0 %v3114
    %3318 = vmatpush2.msra.mxu0 %v3113
    %3319 = vmatprep.subr.mxu0 %v3082
    %3320 = vmatpush2.msra.mxu0 %v3081
    %3321 = vmatprep.subr.mxu0 %v3050
    %3322 = vmatpush2.msra.mxu0 %v3049
    %3323 = vmatprep.subr.mxu0 %v3018
    %3324 = vmatpush2.msra.mxu0 %v3017
    %3325 = vmatprep.subr.mxu0 %v2986
    %3326 = vmatpush2.msra.mxu0 %v2985
    %3327 = vmatprep.subr.mxu0 %v2954
    %3328 = vmatpush2.msra.mxu0 %v2953
    %3329 = vmatprep.subr.mxu0 %v2922
    %3330 = vmatpush2.msra.mxu0 %v2921
    %3331 = vmatprep.subr.mxu0 %v2890
    %3332 = vmatpush2.msra.mxu0 %v2889
    %3333 = vmatprep.subr.mxu0 %v2858
    %3334 = vmatpush2.msra.mxu0 %v2857
    %3335 = vmatprep.subr.mxu0 %v2826
    %3336 = vmatpush2.msra.mxu0 %v2825
    %3337 = vmatprep.subr.mxu0 %v2794
    %3338 = vmatpush2.msra.mxu0 %v2793
    %3339 = vmatprep.subr.mxu0 %v2762
    %3340 = vmatpush2.msra.mxu0 %v2761
    %3341 = vmatprep.mubr.f32.mxu0 %v3275
    %3342 = vmatmul.mubr.f32.gmra.mxu0 %v3273
    %v3343 = vpop.f32.mrf.mxu0
    %v3344 = vadd.f32 0.0, %v3343
    %v3345 = vpop.f32.mrf.mxu0
    %v3346 = vadd.f32 0.0, %v3345
    %3347 = vdwg.mxu0
    %3348 = vmatprep.subr.mxu0 %v2732
    %3349 = vmatpush1.msra.mxu0 %v2731
    %3350 = vmatprep.subr.mxu0 %v2700
    %3351 = vmatpush1.msra.mxu0 %v2699
    %3352 = vmatprep.subr.mxu0 %v2668
    %3353 = vmatpush1.msra.mxu0 %v2667
    %3354 = vmatprep.subr.mxu0 %v2636
    %3355 = vmatpush1.msra.mxu0 %v2635
    %3356 = vmatprep.subr.mxu0 %v2604
    %3357 = vmatpush1.msra.mxu0 %v2603
    %3358 = vmatprep.subr.mxu0 %v2572
    %3359 = vmatpush1.msra.mxu0 %v2571
    %3360 = vmatprep.subr.mxu0 %v2540
    %3361 = vmatpush1.msra.mxu0 %v2539
    %3362 = vmatprep.subr.mxu0 %v2508
    %3363 = vmatpush1.msra.mxu0 %v2507
    %3364 = vmatprep.subr.mxu0 %v2476
    %3365 = vmatpush1.msra.mxu0 %v2475
    %3366 = vmatprep.subr.mxu0 %v2444
    %3367 = vmatpush1.msra.mxu0 %v2443
    %3368 = vmatprep.subr.mxu0 %v2412
    %3369 = vmatpush1.msra.mxu0 %v2411
    %3370 = vmatprep.subr.mxu0 %v2380
    %3371 = vmatpush1.msra.mxu0 %v2379
    %3372 = vmatprep.subr.mxu0 %v2348
    %3373 = vmatpush1.msra.mxu0 %v2347
    %3374 = vmatprep.subr.mxu0 %v2316
    %3375 = vmatpush1.msra.mxu0 %v2315
    %3376 = vmatprep.subr.mxu0 %v2284
    %3377 = vmatpush1.msra.mxu0 %v2283
    %3378 = vmatprep.subr.mxu0 %v2252
    %3379 = vmatpush1.msra.mxu0 %v2251
    %3380 = vmatprep.subr.mxu0 %v3244
    %3381 = vmatpush2.msra.mxu0 %v3243
    %3382 = vmatprep.subr.mxu0 %v3212
    %3383 = vmatpush2.msra.mxu0 %v3211
    %3384 = vmatprep.subr.mxu0 %v3180
    %3385 = vmatpush2.msra.mxu0 %v3179
    %3386 = vmatprep.subr.mxu0 %v3148
    %3387 = vmatpush2.msra.mxu0 %v3147
    %3388 = vmatprep.subr.mxu0 %v3116
    %3389 = vmatpush2.msra.mxu0 %v3115
    %3390 = vmatprep.subr.mxu0 %v3084
    %3391 = vmatpush2.msra.mxu0 %v3083
    %3392 = vmatprep.subr.mxu0 %v3052
    %3393 = vmatpush2.msra.mxu0 %v3051
    %3394 = vmatprep.subr.mxu0 %v3020
    %3395 = vmatpush2.msra.mxu0 %v3019
    %3396 = vmatprep.subr.mxu0 %v2988
    %3397 = vmatpush2.msra.mxu0 %v2987
    %3398 = vmatprep.subr.mxu0 %v2956
    %3399 = vmatpush2.msra.mxu0 %v2955
    %3400 = vmatprep.subr.mxu0 %v2924
    %3401 = vmatpush2.msra.mxu0 %v2923
    %3402 = vmatprep.subr.mxu0 %v2892
    %3403 = vmatpush2.msra.mxu0 %v2891
    %3404 = vmatprep.subr.mxu0 %v2860
    %3405 = vmatpush2.msra.mxu0 %v2859
    %3406 = vmatprep.subr.mxu0 %v2828
    %3407 = vmatpush2.msra.mxu0 %v2827
    %3408 = vmatprep.subr.mxu0 %v2796
    %3409 = vmatpush2.msra.mxu0 %v2795
    %3410 = vmatprep.subr.mxu0 %v2764
    %3411 = vmatpush2.msra.mxu0 %v2763
    %3412 = vmatprep.mubr.f32.mxu0 %v3275
    %3413 = vmatmul.mubr.f32.gmra.mxu0 %v3273
    %v3414 = vpop.f32.mrf.mxu0
    %v3415 = vadd.f32 0.0, %v3414
    %v3416 = vpop.f32.mrf.mxu0
    %v3417 = vadd.f32 0.0, %v3416
    %3418 = vdwg.mxu0
    %3419 = vmatprep.subr.mxu0 %v2734
    %3420 = vmatpush1.msra.mxu0 %v2733
    %3421 = vmatprep.subr.mxu0 %v2702
    %3422 = vmatpush1.msra.mxu0 %v2701
    %3423 = vmatprep.subr.mxu0 %v2670
    %3424 = vmatpush1.msra.mxu0 %v2669
    %3425 = vmatprep.subr.mxu0 %v2638
    %3426 = vmatpush1.msra.mxu0 %v2637
    %3427 = vmatprep.subr.mxu0 %v2606
    %3428 = vmatpush1.msra.mxu0 %v2605
    %3429 = vmatprep.subr.mxu0 %v2574
    %3430 = vmatpush1.msra.mxu0 %v2573
    %3431 = vmatprep.subr.mxu0 %v2542
    %3432 = vmatpush1.msra.mxu0 %v2541
    %3433 = vmatprep.subr.mxu0 %v2510
    %3434 = vmatpush1.msra.mxu0 %v2509
    %3435 = vmatprep.subr.mxu0 %v2478
    %3436 = vmatpush1.msra.mxu0 %v2477
    %3437 = vmatprep.subr.mxu0 %v2446
    %3438 = vmatpush1.msra.mxu0 %v2445
    %3439 = vmatprep.subr.mxu0 %v2414
    %3440 = vmatpush1.msra.mxu0 %v2413
    %3441 = vmatprep.subr.mxu0 %v2382
    %3442 = vmatpush1.msra.mxu0 %v2381
    %3443 = vmatprep.subr.mxu0 %v2350
    %3444 = vmatpush1.msra.mxu0 %v2349
    %3445 = vmatprep.subr.mxu0 %v2318
    %3446 = vmatpush1.msra.mxu0 %v2317
    %3447 = vmatprep.subr.mxu0 %v2286
    %3448 = vmatpush1.msra.mxu0 %v2285
    %3449 = vmatprep.subr.mxu0 %v2254
    %3450 = vmatpush1.msra.mxu0 %v2253
    %3451 = vmatprep.subr.mxu0 %v3246
    %3452 = vmatpush2.msra.mxu0 %v3245
    %3453 = vmatprep.subr.mxu0 %v3214
    %3454 = vmatpush2.msra.mxu0 %v3213
    %3455 = vmatprep.subr.mxu0 %v3182
    %3456 = vmatpush2.msra.mxu0 %v3181
    %3457 = vmatprep.subr.mxu0 %v3150
    %3458 = vmatpush2.msra.mxu0 %v3149
    %3459 = vmatprep.subr.mxu0 %v3118
    %3460 = vmatpush2.msra.mxu0 %v3117
    %3461 = vmatprep.subr.mxu0 %v3086
    %3462 = vmatpush2.msra.mxu0 %v3085
    %3463 = vmatprep.subr.mxu0 %v3054
    %3464 = vmatpush2.msra.mxu0 %v3053
    %3465 = vmatprep.subr.mxu0 %v3022
    %3466 = vmatpush2.msra.mxu0 %v3021
    %3467 = vmatprep.subr.mxu0 %v2990
    %3468 = vmatpush2.msra.mxu0 %v2989
    %3469 = vmatprep.subr.mxu0 %v2958
    %3470 = vmatpush2.msra.mxu0 %v2957
    %3471 = vmatprep.subr.mxu0 %v2926
    %3472 = vmatpush2.msra.mxu0 %v2925
    %3473 = vmatprep.subr.mxu0 %v2894
    %3474 = vmatpush2.msra.mxu0 %v2893
    %3475 = vmatprep.subr.mxu0 %v2862
    %3476 = vmatpush2.msra.mxu0 %v2861
    %3477 = vmatprep.subr.mxu0 %v2830
    %3478 = vmatpush2.msra.mxu0 %v2829
    %3479 = vmatprep.subr.mxu0 %v2798
    %3480 = vmatpush2.msra.mxu0 %v2797
    %3481 = vmatprep.subr.mxu0 %v2766
    %3482 = vmatpush2.msra.mxu0 %v2765
    %3483 = vmatprep.mubr.f32.mxu0 %v3275
    %3484 = vmatmul.mubr.f32.gmra.mxu0 %v3273
    %v3485 = vpop.f32.mrf.mxu0
    %v3486 = vadd.f32 0.0, %v3485
    %v3487 = vpop.f32.mrf.mxu0
    %v3488 = vadd.f32 0.0, %v3487
    %3489 = vdwg.mxu0
    %3490 = vmatprep.subr.mxu0 %v2736
    %3491 = vmatpush1.msra.mxu0 %v2735
    %3492 = vmatprep.subr.mxu0 %v2704
    %3493 = vmatpush1.msra.mxu0 %v2703
    %3494 = vmatprep.subr.mxu0 %v2672
    %3495 = vmatpush1.msra.mxu0 %v2671
    %3496 = vmatprep.subr.mxu0 %v2640
    %3497 = vmatpush1.msra.mxu0 %v2639
    %3498 = vmatprep.subr.mxu0 %v2608
    %3499 = vmatpush1.msra.mxu0 %v2607
    %3500 = vmatprep.subr.mxu0 %v2576
    %3501 = vmatpush1.msra.mxu0 %v2575
    %3502 = vmatprep.subr.mxu0 %v2544
    %3503 = vmatpush1.msra.mxu0 %v2543
    %3504 = vmatprep.subr.mxu0 %v2512
    %3505 = vmatpush1.msra.mxu0 %v2511
    %3506 = vmatprep.subr.mxu0 %v2480
    %3507 = vmatpush1.msra.mxu0 %v2479
    %3508 = vmatprep.subr.mxu0 %v2448
    %3509 = vmatpush1.msra.mxu0 %v2447
    %3510 = vmatprep.subr.mxu0 %v2416
    %3511 = vmatpush1.msra.mxu0 %v2415
    %3512 = vmatprep.subr.mxu0 %v2384
    %3513 = vmatpush1.msra.mxu0 %v2383
    %3514 = vmatprep.subr.mxu0 %v2352
    %3515 = vmatpush1.msra.mxu0 %v2351
    %3516 = vmatprep.subr.mxu0 %v2320
    %3517 = vmatpush1.msra.mxu0 %v2319
    %3518 = vmatprep.subr.mxu0 %v2288
    %3519 = vmatpush1.msra.mxu0 %v2287
    %3520 = vmatprep.subr.mxu0 %v2256
    %3521 = vmatpush1.msra.mxu0 %v2255
    %3522 = vmatprep.subr.mxu0 %v3248
    %3523 = vmatpush2.msra.mxu0 %v3247
    %3524 = vmatprep.subr.mxu0 %v3216
    %3525 = vmatpush2.msra.mxu0 %v3215
    %3526 = vmatprep.subr.mxu0 %v3184
    %3527 = vmatpush2.msra.mxu0 %v3183
    %3528 = vmatprep.subr.mxu0 %v3152
    %3529 = vmatpush2.msra.mxu0 %v3151
    %3530 = vmatprep.subr.mxu0 %v3120
    %3531 = vmatpush2.msra.mxu0 %v3119
    %3532 = vmatprep.subr.mxu0 %v3088
    %3533 = vmatpush2.msra.mxu0 %v3087
    %3534 = vmatprep.subr.mxu0 %v3056
    %3535 = vmatpush2.msra.mxu0 %v3055
    %3536 = vmatprep.subr.mxu0 %v3024
    %3537 = vmatpush2.msra.mxu0 %v3023
    %3538 = vmatprep.subr.mxu0 %v2992
    %3539 = vmatpush2.msra.mxu0 %v2991
    %3540 = vmatprep.subr.mxu0 %v2960
    %3541 = vmatpush2.msra.mxu0 %v2959
    %3542 = vmatprep.subr.mxu0 %v2928
    %3543 = vmatpush2.msra.mxu0 %v2927
    %3544 = vmatprep.subr.mxu0 %v2896
    %3545 = vmatpush2.msra.mxu0 %v2895
    %3546 = vmatprep.subr.mxu0 %v2864
    %3547 = vmatpush2.msra.mxu0 %v2863
    %3548 = vmatprep.subr.mxu0 %v2832
    %3549 = vmatpush2.msra.mxu0 %v2831
    %3550 = vmatprep.subr.mxu0 %v2800
    %3551 = vmatpush2.msra.mxu0 %v2799
    %3552 = vmatprep.subr.mxu0 %v2768
    %3553 = vmatpush2.msra.mxu0 %v2767
    %3554 = vmatprep.mubr.f32.mxu0 %v3275
    %3555 = vmatmul.mubr.f32.gmra.mxu0 %v3273
    %v3556 = vpop.f32.mrf.mxu0
    %v3557 = vadd.f32 0.0, %v3556
    %v3558 = vpop.f32.mrf.mxu0
    %v3559 = vadd.f32 0.0, %v3558
    %3560 = vdwg.mxu0
    %3561 = vmatprep.subr.mxu0 %v2738
    %3562 = vmatpush1.msra.mxu0 %v2737
    %3563 = vmatprep.subr.mxu0 %v2706
    %3564 = vmatpush1.msra.mxu0 %v2705
    %3565 = vmatprep.subr.mxu0 %v2674
    %3566 = vmatpush1.msra.mxu0 %v2673
    %3567 = vmatprep.subr.mxu0 %v2642
    %3568 = vmatpush1.msra.mxu0 %v2641
    %3569 = vmatprep.subr.mxu0 %v2610
    %3570 = vmatpush1.msra.mxu0 %v2609
    %3571 = vmatprep.subr.mxu0 %v2578
    %3572 = vmatpush1.msra.mxu0 %v2577
    %3573 = vmatprep.subr.mxu0 %v2546
    %3574 = vmatpush1.msra.mxu0 %v2545
    %3575 = vmatprep.subr.mxu0 %v2514
    %3576 = vmatpush1.msra.mxu0 %v2513
    %3577 = vmatprep.subr.mxu0 %v2482
    %3578 = vmatpush1.msra.mxu0 %v2481
    %3579 = vmatprep.subr.mxu0 %v2450
    %3580 = vmatpush1.msra.mxu0 %v2449
    %3581 = vmatprep.subr.mxu0 %v2418
    %3582 = vmatpush1.msra.mxu0 %v2417
    %3583 = vmatprep.subr.mxu0 %v2386
    %3584 = vmatpush1.msra.mxu0 %v2385
    %3585 = vmatprep.subr.mxu0 %v2354
    %3586 = vmatpush1.msra.mxu0 %v2353
    %3587 = vmatprep.subr.mxu0 %v2322
    %3588 = vmatpush1.msra.mxu0 %v2321
    %3589 = vmatprep.subr.mxu0 %v2290
    %3590 = vmatpush1.msra.mxu0 %v2289
    %3591 = vmatprep.subr.mxu0 %v2258
    %3592 = vmatpush1.msra.mxu0 %v2257
    %3593 = vmatprep.subr.mxu0 %v3250
    %3594 = vmatpush2.msra.mxu0 %v3249
    %3595 = vmatprep.subr.mxu0 %v3218
    %3596 = vmatpush2.msra.mxu0 %v3217
    %3597 = vmatprep.subr.mxu0 %v3186
    %3598 = vmatpush2.msra.mxu0 %v3185
    %3599 = vmatprep.subr.mxu0 %v3154
    %3600 = vmatpush2.msra.mxu0 %v3153
    %3601 = vmatprep.subr.mxu0 %v3122
    %3602 = vmatpush2.msra.mxu0 %v3121
    %3603 = vmatprep.subr.mxu0 %v3090
    %3604 = vmatpush2.msra.mxu0 %v3089
    %3605 = vmatprep.subr.mxu0 %v3058
    %3606 = vmatpush2.msra.mxu0 %v3057
    %3607 = vmatprep.subr.mxu0 %v3026
    %3608 = vmatpush2.msra.mxu0 %v3025
    %3609 = vmatprep.subr.mxu0 %v2994
    %3610 = vmatpush2.msra.mxu0 %v2993
    %3611 = vmatprep.subr.mxu0 %v2962
    %3612 = vmatpush2.msra.mxu0 %v2961
    %3613 = vmatprep.subr.mxu0 %v2930
    %3614 = vmatpush2.msra.mxu0 %v2929
    %3615 = vmatprep.subr.mxu0 %v2898
    %3616 = vmatpush2.msra.mxu0 %v2897
    %3617 = vmatprep.subr.mxu0 %v2866
    %3618 = vmatpush2.msra.mxu0 %v2865
    %3619 = vmatprep.subr.mxu0 %v2834
    %3620 = vmatpush2.msra.mxu0 %v2833
    %3621 = vmatprep.subr.mxu0 %v2802
    %3622 = vmatpush2.msra.mxu0 %v2801
    %3623 = vmatprep.subr.mxu0 %v2770
    %3624 = vmatpush2.msra.mxu0 %v2769
    %3625 = vmatprep.mubr.f32.mxu0 %v3275
    %3626 = vmatmul.mubr.f32.gmra.mxu0 %v3273
    %v3627 = vpop.f32.mrf.mxu0
    %v3628 = vadd.f32 0.0, %v3627
    %v3629 = vpop.f32.mrf.mxu0
    %v3630 = vadd.f32 0.0, %v3629
    %3631 = vdwg.mxu0
    %3632 = vmatprep.subr.mxu0 %v2740
    %3633 = vmatpush1.msra.mxu0 %v2739
    %3634 = vmatprep.subr.mxu0 %v2708
    %3635 = vmatpush1.msra.mxu0 %v2707
    %3636 = vmatprep.subr.mxu0 %v2676
    %3637 = vmatpush1.msra.mxu0 %v2675
    %3638 = vmatprep.subr.mxu0 %v2644
    %3639 = vmatpush1.msra.mxu0 %v2643
    %3640 = vmatprep.subr.mxu0 %v2612
    %3641 = vmatpush1.msra.mxu0 %v2611
    %3642 = vmatprep.subr.mxu0 %v2580
    %3643 = vmatpush1.msra.mxu0 %v2579
    %3644 = vmatprep.subr.mxu0 %v2548
    %3645 = vmatpush1.msra.mxu0 %v2547
    %3646 = vmatprep.subr.mxu0 %v2516
    %3647 = vmatpush1.msra.mxu0 %v2515
    %3648 = vmatprep.subr.mxu0 %v2484
    %3649 = vmatpush1.msra.mxu0 %v2483
    %3650 = vmatprep.subr.mxu0 %v2452
    %3651 = vmatpush1.msra.mxu0 %v2451
    %3652 = vmatprep.subr.mxu0 %v2420
    %3653 = vmatpush1.msra.mxu0 %v2419
    %3654 = vmatprep.subr.mxu0 %v2388
    %3655 = vmatpush1.msra.mxu0 %v2387
    %3656 = vmatprep.subr.mxu0 %v2356
    %3657 = vmatpush1.msra.mxu0 %v2355
    %3658 = vmatprep.subr.mxu0 %v2324
    %3659 = vmatpush1.msra.mxu0 %v2323
    %3660 = vmatprep.subr.mxu0 %v2292
    %3661 = vmatpush1.msra.mxu0 %v2291
    %3662 = vmatprep.subr.mxu0 %v2260
    %3663 = vmatpush1.msra.mxu0 %v2259
    %3664 = vmatprep.subr.mxu0 %v3252
    %3665 = vmatpush2.msra.mxu0 %v3251
    %3666 = vmatprep.subr.mxu0 %v3220
    %3667 = vmatpush2.msra.mxu0 %v3219
    %3668 = vmatprep.subr.mxu0 %v3188
    %3669 = vmatpush2.msra.mxu0 %v3187
    %3670 = vmatprep.subr.mxu0 %v3156
    %3671 = vmatpush2.msra.mxu0 %v3155
    %3672 = vmatprep.subr.mxu0 %v3124
    %3673 = vmatpush2.msra.mxu0 %v3123
    %3674 = vmatprep.subr.mxu0 %v3092
    %3675 = vmatpush2.msra.mxu0 %v3091
    %3676 = vmatprep.subr.mxu0 %v3060
    %3677 = vmatpush2.msra.mxu0 %v3059
    %3678 = vmatprep.subr.mxu0 %v3028
    %3679 = vmatpush2.msra.mxu0 %v3027
    %3680 = vmatprep.subr.mxu0 %v2996
    %3681 = vmatpush2.msra.mxu0 %v2995
    %3682 = vmatprep.subr.mxu0 %v2964
    %3683 = vmatpush2.msra.mxu0 %v2963
    %3684 = vmatprep.subr.mxu0 %v2932
    %3685 = vmatpush2.msra.mxu0 %v2931
    %3686 = vmatprep.subr.mxu0 %v2900
    %3687 = vmatpush2.msra.mxu0 %v2899
    %3688 = vmatprep.subr.mxu0 %v2868
    %3689 = vmatpush2.msra.mxu0 %v2867
    %3690 = vmatprep.subr.mxu0 %v2836
    %3691 = vmatpush2.msra.mxu0 %v2835
    %3692 = vmatprep.subr.mxu0 %v2804
    %3693 = vmatpush2.msra.mxu0 %v2803
    %3694 = vmatprep.subr.mxu0 %v2772
    %3695 = vmatpush2.msra.mxu0 %v2771
    %3696 = vmatprep.mubr.f32.mxu0 %v3275
    %3697 = vmatmul.mubr.f32.gmra.mxu0 %v3273
    %v3698 = vpop.f32.mrf.mxu0
    %v3699 = vadd.f32 0.0, %v3698
    %v3700 = vpop.f32.mrf.mxu0
    %v3701 = vadd.f32 0.0, %v3700
    %3702 = vdwg.mxu0
    %3703 = vmatprep.subr.mxu0 %v2742
    %3704 = vmatpush1.msra.mxu0 %v2741
    %3705 = vmatprep.subr.mxu0 %v2710
    %3706 = vmatpush1.msra.mxu0 %v2709
    %3707 = vmatprep.subr.mxu0 %v2678
    %3708 = vmatpush1.msra.mxu0 %v2677
    %3709 = vmatprep.subr.mxu0 %v2646
    %3710 = vmatpush1.msra.mxu0 %v2645
    %3711 = vmatprep.subr.mxu0 %v2614
    %3712 = vmatpush1.msra.mxu0 %v2613
    %3713 = vmatprep.subr.mxu0 %v2582
    %3714 = vmatpush1.msra.mxu0 %v2581
    %3715 = vmatprep.subr.mxu0 %v2550
    %3716 = vmatpush1.msra.mxu0 %v2549
    %3717 = vmatprep.subr.mxu0 %v2518
    %3718 = vmatpush1.msra.mxu0 %v2517
    %3719 = vmatprep.subr.mxu0 %v2486
    %3720 = vmatpush1.msra.mxu0 %v2485
    %3721 = vmatprep.subr.mxu0 %v2454
    %3722 = vmatpush1.msra.mxu0 %v2453
    %3723 = vmatprep.subr.mxu0 %v2422
    %3724 = vmatpush1.msra.mxu0 %v2421
    %3725 = vmatprep.subr.mxu0 %v2390
    %3726 = vmatpush1.msra.mxu0 %v2389
    %3727 = vmatprep.subr.mxu0 %v2358
    %3728 = vmatpush1.msra.mxu0 %v2357
    %3729 = vmatprep.subr.mxu0 %v2326
    %3730 = vmatpush1.msra.mxu0 %v2325
    %3731 = vmatprep.subr.mxu0 %v2294
    %3732 = vmatpush1.msra.mxu0 %v2293
    %3733 = vmatprep.subr.mxu0 %v2262
    %3734 = vmatpush1.msra.mxu0 %v2261
    %3735 = vmatprep.subr.mxu0 %v3254
    %3736 = vmatpush2.msra.mxu0 %v3253
    %3737 = vmatprep.subr.mxu0 %v3222
    %3738 = vmatpush2.msra.mxu0 %v3221
    %3739 = vmatprep.subr.mxu0 %v3190
    %3740 = vmatpush2.msra.mxu0 %v3189
    %3741 = vmatprep.subr.mxu0 %v3158
    %3742 = vmatpush2.msra.mxu0 %v3157
    %3743 = vmatprep.subr.mxu0 %v3126
    %3744 = vmatpush2.msra.mxu0 %v3125
    %3745 = vmatprep.subr.mxu0 %v3094
    %3746 = vmatpush2.msra.mxu0 %v3093
    %3747 = vmatprep.subr.mxu0 %v3062
    %3748 = vmatpush2.msra.mxu0 %v3061
    %3749 = vmatprep.subr.mxu0 %v3030
    %3750 = vmatpush2.msra.mxu0 %v3029
    %3751 = vmatprep.subr.mxu0 %v2998
    %3752 = vmatpush2.msra.mxu0 %v2997
    %3753 = vmatprep.subr.mxu0 %v2966
    %3754 = vmatpush2.msra.mxu0 %v2965
    %3755 = vmatprep.subr.mxu0 %v2934
    %3756 = vmatpush2.msra.mxu0 %v2933
    %3757 = vmatprep.subr.mxu0 %v2902
    %3758 = vmatpush2.msra.mxu0 %v2901
    %3759 = vmatprep.subr.mxu0 %v2870
    %3760 = vmatpush2.msra.mxu0 %v2869
    %3761 = vmatprep.subr.mxu0 %v2838
    %3762 = vmatpush2.msra.mxu0 %v2837
    %3763 = vmatprep.subr.mxu0 %v2806
    %3764 = vmatpush2.msra.mxu0 %v2805
    %3765 = vmatprep.subr.mxu0 %v2774
    %3766 = vmatpush2.msra.mxu0 %v2773
    %3767 = vmatprep.mubr.f32.mxu0 %v3275
    %3768 = vmatmul.mubr.f32.gmra.mxu0 %v3273
    %v3769 = vpop.f32.mrf.mxu0
    %v3770 = vadd.f32 0.0, %v3769
    %v3771 = vpop.f32.mrf.mxu0
    %v3772 = vadd.f32 0.0, %v3771
    %3773 = vdwg.mxu0
    %3774 = vmatprep.subr.mxu0 %v2744
    %3775 = vmatpush1.msra.mxu0 %v2743
    %3776 = vmatprep.subr.mxu0 %v2712
    %3777 = vmatpush1.msra.mxu0 %v2711
    %3778 = vmatprep.subr.mxu0 %v2680
    %3779 = vmatpush1.msra.mxu0 %v2679
    %3780 = vmatprep.subr.mxu0 %v2648
    %3781 = vmatpush1.msra.mxu0 %v2647
    %3782 = vmatprep.subr.mxu0 %v2616
    %3783 = vmatpush1.msra.mxu0 %v2615
    %3784 = vmatprep.subr.mxu0 %v2584
    %3785 = vmatpush1.msra.mxu0 %v2583
    %3786 = vmatprep.subr.mxu0 %v2552
    %3787 = vmatpush1.msra.mxu0 %v2551
    %3788 = vmatprep.subr.mxu0 %v2520
    %3789 = vmatpush1.msra.mxu0 %v2519
    %3790 = vmatprep.subr.mxu0 %v2488
    %3791 = vmatpush1.msra.mxu0 %v2487
    %3792 = vmatprep.subr.mxu0 %v2456
    %3793 = vmatpush1.msra.mxu0 %v2455
    %3794 = vmatprep.subr.mxu0 %v2424
    %3795 = vmatpush1.msra.mxu0 %v2423
    %3796 = vmatprep.subr.mxu0 %v2392
    %3797 = vmatpush1.msra.mxu0 %v2391
    %3798 = vmatprep.subr.mxu0 %v2360
    %3799 = vmatpush1.msra.mxu0 %v2359
    %3800 = vmatprep.subr.mxu0 %v2328
    %3801 = vmatpush1.msra.mxu0 %v2327
    %3802 = vmatprep.subr.mxu0 %v2296
    %3803 = vmatpush1.msra.mxu0 %v2295
    %3804 = vmatprep.subr.mxu0 %v2264
    %3805 = vmatpush1.msra.mxu0 %v2263
    %3806 = vmatprep.subr.mxu0 %v3256
    %3807 = vmatpush2.msra.mxu0 %v3255
    %3808 = vmatprep.subr.mxu0 %v3224
    %3809 = vmatpush2.msra.mxu0 %v3223
    %3810 = vmatprep.subr.mxu0 %v3192
    %3811 = vmatpush2.msra.mxu0 %v3191
    %3812 = vmatprep.subr.mxu0 %v3160
    %3813 = vmatpush2.msra.mxu0 %v3159
    %3814 = vmatprep.subr.mxu0 %v3128
    %3815 = vmatpush2.msra.mxu0 %v3127
    %3816 = vmatprep.subr.mxu0 %v3096
    %3817 = vmatpush2.msra.mxu0 %v3095
    %3818 = vmatprep.subr.mxu0 %v3064
    %3819 = vmatpush2.msra.mxu0 %v3063
    %3820 = vmatprep.subr.mxu0 %v3032
    %3821 = vmatpush2.msra.mxu0 %v3031
    %3822 = vmatprep.subr.mxu0 %v3000
    %3823 = vmatpush2.msra.mxu0 %v2999
    %3824 = vmatprep.subr.mxu0 %v2968
    %3825 = vmatpush2.msra.mxu0 %v2967
    %3826 = vmatprep.subr.mxu0 %v2936
    %3827 = vmatpush2.msra.mxu0 %v2935
    %3828 = vmatprep.subr.mxu0 %v2904
    %3829 = vmatpush2.msra.mxu0 %v2903
    %3830 = vmatprep.subr.mxu0 %v2872
    %3831 = vmatpush2.msra.mxu0 %v2871
    %3832 = vmatprep.subr.mxu0 %v2840
    %3833 = vmatpush2.msra.mxu0 %v2839
    %3834 = vmatprep.subr.mxu0 %v2808
    %3835 = vmatpush2.msra.mxu0 %v2807
    %3836 = vmatprep.subr.mxu0 %v2776
    %3837 = vmatpush2.msra.mxu0 %v2775
    %3838 = vmatprep.mubr.f32.mxu0 %v3275
    %3839 = vmatmul.mubr.f32.gmra.mxu0 %v3273
    %v3840 = vpop.f32.mrf.mxu0
    %v3841 = vadd.f32 0.0, %v3840
    %v3842 = vpop.f32.mrf.mxu0
    %v3843 = vadd.f32 0.0, %v3842
    %3844 = vdwg.mxu0
    %3845 = vmatprep.subr.mxu0 %v2746
    %3846 = vmatpush1.msra.mxu0 %v2745
    %3847 = vmatprep.subr.mxu0 %v2714
    %3848 = vmatpush1.msra.mxu0 %v2713
    %3849 = vmatprep.subr.mxu0 %v2682
    %3850 = vmatpush1.msra.mxu0 %v2681
    %3851 = vmatprep.subr.mxu0 %v2650
    %3852 = vmatpush1.msra.mxu0 %v2649
    %3853 = vmatprep.subr.mxu0 %v2618
    %3854 = vmatpush1.msra.mxu0 %v2617
    %3855 = vmatprep.subr.mxu0 %v2586
    %3856 = vmatpush1.msra.mxu0 %v2585
    %3857 = vmatprep.subr.mxu0 %v2554
    %3858 = vmatpush1.msra.mxu0 %v2553
    %3859 = vmatprep.subr.mxu0 %v2522
    %3860 = vmatpush1.msra.mxu0 %v2521
    %3861 = vmatprep.subr.mxu0 %v2490
    %3862 = vmatpush1.msra.mxu0 %v2489
    %3863 = vmatprep.subr.mxu0 %v2458
    %3864 = vmatpush1.msra.mxu0 %v2457
    %3865 = vmatprep.subr.mxu0 %v2426
    %3866 = vmatpush1.msra.mxu0 %v2425
    %3867 = vmatprep.subr.mxu0 %v2394
    %3868 = vmatpush1.msra.mxu0 %v2393
    %3869 = vmatprep.subr.mxu0 %v2362
    %3870 = vmatpush1.msra.mxu0 %v2361
    %3871 = vmatprep.subr.mxu0 %v2330
    %3872 = vmatpush1.msra.mxu0 %v2329
    %3873 = vmatprep.subr.mxu0 %v2298
    %3874 = vmatpush1.msra.mxu0 %v2297
    %3875 = vmatprep.subr.mxu0 %v2266
    %3876 = vmatpush1.msra.mxu0 %v2265
    %3877 = vmatprep.subr.mxu0 %v3258
    %3878 = vmatpush2.msra.mxu0 %v3257
    %3879 = vmatprep.subr.mxu0 %v3226
    %3880 = vmatpush2.msra.mxu0 %v3225
    %3881 = vmatprep.subr.mxu0 %v3194
    %3882 = vmatpush2.msra.mxu0 %v3193
    %3883 = vmatprep.subr.mxu0 %v3162
    %3884 = vmatpush2.msra.mxu0 %v3161
    %3885 = vmatprep.subr.mxu0 %v3130
    %3886 = vmatpush2.msra.mxu0 %v3129
    %3887 = vmatprep.subr.mxu0 %v3098
    %3888 = vmatpush2.msra.mxu0 %v3097
    %3889 = vmatprep.subr.mxu0 %v3066
    %3890 = vmatpush2.msra.mxu0 %v3065
    %3891 = vmatprep.subr.mxu0 %v3034
    %3892 = vmatpush2.msra.mxu0 %v3033
    %3893 = vmatprep.subr.mxu0 %v3002
    %3894 = vmatpush2.msra.mxu0 %v3001
    %3895 = vmatprep.subr.mxu0 %v2970
    %3896 = vmatpush2.msra.mxu0 %v2969
    %3897 = vmatprep.subr.mxu0 %v2938
    %3898 = vmatpush2.msra.mxu0 %v2937
    %3899 = vmatprep.subr.mxu0 %v2906
    %3900 = vmatpush2.msra.mxu0 %v2905
    %3901 = vmatprep.subr.mxu0 %v2874
    %3902 = vmatpush2.msra.mxu0 %v2873
    %3903 = vmatprep.subr.mxu0 %v2842
    %3904 = vmatpush2.msra.mxu0 %v2841
    %3905 = vmatprep.subr.mxu0 %v2810
    %3906 = vmatpush2.msra.mxu0 %v2809
    %3907 = vmatprep.subr.mxu0 %v2778
    %3908 = vmatpush2.msra.mxu0 %v2777
    %3909 = vmatprep.mubr.f32.mxu0 %v3275
    %3910 = vmatmul.mubr.f32.gmra.mxu0 %v3273
    %v3911 = vpop.f32.mrf.mxu0
    %v3912 = vadd.f32 0.0, %v3911
    %v3913 = vpop.f32.mrf.mxu0
    %v3914 = vadd.f32 0.0, %v3913
    %3915 = vdwg.mxu0
    %3916 = vmatprep.subr.mxu0 %v2748
    %3917 = vmatpush1.msra.mxu0 %v2747
    %3918 = vmatprep.subr.mxu0 %v2716
    %3919 = vmatpush1.msra.mxu0 %v2715
    %3920 = vmatprep.subr.mxu0 %v2684
    %3921 = vmatpush1.msra.mxu0 %v2683
    %3922 = vmatprep.subr.mxu0 %v2652
    %3923 = vmatpush1.msra.mxu0 %v2651
    %3924 = vmatprep.subr.mxu0 %v2620
    %3925 = vmatpush1.msra.mxu0 %v2619
    %3926 = vmatprep.subr.mxu0 %v2588
    %3927 = vmatpush1.msra.mxu0 %v2587
    %3928 = vmatprep.subr.mxu0 %v2556
    %3929 = vmatpush1.msra.mxu0 %v2555
    %3930 = vmatprep.subr.mxu0 %v2524
    %3931 = vmatpush1.msra.mxu0 %v2523
    %3932 = vmatprep.subr.mxu0 %v2492
    %3933 = vmatpush1.msra.mxu0 %v2491
    %3934 = vmatprep.subr.mxu0 %v2460
    %3935 = vmatpush1.msra.mxu0 %v2459
    %3936 = vmatprep.subr.mxu0 %v2428
    %3937 = vmatpush1.msra.mxu0 %v2427
    %3938 = vmatprep.subr.mxu0 %v2396
    %3939 = vmatpush1.msra.mxu0 %v2395
    %3940 = vmatprep.subr.mxu0 %v2364
    %3941 = vmatpush1.msra.mxu0 %v2363
    %3942 = vmatprep.subr.mxu0 %v2332
    %3943 = vmatpush1.msra.mxu0 %v2331
    %3944 = vmatprep.subr.mxu0 %v2300
    %3945 = vmatpush1.msra.mxu0 %v2299
    %3946 = vmatprep.subr.mxu0 %v2268
    %3947 = vmatpush1.msra.mxu0 %v2267
    %3948 = vmatprep.subr.mxu0 %v3260
    %3949 = vmatpush2.msra.mxu0 %v3259
    %3950 = vmatprep.subr.mxu0 %v3228
    %3951 = vmatpush2.msra.mxu0 %v3227
    %3952 = vmatprep.subr.mxu0 %v3196
    %3953 = vmatpush2.msra.mxu0 %v3195
    %3954 = vmatprep.subr.mxu0 %v3164
    %3955 = vmatpush2.msra.mxu0 %v3163
    %3956 = vmatprep.subr.mxu0 %v3132
    %3957 = vmatpush2.msra.mxu0 %v3131
    %3958 = vmatprep.subr.mxu0 %v3100
    %3959 = vmatpush2.msra.mxu0 %v3099
    %3960 = vmatprep.subr.mxu0 %v3068
    %3961 = vmatpush2.msra.mxu0 %v3067
    %3962 = vmatprep.subr.mxu0 %v3036
    %3963 = vmatpush2.msra.mxu0 %v3035
    %3964 = vmatprep.subr.mxu0 %v3004
    %3965 = vmatpush2.msra.mxu0 %v3003
    %3966 = vmatprep.subr.mxu0 %v2972
    %3967 = vmatpush2.msra.mxu0 %v2971
    %3968 = vmatprep.subr.mxu0 %v2940
    %3969 = vmatpush2.msra.mxu0 %v2939
    %3970 = vmatprep.subr.mxu0 %v2908
    %3971 = vmatpush2.msra.mxu0 %v2907
    %3972 = vmatprep.subr.mxu0 %v2876
    %3973 = vmatpush2.msra.mxu0 %v2875
    %3974 = vmatprep.subr.mxu0 %v2844
    %3975 = vmatpush2.msra.mxu0 %v2843
    %3976 = vmatprep.subr.mxu0 %v2812
    %3977 = vmatpush2.msra.mxu0 %v2811
    %3978 = vmatprep.subr.mxu0 %v2780
    %3979 = vmatpush2.msra.mxu0 %v2779
    %3980 = vmatprep.mubr.f32.mxu0 %v3275
    %3981 = vmatmul.mubr.f32.gmra.mxu0 %v3273
    %v3982 = vpop.f32.mrf.mxu0
    %v3983 = vadd.f32 0.0, %v3982
    %v3984 = vpop.f32.mrf.mxu0
    %v3985 = vadd.f32 0.0, %v3984
    %3986 = vdwg.mxu0
    %3987 = vmatprep.subr.mxu0 %v2750
    %3988 = vmatpush1.msra.mxu0 %v2749
    %3989 = vmatprep.subr.mxu0 %v2718
    %3990 = vmatpush1.msra.mxu0 %v2717
    %3991 = vmatprep.subr.mxu0 %v2686
    %3992 = vmatpush1.msra.mxu0 %v2685
    %3993 = vmatprep.subr.mxu0 %v2654
    %3994 = vmatpush1.msra.mxu0 %v2653
    %3995 = vmatprep.subr.mxu0 %v2622
    %3996 = vmatpush1.msra.mxu0 %v2621
    %3997 = vmatprep.subr.mxu0 %v2590
    %3998 = vmatpush1.msra.mxu0 %v2589
    %3999 = vmatprep.subr.mxu0 %v2558
    %4000 = vmatpush1.msra.mxu0 %v2557
    %4001 = vmatprep.subr.mxu0 %v2526
    %4002 = vmatpush1.msra.mxu0 %v2525
    %4003 = vmatprep.subr.mxu0 %v2494
    %4004 = vmatpush1.msra.mxu0 %v2493
    %4005 = vmatprep.subr.mxu0 %v2462
    %4006 = vmatpush1.msra.mxu0 %v2461
    %4007 = vmatprep.subr.mxu0 %v2430
    %4008 = vmatpush1.msra.mxu0 %v2429
    %4009 = vmatprep.subr.mxu0 %v2398
    %4010 = vmatpush1.msra.mxu0 %v2397
    %4011 = vmatprep.subr.mxu0 %v2366
    %4012 = vmatpush1.msra.mxu0 %v2365
    %4013 = vmatprep.subr.mxu0 %v2334
    %4014 = vmatpush1.msra.mxu0 %v2333
    %4015 = vmatprep.subr.mxu0 %v2302
    %4016 = vmatpush1.msra.mxu0 %v2301
    %4017 = vmatprep.subr.mxu0 %v2270
    %4018 = vmatpush1.msra.mxu0 %v2269
    %4019 = vmatprep.subr.mxu0 %v3262
    %4020 = vmatpush2.msra.mxu0 %v3261
    %4021 = vmatprep.subr.mxu0 %v3230
    %4022 = vmatpush2.msra.mxu0 %v3229
    %4023 = vmatprep.subr.mxu0 %v3198
    %4024 = vmatpush2.msra.mxu0 %v3197
    %4025 = vmatprep.subr.mxu0 %v3166
    %4026 = vmatpush2.msra.mxu0 %v3165
    %4027 = vmatprep.subr.mxu0 %v3134
    %4028 = vmatpush2.msra.mxu0 %v3133
    %4029 = vmatprep.subr.mxu0 %v3102
    %4030 = vmatpush2.msra.mxu0 %v3101
    %4031 = vmatprep.subr.mxu0 %v3070
    %4032 = vmatpush2.msra.mxu0 %v3069
    %4033 = vmatprep.subr.mxu0 %v3038
    %4034 = vmatpush2.msra.mxu0 %v3037
    %4035 = vmatprep.subr.mxu0 %v3006
    %4036 = vmatpush2.msra.mxu0 %v3005
    %4037 = vmatprep.subr.mxu0 %v2974
    %4038 = vmatpush2.msra.mxu0 %v2973
    %4039 = vmatprep.subr.mxu0 %v2942
    %4040 = vmatpush2.msra.mxu0 %v2941
    %4041 = vmatprep.subr.mxu0 %v2910
    %4042 = vmatpush2.msra.mxu0 %v2909
    %4043 = vmatprep.subr.mxu0 %v2878
    %4044 = vmatpush2.msra.mxu0 %v2877
    %4045 = vmatprep.subr.mxu0 %v2846
    %4046 = vmatpush2.msra.mxu0 %v2845
    %4047 = vmatprep.subr.mxu0 %v2814
    %4048 = vmatpush2.msra.mxu0 %v2813
    %4049 = vmatprep.subr.mxu0 %v2782
    %4050 = vmatpush2.msra.mxu0 %v2781
    %4051 = vmatprep.mubr.f32.mxu0 %v3275
    %4052 = vmatmul.mubr.f32.gmra.mxu0 %v3273
    %v4053 = vpop.f32.mrf.mxu0
    %v4054 = vadd.f32 0.0, %v4053
    %v4055 = vpop.f32.mrf.mxu0
    %v4056 = vadd.f32 0.0, %v4055
    %4057 = vdwg.mxu0
    %4058 = vmatprep.subr.mxu0 %v2752
    %4059 = vmatpush1.msra.mxu0 %v2751
    %4060 = vmatprep.subr.mxu0 %v2720
    %4061 = vmatpush1.msra.mxu0 %v2719
    %4062 = vmatprep.subr.mxu0 %v2688
    %4063 = vmatpush1.msra.mxu0 %v2687
    %4064 = vmatprep.subr.mxu0 %v2656
    %4065 = vmatpush1.msra.mxu0 %v2655
    %4066 = vmatprep.subr.mxu0 %v2624
    %4067 = vmatpush1.msra.mxu0 %v2623
    %4068 = vmatprep.subr.mxu0 %v2592
    %4069 = vmatpush1.msra.mxu0 %v2591
    %4070 = vmatprep.subr.mxu0 %v2560
    %4071 = vmatpush1.msra.mxu0 %v2559
    %4072 = vmatprep.subr.mxu0 %v2528
    %4073 = vmatpush1.msra.mxu0 %v2527
    %4074 = vmatprep.subr.mxu0 %v2496
    %4075 = vmatpush1.msra.mxu0 %v2495
    %4076 = vmatprep.subr.mxu0 %v2464
    %4077 = vmatpush1.msra.mxu0 %v2463
    %4078 = vmatprep.subr.mxu0 %v2432
    %4079 = vmatpush1.msra.mxu0 %v2431
    %4080 = vmatprep.subr.mxu0 %v2400
    %4081 = vmatpush1.msra.mxu0 %v2399
    %4082 = vmatprep.subr.mxu0 %v2368
    %4083 = vmatpush1.msra.mxu0 %v2367
    %4084 = vmatprep.subr.mxu0 %v2336
    %4085 = vmatpush1.msra.mxu0 %v2335
    %4086 = vmatprep.subr.mxu0 %v2304
    %4087 = vmatpush1.msra.mxu0 %v2303
    %4088 = vmatprep.subr.mxu0 %v2272
    %4089 = vmatpush1.msra.mxu0 %v2271
    %4090 = vmatprep.subr.mxu0 %v3264
    %4091 = vmatpush2.msra.mxu0 %v3263
    %4092 = vmatprep.subr.mxu0 %v3232
    %4093 = vmatpush2.msra.mxu0 %v3231
    %4094 = vmatprep.subr.mxu0 %v3200
    %4095 = vmatpush2.msra.mxu0 %v3199
    %4096 = vmatprep.subr.mxu0 %v3168
    %4097 = vmatpush2.msra.mxu0 %v3167
    %4098 = vmatprep.subr.mxu0 %v3136
    %4099 = vmatpush2.msra.mxu0 %v3135
    %4100 = vmatprep.subr.mxu0 %v3104
    %4101 = vmatpush2.msra.mxu0 %v3103
    %4102 = vmatprep.subr.mxu0 %v3072
    %4103 = vmatpush2.msra.mxu0 %v3071
    %4104 = vmatprep.subr.mxu0 %v3040
    %4105 = vmatpush2.msra.mxu0 %v3039
    %4106 = vmatprep.subr.mxu0 %v3008
    %4107 = vmatpush2.msra.mxu0 %v3007
    %4108 = vmatprep.subr.mxu0 %v2976
    %4109 = vmatpush2.msra.mxu0 %v2975
    %4110 = vmatprep.subr.mxu0 %v2944
    %4111 = vmatpush2.msra.mxu0 %v2943
    %4112 = vmatprep.subr.mxu0 %v2912
    %4113 = vmatpush2.msra.mxu0 %v2911
    %4114 = vmatprep.subr.mxu0 %v2880
    %4115 = vmatpush2.msra.mxu0 %v2879
    %4116 = vmatprep.subr.mxu0 %v2848
    %4117 = vmatpush2.msra.mxu0 %v2847
    %4118 = vmatprep.subr.mxu0 %v2816
    %4119 = vmatpush2.msra.mxu0 %v2815
    %4120 = vmatprep.subr.mxu0 %v2784
    %4121 = vmatpush2.msra.mxu0 %v2783
    %4122 = vmatprep.mubr.f32.mxu0 %v3275
    %4123 = vmatmul.mubr.f32.gmra.mxu0 %v3273
    %v4124 = vpop.f32.mrf.mxu0
    %v4125 = vadd.f32 0.0, %v4124
    %v4126 = vpop.f32.mrf.mxu0
    %v4127 = vadd.f32 0.0, %v4126
    %4128 = vdwg.mxu0
    %4129 = vmatprep.subr.mxu0 %v2754
    %4130 = vmatpush1.msra.mxu0 %v2753
    %4131 = vmatprep.subr.mxu0 %v2722
    %4132 = vmatpush1.msra.mxu0 %v2721
    %4133 = vmatprep.subr.mxu0 %v2690
    %4134 = vmatpush1.msra.mxu0 %v2689
    %4135 = vmatprep.subr.mxu0 %v2658
    %4136 = vmatpush1.msra.mxu0 %v2657
    %4137 = vmatprep.subr.mxu0 %v2626
    %4138 = vmatpush1.msra.mxu0 %v2625
    %4139 = vmatprep.subr.mxu0 %v2594
    %4140 = vmatpush1.msra.mxu0 %v2593
    %4141 = vmatprep.subr.mxu0 %v2562
    %4142 = vmatpush1.msra.mxu0 %v2561
    %4143 = vmatprep.subr.mxu0 %v2530
    %4144 = vmatpush1.msra.mxu0 %v2529
    %4145 = vmatprep.subr.mxu0 %v2498
    %4146 = vmatpush1.msra.mxu0 %v2497
    %4147 = vmatprep.subr.mxu0 %v2466
    %4148 = vmatpush1.msra.mxu0 %v2465
    %4149 = vmatprep.subr.mxu0 %v2434
    %4150 = vmatpush1.msra.mxu0 %v2433
    %4151 = vmatprep.subr.mxu0 %v2402
    %4152 = vmatpush1.msra.mxu0 %v2401
    %4153 = vmatprep.subr.mxu0 %v2370
    %4154 = vmatpush1.msra.mxu0 %v2369
    %4155 = vmatprep.subr.mxu0 %v2338
    %4156 = vmatpush1.msra.mxu0 %v2337
    %4157 = vmatprep.subr.mxu0 %v2306
    %4158 = vmatpush1.msra.mxu0 %v2305
    %4159 = vmatprep.subr.mxu0 %v2274
    %4160 = vmatpush1.msra.mxu0 %v2273
    %4161 = vmatprep.subr.mxu0 %v3266
    %4162 = vmatpush2.msra.mxu0 %v3265
    %4163 = vmatprep.subr.mxu0 %v3234
    %4164 = vmatpush2.msra.mxu0 %v3233
    %4165 = vmatprep.subr.mxu0 %v3202
    %4166 = vmatpush2.msra.mxu0 %v3201
    %4167 = vmatprep.subr.mxu0 %v3170
    %4168 = vmatpush2.msra.mxu0 %v3169
    %4169 = vmatprep.subr.mxu0 %v3138
    %4170 = vmatpush2.msra.mxu0 %v3137
    %4171 = vmatprep.subr.mxu0 %v3106
    %4172 = vmatpush2.msra.mxu0 %v3105
    %4173 = vmatprep.subr.mxu0 %v3074
    %4174 = vmatpush2.msra.mxu0 %v3073
    %4175 = vmatprep.subr.mxu0 %v3042
    %4176 = vmatpush2.msra.mxu0 %v3041
    %4177 = vmatprep.subr.mxu0 %v3010
    %4178 = vmatpush2.msra.mxu0 %v3009
    %4179 = vmatprep.subr.mxu0 %v2978
    %4180 = vmatpush2.msra.mxu0 %v2977
    %4181 = vmatprep.subr.mxu0 %v2946
    %4182 = vmatpush2.msra.mxu0 %v2945
    %4183 = vmatprep.subr.mxu0 %v2914
    %4184 = vmatpush2.msra.mxu0 %v2913
    %4185 = vmatprep.subr.mxu0 %v2882
    %4186 = vmatpush2.msra.mxu0 %v2881
    %4187 = vmatprep.subr.mxu0 %v2850
    %4188 = vmatpush2.msra.mxu0 %v2849
    %4189 = vmatprep.subr.mxu0 %v2818
    %4190 = vmatpush2.msra.mxu0 %v2817
    %4191 = vmatprep.subr.mxu0 %v2786
    %4192 = vmatpush2.msra.mxu0 %v2785
    %4193 = vmatprep.mubr.f32.mxu0 %v3275
    %4194 = vmatmul.mubr.f32.gmra.mxu0 %v3273
    %v4195 = vpop.f32.mrf.mxu0
    %v4196 = vadd.f32 0.0, %v4195
    %v4197 = vpop.f32.mrf.mxu0
    %v4198 = vadd.f32 0.0, %v4197
    %4199 = vdwg.mxu0
    %4200 = vmatprep.subr.mxu0 %v2756
    %4201 = vmatpush1.msra.mxu0 %v2755
    %4202 = vmatprep.subr.mxu0 %v2724
    %4203 = vmatpush1.msra.mxu0 %v2723
    %4204 = vmatprep.subr.mxu0 %v2692
    %4205 = vmatpush1.msra.mxu0 %v2691
    %4206 = vmatprep.subr.mxu0 %v2660
    %4207 = vmatpush1.msra.mxu0 %v2659
    %4208 = vmatprep.subr.mxu0 %v2628
    %4209 = vmatpush1.msra.mxu0 %v2627
    %4210 = vmatprep.subr.mxu0 %v2596
    %4211 = vmatpush1.msra.mxu0 %v2595
    %4212 = vmatprep.subr.mxu0 %v2564
    %4213 = vmatpush1.msra.mxu0 %v2563
    %4214 = vmatprep.subr.mxu0 %v2532
    %4215 = vmatpush1.msra.mxu0 %v2531
    %4216 = vmatprep.subr.mxu0 %v2500
    %4217 = vmatpush1.msra.mxu0 %v2499
    %4218 = vmatprep.subr.mxu0 %v2468
    %4219 = vmatpush1.msra.mxu0 %v2467
    %4220 = vmatprep.subr.mxu0 %v2436
    %4221 = vmatpush1.msra.mxu0 %v2435
    %4222 = vmatprep.subr.mxu0 %v2404
    %4223 = vmatpush1.msra.mxu0 %v2403
    %4224 = vmatprep.subr.mxu0 %v2372
    %4225 = vmatpush1.msra.mxu0 %v2371
    %4226 = vmatprep.subr.mxu0 %v2340
    %4227 = vmatpush1.msra.mxu0 %v2339
    %4228 = vmatprep.subr.mxu0 %v2308
    %4229 = vmatpush1.msra.mxu0 %v2307
    %4230 = vmatprep.subr.mxu0 %v2276
    %4231 = vmatpush1.msra.mxu0 %v2275
    %4232 = vmatprep.subr.mxu0 %v3268
    %4233 = vmatpush2.msra.mxu0 %v3267
    %4234 = vmatprep.subr.mxu0 %v3236
    %4235 = vmatpush2.msra.mxu0 %v3235
    %4236 = vmatprep.subr.mxu0 %v3204
    %4237 = vmatpush2.msra.mxu0 %v3203
    %4238 = vmatprep.subr.mxu0 %v3172
    %4239 = vmatpush2.msra.mxu0 %v3171
    %4240 = vmatprep.subr.mxu0 %v3140
    %4241 = vmatpush2.msra.mxu0 %v3139
    %4242 = vmatprep.subr.mxu0 %v3108
    %4243 = vmatpush2.msra.mxu0 %v3107
    %4244 = vmatprep.subr.mxu0 %v3076
    %4245 = vmatpush2.msra.mxu0 %v3075
    %4246 = vmatprep.subr.mxu0 %v3044
    %4247 = vmatpush2.msra.mxu0 %v3043
    %4248 = vmatprep.subr.mxu0 %v3012
    %4249 = vmatpush2.msra.mxu0 %v3011
    %4250 = vmatprep.subr.mxu0 %v2980
    %4251 = vmatpush2.msra.mxu0 %v2979
    %4252 = vmatprep.subr.mxu0 %v2948
    %4253 = vmatpush2.msra.mxu0 %v2947
    %4254 = vmatprep.subr.mxu0 %v2916
    %4255 = vmatpush2.msra.mxu0 %v2915
    %4256 = vmatprep.subr.mxu0 %v2884
    %4257 = vmatpush2.msra.mxu0 %v2883
    %4258 = vmatprep.subr.mxu0 %v2852
    %4259 = vmatpush2.msra.mxu0 %v2851
    %4260 = vmatprep.subr.mxu0 %v2820
    %4261 = vmatpush2.msra.mxu0 %v2819
    %4262 = vmatprep.subr.mxu0 %v2788
    %4263 = vmatpush2.msra.mxu0 %v2787
    %4264 = vmatprep.mubr.f32.mxu0 %v3275
    %4265 = vmatmul.mubr.f32.gmra.mxu0 %v3273
    %v4266 = vpop.f32.mrf.mxu0
    %v4267 = vadd.f32 0.0, %v4266
    %v4268 = vpop.f32.mrf.mxu0
    %v4269 = vadd.f32 0.0, %v4268
    %4270 = vdwg.mxu0
    %4271 = vmatprep.subr.mxu0 %v2758
    %4272 = vmatpush1.msra.mxu0 %v2757
    %4273 = vmatprep.subr.mxu0 %v2726
    %4274 = vmatpush1.msra.mxu0 %v2725
    %4275 = vmatprep.subr.mxu0 %v2694
    %4276 = vmatpush1.msra.mxu0 %v2693
    %4277 = vmatprep.subr.mxu0 %v2662
    %4278 = vmatpush1.msra.mxu0 %v2661
    %4279 = vmatprep.subr.mxu0 %v2630
    %4280 = vmatpush1.msra.mxu0 %v2629
    %4281 = vmatprep.subr.mxu0 %v2598
    %4282 = vmatpush1.msra.mxu0 %v2597
    %4283 = vmatprep.subr.mxu0 %v2566
    %4284 = vmatpush1.msra.mxu0 %v2565
    %4285 = vmatprep.subr.mxu0 %v2534
    %4286 = vmatpush1.msra.mxu0 %v2533
    %4287 = vmatprep.subr.mxu0 %v2502
    %4288 = vmatpush1.msra.mxu0 %v2501
    %4289 = vmatprep.subr.mxu0 %v2470
    %4290 = vmatpush1.msra.mxu0 %v2469
    %4291 = vmatprep.subr.mxu0 %v2438
    %4292 = vmatpush1.msra.mxu0 %v2437
    %4293 = vmatprep.subr.mxu0 %v2406
    %4294 = vmatpush1.msra.mxu0 %v2405
    %4295 = vmatprep.subr.mxu0 %v2374
    %4296 = vmatpush1.msra.mxu0 %v2373
    %4297 = vmatprep.subr.mxu0 %v2342
    %4298 = vmatpush1.msra.mxu0 %v2341
    %4299 = vmatprep.subr.mxu0 %v2310
    %4300 = vmatpush1.msra.mxu0 %v2309
    %4301 = vmatprep.subr.mxu0 %v2278
    %4302 = vmatpush1.msra.mxu0 %v2277
    %4303 = vmatprep.subr.mxu0 %v3270
    %4304 = vmatpush2.msra.mxu0 %v3269
    %4305 = vmatprep.subr.mxu0 %v3238
    %4306 = vmatpush2.msra.mxu0 %v3237
    %4307 = vmatprep.subr.mxu0 %v3206
    %4308 = vmatpush2.msra.mxu0 %v3205
    %4309 = vmatprep.subr.mxu0 %v3174
    %4310 = vmatpush2.msra.mxu0 %v3173
    %4311 = vmatprep.subr.mxu0 %v3142
    %4312 = vmatpush2.msra.mxu0 %v3141
    %4313 = vmatprep.subr.mxu0 %v3110
    %4314 = vmatpush2.msra.mxu0 %v3109
    %4315 = vmatprep.subr.mxu0 %v3078
    %4316 = vmatpush2.msra.mxu0 %v3077
    %4317 = vmatprep.subr.mxu0 %v3046
    %4318 = vmatpush2.msra.mxu0 %v3045
    %4319 = vmatprep.subr.mxu0 %v3014
    %4320 = vmatpush2.msra.mxu0 %v3013
    %4321 = vmatprep.subr.mxu0 %v2982
    %4322 = vmatpush2.msra.mxu0 %v2981
    %4323 = vmatprep.subr.mxu0 %v2950
    %4324 = vmatpush2.msra.mxu0 %v2949
    %4325 = vmatprep.subr.mxu0 %v2918
    %4326 = vmatpush2.msra.mxu0 %v2917
    %4327 = vmatprep.subr.mxu0 %v2886
    %4328 = vmatpush2.msra.mxu0 %v2885
    %4329 = vmatprep.subr.mxu0 %v2854
    %4330 = vmatpush2.msra.mxu0 %v2853
    %4331 = vmatprep.subr.mxu0 %v2822
    %4332 = vmatpush2.msra.mxu0 %v2821
    %4333 = vmatprep.subr.mxu0 %v2790
    %4334 = vmatpush2.msra.mxu0 %v2789
    %4335 = vmatprep.mubr.f32.mxu0 %v3275
    %4336 = vmatmul.mubr.f32.gmra.mxu0 %v3273
    %v4337 = vpop.f32.mrf.mxu0
    %v4338 = vadd.f32 0.0, %v4337
    %v4339 = vpop.f32.mrf.mxu0
    %v4340 = vadd.f32 0.0, %v4339
    %4341 = vdwg.mxu0
    %4342 = vmatprep.subr.mxu0 %v2760
    %4343 = vmatpush1.msra.mxu0 %v2759
    %4344 = vmatprep.subr.mxu0 %v2728
    %4345 = vmatpush1.msra.mxu0 %v2727
    %4346 = vmatprep.subr.mxu0 %v2696
    %4347 = vmatpush1.msra.mxu0 %v2695
    %4348 = vmatprep.subr.mxu0 %v2664
    %4349 = vmatpush1.msra.mxu0 %v2663
    %4350 = vmatprep.subr.mxu0 %v2632
    %4351 = vmatpush1.msra.mxu0 %v2631
    %4352 = vmatprep.subr.mxu0 %v2600
    %4353 = vmatpush1.msra.mxu0 %v2599
    %4354 = vmatprep.subr.mxu0 %v2568
    %4355 = vmatpush1.msra.mxu0 %v2567
    %4356 = vmatprep.subr.mxu0 %v2536
    %4357 = vmatpush1.msra.mxu0 %v2535
    %4358 = vmatprep.subr.mxu0 %v2504
    %4359 = vmatpush1.msra.mxu0 %v2503
    %4360 = vmatprep.subr.mxu0 %v2472
    %4361 = vmatpush1.msra.mxu0 %v2471
    %4362 = vmatprep.subr.mxu0 %v2440
    %4363 = vmatpush1.msra.mxu0 %v2439
    %4364 = vmatprep.subr.mxu0 %v2408
    %4365 = vmatpush1.msra.mxu0 %v2407
    %4366 = vmatprep.subr.mxu0 %v2376
    %4367 = vmatpush1.msra.mxu0 %v2375
    %4368 = vmatprep.subr.mxu0 %v2344
    %4369 = vmatpush1.msra.mxu0 %v2343
    %4370 = vmatprep.subr.mxu0 %v2312
    %4371 = vmatpush1.msra.mxu0 %v2311
    %4372 = vmatprep.subr.mxu0 %v2280
    %4373 = vmatpush1.msra.mxu0 %v2279
    %4374 = vmatprep.subr.mxu0 %v3272
    %4375 = vmatpush2.msra.mxu0 %v3271
    %4376 = vmatprep.subr.mxu0 %v3240
    %4377 = vmatpush2.msra.mxu0 %v3239
    %4378 = vmatprep.subr.mxu0 %v3208
    %4379 = vmatpush2.msra.mxu0 %v3207
    %4380 = vmatprep.subr.mxu0 %v3176
    %4381 = vmatpush2.msra.mxu0 %v3175
    %4382 = vmatprep.subr.mxu0 %v3144
    %4383 = vmatpush2.msra.mxu0 %v3143
    %4384 = vmatprep.subr.mxu0 %v3112
    %4385 = vmatpush2.msra.mxu0 %v3111
    %4386 = vmatprep.subr.mxu0 %v3080
    %4387 = vmatpush2.msra.mxu0 %v3079
    %4388 = vmatprep.subr.mxu0 %v3048
    %4389 = vmatpush2.msra.mxu0 %v3047
    %4390 = vmatprep.subr.mxu0 %v3016
    %4391 = vmatpush2.msra.mxu0 %v3015
    %4392 = vmatprep.subr.mxu0 %v2984
    %4393 = vmatpush2.msra.mxu0 %v2983
    %4394 = vmatprep.subr.mxu0 %v2952
    %4395 = vmatpush2.msra.mxu0 %v2951
    %4396 = vmatprep.subr.mxu0 %v2920
    %4397 = vmatpush2.msra.mxu0 %v2919
    %4398 = vmatprep.subr.mxu0 %v2888
    %4399 = vmatpush2.msra.mxu0 %v2887
    %4400 = vmatprep.subr.mxu0 %v2856
    %4401 = vmatpush2.msra.mxu0 %v2855
    %4402 = vmatprep.subr.mxu0 %v2824
    %4403 = vmatpush2.msra.mxu0 %v2823
    %4404 = vmatprep.subr.mxu0 %v2792
    %4405 = vmatpush2.msra.mxu0 %v2791
    %4406 = vmatprep.mubr.f32.mxu0 %v3275
    %4407 = vmatmul.mubr.f32.gmra.mxu0 %v3273
    %v4408 = vpop.f32.mrf.mxu0
    %v4409 = vadd.f32 0.0, %v4408
    %v4410 = vpop.f32.mrf.mxu0
    %v4411 = vadd.f32 0.0, %v4410
    %4412 = vdwg.mxu0
    %v4445 = vcombine.low %v3344, %v3346
    %v4446 = vcombine.low %v3415, %v3417
    %v4447 = vcombine.low %v3486, %v3488
    %v4448 = vcombine.low %v3557, %v3559
    %v4449 = vcombine.low %v3628, %v3630
    %v4450 = vcombine.low %v3699, %v3701
    %v4451 = vcombine.low %v3770, %v3772
    %v4452 = vcombine.low %v3841, %v3843
    %v4453 = vcombine.low %v3912, %v3914
    %v4454 = vcombine.low %v3983, %v3985
    %v4455 = vcombine.low %v4054, %v4056
    %v4456 = vcombine.low %v4125, %v4127
    %v4457 = vcombine.low %v4196, %v4198
    %v4458 = vcombine.low %v4267, %v4269
    %v4459 = vcombine.low %v4338, %v4340
    %v4460 = vcombine.low %v4409, %v4411
    %4477 = vst [vmem:[#allocation7] sm:$0xff] %v4445
    %4478 = vst [vmem:[#allocation7 + $0x8] sm:$0xff] %v4446
    %4479 = vst [vmem:[#allocation7 + $0x10] sm:$0xff] %v4447
    %4480 = vst [vmem:[#allocation7 + $0x18] sm:$0xff] %v4448
    %4481 = vst [vmem:[#allocation7 + $0x20] sm:$0xff] %v4449
    %4482 = vst [vmem:[#allocation7 + $0x28] sm:$0xff] %v4450
    %4483 = vst [vmem:[#allocation7 + $0x30] sm:$0xff] %v4451
    %4484 = vst [vmem:[#allocation7 + $0x38] sm:$0xff] %v4452
    %4485 = vst [vmem:[#allocation7 + $0x40] sm:$0xff] %v4453
    %4486 = vst [vmem:[#allocation7 + $0x48] sm:$0xff] %v4454
    %4487 = vst [vmem:[#allocation7 + $0x50] sm:$0xff] %v4455
    %4488 = vst [vmem:[#allocation7 + $0x58] sm:$0xff] %v4456
    %4489 = vst [vmem:[#allocation7 + $0x60] sm:$0xff] %v4457
    %4490 = vst [vmem:[#allocation7 + $0x68] sm:$0xff] %v4458
    %4491 = vst [vmem:[#allocation7 + $0x70] sm:$0xff] %v4459
    %4492 = vst [vmem:[#allocation7 + $0x78] sm:$0xff] %v4460
    // Predicated region
    $region18: #{tpu_custom_call.1} parent=1 // pred_check
      _
    $region19: #{tpu_custom_call.1} parent=1 // pred_check_branch
      %4494 = sbr.rel (0) target = $region21
    $region20: #{tpu_custom_call.1} parent=1 // pred_region
      %s4496 = ssub.s32 2048, 2048
      %4497 = vsyncadd [#allocation4], %s4496
      %s4499 = sshll.u32 [#allocation7], 4
      %s4500 = int_to_ptr.vmem [resolvable:$true] %s4499
      %4502 = dma.vmem_to_hbm [thread:$0]  %s4500, 2048, %s2, [#allocation4]
    $region21: #{tpu_custom_call.1} parent=1 // pred_fallthru
      _
    // Predicated region
    $region22: #{tpu_custom_call.1} parent=1 // pred_check
      _
    $region23: #{tpu_custom_call.1} parent=1 // pred_check_branch
      %4504 = sbr.rel (0) target = $region25
    $region24: #{tpu_custom_call.1} parent=1 // pred_region
      %4505 = dma.done [#allocation4], 2048
    $region25: #{tpu_custom_call.1} parent=1 // pred_fallthru
      _
    %4506 = vsyncpa [#allocation3], 1
    %4507 = vsyncpa [#allocation6], 1
    %4508 = vsyncpa [#allocation4], 1

</llo_original>
